<compile_context>
chip_gen: v5e
topology: v5e:2x2
jax: 0.10.0
libtpu: 0.0.40
codegen_flags: <defaults>
</compile_context>

<pallas_src>
import functools
import math

import jax
import jax.numpy as jnp
import numpy as np
from jax.experimental import pallas as pl
from jax.experimental.pallas import tpu as pltpu


# ------------------------------ fused kernel ---------------------------------
def _one_iter_kernel(scal_ref, xin_ref, edge_ref, m12_ref, wd_ref, bd_ref,
                     w4_ref, b4_ref, wg_ref, pred_ref, sym_ref, *, C, L, G):
    f32 = jnp.float32
    GL = G * L
    a_r, a_i = scal_ref[0], scal_ref[1]          # alpha (complex)
    thr_r, thr_i = scal_ref[2], scal_ref[3]      # soft thresholds
    bg_r, bg_i = scal_ref[4], scal_ref[5]        # conv_G combined biases

    # ---- R_cal:  z = AH A x - AH b  via ONE block-complex matmul -------------
    xin = xin_ref[...][:, 0, :]                  # (G, 4L) = [x_r|x_i|AHb_r|AHb_i]
    v = xin[:, :2 * L]                           # (G, 2L)
    z = jnp.dot(v.astype(m12_ref.dtype), m12_ref[...],
                preferred_element_type=f32)      # (G, 2L)
    z_r = z[:, :L] - xin[:, 2 * L:3 * L]
    z_i = z[:, L:2 * L] - xin[:, 3 * L:]
    v_r, v_i = xin[:, :L], xin[:, L:2 * L]
    xin_r = v_r - (a_r * z_r - a_i * z_i)        # x_input = x - alpha * z
    xin_i = v_i - (a_r * z_i + a_i * z_r)        # (G, L)

    # ---- lane-batch: (G, L) -> (1, G*L), batch-major along lanes --------------
    def lanes(x):
        if G == 1:
            return x
        return jnp.concatenate([x[g:g + 1, :] for g in range(G)], axis=1)
    xr = lanes(xin_r)                            # (1, GL)
    xi = lanes(xin_i)

    # ---- hoisted per-step constants -------------------------------------------
    edge = edge_ref[...]                         # (2, 2*GL): keep_prev / keep_next
    kp2, kn2 = edge[0:1, :], edge[1:2, :]
    kp1, kn1 = kp2[:, :GL], kn2[:, :GL]
    rows = jax.lax.broadcasted_iota(jnp.int32, (2 * C, 1), 0)
    thr = jnp.where(rows < C, thr_r, thr_i)      # (2C, 1)

    def taps3(x, kp, kn):                        # (rows, N) -> (3*rows, N)
        n = x.shape[1]
        prev = kp * pltpu.roll(x, shift=1, axis=1)
        nxt = kn * pltpu.roll(x, shift=n - 1, axis=1)
        return jnp.concatenate([prev, x, nxt], axis=0)

    def cconv3(x, idx, kp, kn, relu):
        w = w4_ref[idx]                          # (2C, 6C)
        out = jnp.dot(w, taps3(x, kp, kn).astype(w.dtype),
                      preferred_element_type=f32) + b4_ref[idx]
        return jnp.maximum(out, 0.0) if relu else out

    # ---- conv_D: dedicated 2-input-row path (K = 8 incl. zero pad) -----------
    x2 = jnp.concatenate([xr, xi], axis=0)       # (2, GL)
    td = jnp.concatenate([taps3(x2, kp1, kn1),
                          jnp.zeros((2, GL), f32)], axis=0)       # (8, GL)
    x_d = jnp.maximum(jnp.dot(wd_ref[...], td.astype(wd_ref.dtype),
                              preferred_element_type=f32) + bd_ref[...],
                      0.0)                                        # (2C, GL)

    # ---- H_for -----------------------------------------------------------------
    h = cconv3(x_d, 0, kp1, kn1, True)           # conv1 + ReLU
    x_fwd = cconv3(h, 1, kp1, kn1, False)        # conv2

    # ---- SoftThr: x - clip(x, -thr, thr)  (== sign(x)*relu(|x|-thr), thr>=0) ---
    x_st = x_fwd - jnp.minimum(jnp.maximum(x_fwd, -thr), thr)

    # ---- shared-weight H_back over [main | symmetry] lanes ---------------------
    xcat = jnp.concatenate([x_st, x_fwd], axis=1)                 # (2C, 2*GL)
    hb = cconv3(xcat, 2, kp2, kn2, True)         # conv1 + ReLU
    xb = cconv3(hb, 3, kp2, kn2, False)          # conv2
    x_bwd = xb[:, :GL]                           # H_back(SoftThr(x_forward))
    x_est = xb[:, GL:]                           # H_back(x_forward)

    # ---- conv_G (merged real/imag rows) + residual add -------------------------
    g = jnp.dot(wg_ref[...], x_bwd.astype(wg_ref.dtype),
                preferred_element_type=f32)      # (2, GL)
    pred_r = xr + g[0:1, :] + bg_r
    pred_i = xi + g[1:2, :] + bg_i
    pred_ref[0] = jnp.concatenate([pred_r, pred_i], axis=0)       # (2, GL)

    # ---- symmetry loss ----------------------------------------------------------
    sym_ref[0] = x_est - x_d                                      # (2C, GL)


# ------------------------------ wrapper ---------------------------------------
def one_iter_forward(packed, x_r, x_i, ahb_r, ahb_i, m12_block, *,
                     num_groups=None):
    """One OneIter forward pass as a single fused pallas_call.

    x_r, x_i, ahb_r, ahb_i: (B, 1, L) float32 (PyTorch NCW real/imag pairs).
    m12_block: (2L, 2L) precomposed real block operator (rebuild if mask/LW
    change).  num_groups: number of grid steps (default 2 -> one per v7x TC);
    each step lane-batches G = B/num_groups batch elements.
    """
    B, _, L = x_r.shape
    C = packed["W4"].shape[1] // 2
    if num_groups is None:
        num_groups = 2 if (B % 2 == 0 and B >= 2) else 1
    assert B % num_groups == 0
    G = B // num_groups
    GL = G * L

    # pack the four per-batch vectors into ONE input (one DMA per grid step)
    xpack = jnp.concatenate([x_r, x_i, ahb_r, ahb_i], axis=-1)    # (B, 1, 4L)

    # within-sample boundary masks for the roll-based taps (hoisted, host-built)
    cols = jnp.arange(2 * GL, dtype=jnp.int32) % L
    edge = jnp.stack([(cols != 0), (cols != L - 1)]).astype(jnp.float32)

    kernel = functools.partial(_one_iter_kernel, C=C, L=L, G=G)
    pred, sym = pl.pallas_call(
        kernel,
        out_shape=(
            jax.ShapeDtypeStruct((num_groups, 2, GL), jnp.float32),      # pred r/i
            jax.ShapeDtypeStruct((num_groups, 2 * C, GL), jnp.float32),  # symloss
        ),
        grid=(num_groups,),
        in_specs=[
            pl.BlockSpec(memory_space=pltpu.MemorySpace.SMEM),           # scalars
            pl.BlockSpec((G, 1, 4 * L), lambda g: (g, 0, 0)),            # packed x
            pl.BlockSpec((2, 2 * GL), lambda g: (0, 0)),                 # edge masks
            pl.BlockSpec((2 * L, 2 * L), lambda g: (0, 0)),              # M12 block
            pl.BlockSpec((2 * C, 8), lambda g: (0, 0)),                  # conv_D W
            pl.BlockSpec((2 * C, 1), lambda g: (0, 0)),                  # conv_D b
            pl.BlockSpec((4, 2 * C, 6 * C), lambda g: (0, 0, 0)),        # ks=3 W
            pl.BlockSpec((4, 2 * C, 1), lambda g: (0, 0, 0)),            # ks=3 b
            pl.BlockSpec((2, 2 * C), lambda g: (0, 0)),                  # conv_G W
        ],
        out_specs=(
            pl.BlockSpec((1, 2, GL), lambda g: (g, 0, 0)),
            pl.BlockSpec((1, 2 * C, GL), lambda g: (g, 0, 0)),
        ),
        compiler_params=pltpu.CompilerParams(
            dimension_semantics=("parallel",)),
    )(packed["scal"], xpack, edge, m12_block,
      packed["wd"], packed["bd"], packed["W4"], packed["B4"], packed["wg"])

    # un-lane-batch back to the PyTorch NCW layout (cheap XLA reshapes)
    pred = pred.reshape(num_groups, 2, G, L).transpose(0, 2, 1, 3).reshape(B, 2, L)
    sym = sym.reshape(num_groups, 2 * C, G, L).transpose(0, 2, 1, 3).reshape(B, 2 * C, L)
    return (pred[:, 0:1, :], pred[:, 1:2, :], sym[:, :C, :], sym[:, C:, :])


# --------------------------- parameter init / packing -------------------------
def init_cconv(key, c_in, c_out, ks):
    """PyTorch-layout CConv params: conv_r / conv_i weights (C_out, C_in, ks)."""
    bound = 1.0 / math.sqrt(c_in * ks)
    k0, k1, k2, k3 = jax.random.split(key, 4)
    return {
        "w_r": jax.random.uniform(k0, (c_out, c_in, ks), jnp.float32, -bound, bound),
        "w_i": jax.random.uniform(k1, (c_out, c_in, ks), jnp.float32, -bound, bound),
        "b_r": jax.random.uniform(k2, (c_out,), jnp.float32, -bound, bound),
        "b_i": jax.random.uniform(k3, (c_out,), jnp.float32, -bound, bound),
    }


def init_one_iter(key, num_in=32, num_out=32):
    ks = jax.random.split(key, 6)
    return {
        "alpha": jnp.array([0.5, 0.0], jnp.float32),        # alpha_r, alpha_i
        "soft_thr": jnp.array([0.01, 0.01], jnp.float32),   # thr_r, thr_i
        "conv_D": init_cconv(ks[0], 1, num_in, 3),
        "H_for": {"conv1": init_cconv(ks[1], num_in, num_out, 3),
                  "conv2": init_cconv(ks[2], num_out, num_out, 3)},
        "H_back": {"conv1": init_cconv(ks[3], num_out, num_out, 3),
                   "conv2": init_cconv(ks[4], num_out, num_out, 3)},
        "conv_G": init_cconv(ks[5], num_out, 1, 1),
    }


def pack_cconv(p):
    """Pack CConv (conv_r/conv_i + biases) into one real block weight matrix.

    Columns per tap k: [W_r[:,:,k] | -W_i[:,:,k]] for the out_r rows and
    [W_i[:,:,k] | W_r[:,:,k]] for the out_i rows; combined biases are
    (b_r - b_i) / (b_r + b_i) -> matches the PyTorch CConv exactly.
    """
    w_r, w_i = p["w_r"], p["w_i"]
    ks = w_r.shape[2]
    blocks = []
    for k in range(ks):
        top = jnp.concatenate([w_r[:, :, k], -w_i[:, :, k]], axis=1)
        bot = jnp.concatenate([w_i[:, :, k], w_r[:, :, k]], axis=1)
        blocks.append(jnp.concatenate([top, bot], axis=0))
    w_p = jnp.concatenate(blocks, axis=1)                  # (2*C_out, ks*2*C_in)
    b_p = jnp.concatenate([p["b_r"] - p["b_i"], p["b_r"] + p["b_i"]])[:, None]
    return w_p, b_p


def pack_one_iter(params, matmul_dtype=jnp.float32):
    wd, bd = pack_cconv(params["conv_D"])                  # (2C, 6), (2C, 1)
    wd = jnp.pad(wd, ((0, 0), (0, 2)))                     # K padded 6 -> 8
    wf1, bf1 = pack_cconv(params["H_for"]["conv1"])
    wf2, bf2 = pack_cconv(params["H_for"]["conv2"])
    wb1, bb1 = pack_cconv(params["H_back"]["conv1"])
    wb2, bb2 = pack_cconv(params["H_back"]["conv2"])
    wg, bgv = pack_cconv(params["conv_G"])                 # (2, 2C), (2, 1)
    scal = jnp.concatenate([params["alpha"], params["soft_thr"], bgv[:, 0]])
    return {
        "scal": scal,                                      # (6,) SMEM scalars
        "wd": wd.astype(matmul_dtype),                     # (2C, 8)
        "bd": bd,                                          # (2C, 1)
        "W4": jnp.stack([wf1, wf2, wb1, wb2]).astype(matmul_dtype),  # (4,2C,6C)
        "B4": jnp.stack([bf1, bf2, bb1, bb2]),             # (4, 2C, 1)
        "wg": wg.astype(matmul_dtype),                     # (2, 2C)
    }


def build_m12_block(mask, lw, matmul_dtype=jnp.float32):
    """Precompose Ax->AHx (row-vector convention) into one real block matrix.

    AHA(v) = ((v @ M1) * mask^2 * LW^2) @ M2 with v@M1 = ifft(ifftshift(v)),
    u@M2 = fftshift(fft(u)); the sqrt(N) factors cancel exactly.  Rebuild
    whenever mask or LW_kernels change.
    """
    L = mask.shape[0]
    eye = np.eye(L)
    m1 = np.fft.ifft(np.fft.ifftshift(eye, axes=-1), axis=-1)
    m2 = np.fft.fftshift(np.fft.fft(eye, axis=-1), axes=-1)
    d = (np.asarray(mask, np.complex128) ** 2) * (np.asarray(lw, np.complex128) ** 2)
    m12 = (m1 * d[None, :]) @ m2
    blk = np.block([[m12.real, m12.imag], [-m12.imag, m12.real]])
    return jnp.asarray(blk, matmul_dtype)


# ------------------------ pure-JAX reference (correctness) --------------------
def reference_forward(packed, m12, x_r, x_i, ahb_r, ahb_i):
    B, _, L = x_r.shape
    C = packed["W4"].shape[1] // 2
    hp = jax.lax.Precision.HIGHEST
    a_r, a_i, t_r, t_i, bg_r, bg_i = [packed["scal"][k] for k in range(6)]
    wd, bd = packed["wd"][:, :6], packed["bd"]
    W4, B4, wg = packed["W4"], packed["B4"], packed["wg"]

    def taps(x):
        z1 = jnp.zeros((x.shape[0], 1), x.dtype)
        prev = jnp.concatenate([z1, x[:, :-1]], axis=1)
        nxt = jnp.concatenate([x[:, 1:], z1], axis=1)
        return jnp.concatenate([prev, x, nxt], axis=0)

    def conv(x, w, b, relu):
        o = jnp.dot(w, taps(x), precision=hp) + b
        return jnp.maximum(o, 0.0) if relu else o

    pr, pi, sr, si = [], [], [], []
    for b in range(B):
        xr, xi = x_r[b, 0], x_i[b, 0]
        z = jnp.dot(jnp.concatenate([xr, xi]), m12, precision=hp)
        z_r, z_i = z[:L] - ahb_r[b, 0], z[L:] - ahb_i[b, 0]
        xin_r = xr - (a_r * z_r - a_i * z_i)
        xin_i = xi - (a_r * z_i + a_i * z_r)
        x_d = conv(jnp.stack([xin_r, xin_i]), wd, bd, True)
        h = conv(x_d, W4[0], B4[0], True)
        x_fwd = conv(h, W4[1], B4[1], False)
        thr = jnp.where(jnp.arange(2 * C)[:, None] < C, t_r, t_i)
        x_st = jnp.sign(x_fwd) * jnp.maximum(jnp.abs(x_fwd) - thr, 0.0)
        x_bwd = conv(conv(x_st, W4[2], B4[2], True), W4[3], B4[3], False)
        g = jnp.dot(wg, x_bwd, precision=hp)
        pr.append(xin_r + g[0] + bg_r)
        pi.append(xin_i + g[1] + bg_i)
        x_est = conv(conv(x_fwd, W4[2], B4[2], True), W4[3], B4[3], False)
        sr.append(x_est[:C] - x_d[:C])
        si.append(x_est[C:] - x_d[C:])
    return (jnp.stack(pr)[:, None, :], jnp.stack(pi)[:, None, :],
            jnp.stack(sr), jnp.stack(si))


# ------------------------------------ main -------------------------------------
if __name__ == "__main__":
    B, C, L = 4, 32, 128   # Nb, num_in/num_out, Nx

    key = jax.random.PRNGKey(0)
    k_par, k_xr, k_xi, k_br, k_bi, k_m = jax.random.split(key, 6)

    params = init_one_iter(k_par, num_in=C, num_out=C)
    packed = pack_one_iter(params)                         # f32; bf16 optional

    x_r = jax.random.normal(k_xr, (B, 1, L), jnp.float32)
    x_i = jax.random.normal(k_xi, (B, 1, L), jnp.float32)
    ahb_r = jax.random.normal(k_br, (B, 1, L), jnp.float32)
    ahb_i = jax.random.normal(k_bi, (B, 1, L), jnp.float32)

    # sampling mask and complex line-width kernel (deterministic setup)
    mask = np.asarray(jax.random.bernoulli(k_m, 0.6, (L,))).astype(np.float64)
    n = np.arange(L)
    lw = np.exp(-n / L) * np.exp(1j * 0.05 * n)
    m12_block = build_m12_block(mask, lw)                  # (2L, 2L) float32

    outs = one_iter_forward(packed, x_r, x_i, ahb_r, ahb_i, m12_block)
    outs = jax.block_until_ready(outs)

    x_pred_r, x_pred_i, symloss_r, symloss_i = outs
    assert x_pred_r.shape == (B, 1, L) and x_pred_i.shape == (B, 1, L)
    assert symloss_r.shape == (B, C, L) and symloss_i.shape == (B, C, L)
    assert all(bool(jnp.all(jnp.isfinite(o))) for o in outs)

    # correctness check against a straightforward pure-JAX reference
    ref = reference_forward(packed, m12_block, x_r, x_i, ahb_r, ahb_i)
    for got, want in zip(outs, ref):
        np.testing.assert_allclose(np.asarray(got), np.asarray(want),
                                   rtol=2e-2, atol=2e-2)

    print("KERNEL_OK")
</pallas_src>

<mosaic_0001>
module attributes {stable_mosaic.version = 11 : i64} {
  func.func @_one_iter_kernel(%arg0: i32, %arg1: memref<6xf32, #tpu.memory_space<smem>>, %arg2: memref<2x1x512xf32, #tpu.memory_space<vmem>>, %arg3: memref<2x512xf32, #tpu.memory_space<vmem>>, %arg4: memref<256x256xf32, #tpu.memory_space<vmem>>, %arg5: memref<64x8xf32, #tpu.memory_space<vmem>>, %arg6: memref<64x1xf32, #tpu.memory_space<vmem>>, %arg7: memref<4x64x192xf32, #tpu.memory_space<vmem>>, %arg8: memref<4x64x1xf32, #tpu.memory_space<vmem>>, %arg9: memref<2x64xf32, #tpu.memory_space<vmem>>, %arg10: memref<1x2x256xf32, #tpu.memory_space<vmem>>, %arg11: memref<1x64x256xf32, #tpu.memory_space<vmem>>) attributes {dimension_semantics = [#tpu.dimension_semantics<parallel>], iteration_bounds = array<i64: 2>, scalar_prefetch = 0 : i64, scratch_operands = 0 : i64, tpu.core_type = #tpu.core_type<tc>, window_params = [{transform_indices = @transform_0, window_bounds = array<i64: 6>}, {transform_indices = @transform_1, window_bounds = array<i64: 2, 1, 512>}, {pipeline_mode = #tpu.pipeline_mode<synchronous>, transform_indices = @transform_2, window_bounds = array<i64: 2, 512>}, {pipeline_mode = #tpu.pipeline_mode<synchronous>, transform_indices = @transform_3, window_bounds = array<i64: 256, 256>}, {pipeline_mode = #tpu.pipeline_mode<synchronous>, transform_indices = @transform_4, window_bounds = array<i64: 64, 8>}, {pipeline_mode = #tpu.pipeline_mode<synchronous>, transform_indices = @transform_5, window_bounds = array<i64: 64, 1>}, {pipeline_mode = #tpu.pipeline_mode<synchronous>, transform_indices = @transform_6, window_bounds = array<i64: 4, 64, 192>}, {pipeline_mode = #tpu.pipeline_mode<synchronous>, transform_indices = @transform_7, window_bounds = array<i64: 4, 64, 1>}, {pipeline_mode = #tpu.pipeline_mode<synchronous>, transform_indices = @transform_8, window_bounds = array<i64: 2, 64>}, {transform_indices = @transform_9, window_bounds = array<i64: 1, 2, 256>}, {transform_indices = @transform_10, window_bounds = array<i64: 1, 64, 256>}]} {
    %c0 = arith.constant 0 : index
    %0 = memref.load %arg1[%c0] : memref<6xf32, #tpu.memory_space<smem>>
    %c1 = arith.constant 1 : index
    %1 = memref.load %arg1[%c1] : memref<6xf32, #tpu.memory_space<smem>>
    %c2 = arith.constant 2 : index
    %2 = memref.load %arg1[%c2] : memref<6xf32, #tpu.memory_space<smem>>
    %c3 = arith.constant 3 : index
    %3 = memref.load %arg1[%c3] : memref<6xf32, #tpu.memory_space<smem>>
    %c4 = arith.constant 4 : index
    %4 = memref.load %arg1[%c4] : memref<6xf32, #tpu.memory_space<smem>>
    %c5 = arith.constant 5 : index
    %5 = memref.load %arg1[%c5] : memref<6xf32, #tpu.memory_space<smem>>
    %c0_0 = arith.constant 0 : index
    %c0_1 = arith.constant 0 : index
    %c0_2 = arith.constant 0 : index
    %6 = vector.load %arg2[%c0_0, %c0_1, %c0_2] : memref<2x1x512xf32, #tpu.memory_space<vmem>>, vector<2x1x512xf32>
    %7 = vector.shape_cast %6 : vector<2x1x512xf32> to vector<2x512xf32>
    %8 = vector.extract_strided_slice %7 {offsets = [0, 0], sizes = [2, 256], strides = [1, 1]} : vector<2x512xf32> to vector<2x256xf32>
    %c0_3 = arith.constant 0 : index
    %c0_4 = arith.constant 0 : index
    %9 = vector.load %arg4[%c0_3, %c0_4] : memref<256x256xf32, #tpu.memory_space<vmem>>, vector<256x256xf32>
    %cst = arith.constant dense<0.000000e+00> : vector<2x256xf32>
    %10 = tpu.matmul %8, %9, %cst {dimension_numbers = #tpu.dot_dimension_numbers<[1], [0], [0], [1], [0, 0, 1, 1], [], []>} : vector<2x256xf32>, vector<256x256xf32>, vector<2x256xf32> -> vector<2x256xf32>
    %11 = vector.extract_strided_slice %10 {offsets = [0, 0], sizes = [2, 128], strides = [1, 1]} : vector<2x256xf32> to vector<2x128xf32>
    %12 = vector.extract_strided_slice %7 {offsets = [0, 256], sizes = [2, 128], strides = [1, 1]} : vector<2x512xf32> to vector<2x128xf32>
    %13 = arith.subf %11, %12 : vector<2x128xf32>
    %14 = vector.extract_strided_slice %10 {offsets = [0, 128], sizes = [2, 128], strides = [1, 1]} : vector<2x256xf32> to vector<2x128xf32>
    %15 = vector.extract_strided_slice %7 {offsets = [0, 384], sizes = [2, 128], strides = [1, 1]} : vector<2x512xf32> to vector<2x128xf32>
    %16 = arith.subf %14, %15 : vector<2x128xf32>
    %17 = vector.extract_strided_slice %7 {offsets = [0, 0], sizes = [2, 128], strides = [1, 1]} : vector<2x512xf32> to vector<2x128xf32>
    %18 = vector.extract_strided_slice %7 {offsets = [0, 128], sizes = [2, 128], strides = [1, 1]} : vector<2x512xf32> to vector<2x128xf32>
    %19 = vector.broadcast %0 : f32 to vector<2x128xf32>
    %20 = arith.mulf %19, %13 : vector<2x128xf32>
    %21 = vector.broadcast %1 : f32 to vector<2x128xf32>
    %22 = arith.mulf %21, %16 : vector<2x128xf32>
    %23 = arith.subf %20, %22 : vector<2x128xf32>
    %24 = arith.subf %17, %23 : vector<2x128xf32>
    %25 = vector.broadcast %0 : f32 to vector<2x128xf32>
    %26 = arith.mulf %25, %16 : vector<2x128xf32>
    %27 = vector.broadcast %1 : f32 to vector<2x128xf32>
    %28 = arith.mulf %27, %13 : vector<2x128xf32>
    %29 = arith.addf %26, %28 : vector<2x128xf32>
    %30 = arith.subf %18, %29 : vector<2x128xf32>
    %31 = vector.extract_strided_slice %24 {offsets = [0, 0], sizes = [1, 128], strides = [1, 1]} : vector<2x128xf32> to vector<1x128xf32>
    %32 = vector.extract_strided_slice %24 {offsets = [1, 0], sizes = [1, 128], strides = [1, 1]} : vector<2x128xf32> to vector<1x128xf32>
    %33 = tpu.concatenate %31, %32 in 1 : vector<1x128xf32>, vector<1x128xf32> -> vector<1x256xf32>
    %34 = vector.extract_strided_slice %30 {offsets = [0, 0], sizes = [1, 128], strides = [1, 1]} : vector<2x128xf32> to vector<1x128xf32>
    %35 = vector.extract_strided_slice %30 {offsets = [1, 0], sizes = [1, 128], strides = [1, 1]} : vector<2x128xf32> to vector<1x128xf32>
    %36 = tpu.concatenate %34, %35 in 1 : vector<1x128xf32>, vector<1x128xf32> -> vector<1x256xf32>
    %c0_5 = arith.constant 0 : index
    %c0_6 = arith.constant 0 : index
    %37 = vector.load %arg3[%c0_5, %c0_6] : memref<2x512xf32, #tpu.memory_space<vmem>>, vector<2x512xf32>
    %38 = vector.extract_strided_slice %37 {offsets = [0, 0], sizes = [1, 512], strides = [1, 1]} : vector<2x512xf32> to vector<1x512xf32>
    %39 = vector.extract_strided_slice %37 {offsets = [1, 0], sizes = [1, 512], strides = [1, 1]} : vector<2x512xf32> to vector<1x512xf32>
    %40 = vector.extract_strided_slice %38 {offsets = [0, 0], sizes = [1, 256], strides = [1, 1]} : vector<1x512xf32> to vector<1x256xf32>
    %41 = vector.extract_strided_slice %39 {offsets = [0, 0], sizes = [1, 256], strides = [1, 1]} : vector<1x512xf32> to vector<1x256xf32>
    %42 = tpu.iota {dimensions = array<i32: 0>} : vector<64x1xi32>
    %c32_i32 = arith.constant 32 : i32
    %43 = vector.broadcast %c32_i32 : i32 to vector<64x1xi32>
    %44 = arith.cmpi slt, %42, %43 : vector<64x1xi32>
    %45 = vector.broadcast %2 : f32 to vector<64x1xf32>
    %46 = vector.broadcast %3 : f32 to vector<64x1xf32>
    %47 = arith.select %44, %45, %46 : vector<64x1xi1>, vector<64x1xf32>
    %48 = tpu.concatenate %33, %36 in 0 : vector<1x256xf32>, vector<1x256xf32> -> vector<2x256xf32>
    %c1_i32 = arith.constant 1 : i32
    %49 = tpu.dynamic_rotate %48 by %c1_i32 dim 1 : vector<2x256xf32>, i32 -> vector<2x256xf32>
    %50 = vector.broadcast %40 : vector<1x256xf32> to vector<2x256xf32>
    %51 = arith.mulf %50, %49 : vector<2x256xf32>
    %c255_i32 = arith.constant 255 : i32
    %52 = tpu.dynamic_rotate %48 by %c255_i32 dim 1 : vector<2x256xf32>, i32 -> vector<2x256xf32>
    %53 = vector.broadcast %41 : vector<1x256xf32> to vector<2x256xf32>
    %54 = arith.mulf %53, %52 : vector<2x256xf32>
    %55 = tpu.concatenate %51, %48, %54 in 0 : vector<2x256xf32>, vector<2x256xf32>, vector<2x256xf32> -> vector<6x256xf32>
    %cst_7 = arith.constant 0.000000e+00 : f32
    %56 = vector.broadcast %cst_7 : f32 to vector<2x256xf32>
    %57 = tpu.concatenate %55, %56 in 0 : vector<6x256xf32>, vector<2x256xf32> -> vector<8x256xf32>
    %c0_8 = arith.constant 0 : index
    %c0_9 = arith.constant 0 : index
    %58 = vector.load %arg5[%c0_8, %c0_9] : memref<64x8xf32, #tpu.memory_space<vmem>>, vector<64x8xf32>
    %cst_10 = arith.constant dense<0.000000e+00> : vector<64x256xf32>
    %59 = tpu.matmul %58, %57, %cst_10 {dimension_numbers = #tpu.dot_dimension_numbers<[1], [0], [0], [1], [0, 0, 1, 1], [], []>} : vector<64x8xf32>, vector<8x256xf32>, vector<64x256xf32> -> vector<64x256xf32>
    %c0_11 = arith.constant 0 : index
    %c0_12 = arith.constant 0 : index
    %60 = vector.load %arg6[%c0_11, %c0_12] : memref<64x1xf32, #tpu.memory_space<vmem>>, vector<64x1xf32>
    %61 = vector.broadcast %60 : vector<64x1xf32> to vector<64x256xf32>
    %62 = arith.addf %59, %61 : vector<64x256xf32>
    %cst_13 = arith.constant 0.000000e+00 : f32
    %63 = vector.broadcast %cst_13 : f32 to vector<64x256xf32>
    %64 = arith.maximumf %62, %63 : vector<64x256xf32>
    %c0_14 = arith.constant 0 : index
    %c0_15 = arith.constant 0 : index
    %c0_16 = arith.constant 0 : index
    %65 = vector.load %arg7[%c0_14, %c0_15, %c0_16] : memref<4x64x192xf32, #tpu.memory_space<vmem>>, vector<1x64x192xf32>
    %66 = vector.shape_cast %65 : vector<1x64x192xf32> to vector<64x192xf32>
    %c1_i32_17 = arith.constant 1 : i32
    %67 = tpu.dynamic_rotate %64 by %c1_i32_17 dim 1 : vector<64x256xf32>, i32 -> vector<64x256xf32>
    %68 = vector.broadcast %40 : vector<1x256xf32> to vector<64x256xf32>
    %69 = arith.mulf %68, %67 : vector<64x256xf32>
    %c255_i32_18 = arith.constant 255 : i32
    %70 = tpu.dynamic_rotate %64 by %c255_i32_18 dim 1 : vector<64x256xf32>, i32 -> vector<64x256xf32>
    %71 = vector.broadcast %41 : vector<1x256xf32> to vector<64x256xf32>
    %72 = arith.mulf %71, %70 : vector<64x256xf32>
    %73 = tpu.concatenate %69, %64, %72 in 0 : vector<64x256xf32>, vector<64x256xf32>, vector<64x256xf32> -> vector<192x256xf32>
    %cst_19 = arith.constant dense<0.000000e+00> : vector<64x256xf32>
    %74 = tpu.matmul %66, %73, %cst_19 {dimension_numbers = #tpu.dot_dimension_numbers<[1], [0], [0], [1], [0, 0, 1, 1], [], []>} : vector<64x192xf32>, vector<192x256xf32>, vector<64x256xf32> -> vector<64x256xf32>
    %c0_20 = arith.constant 0 : index
    %c0_21 = arith.constant 0 : index
    %c0_22 = arith.constant 0 : index
    %75 = vector.load %arg8[%c0_20, %c0_21, %c0_22] : memref<4x64x1xf32, #tpu.memory_space<vmem>>, vector<1x64x1xf32>
    %76 = vector.shape_cast %75 : vector<1x64x1xf32> to vector<64x1xf32>
    %77 = vector.broadcast %76 : vector<64x1xf32> to vector<64x256xf32>
    %78 = arith.addf %74, %77 : vector<64x256xf32>
    %cst_23 = arith.constant 0.000000e+00 : f32
    %79 = vector.broadcast %cst_23 : f32 to vector<64x256xf32>
    %80 = arith.maximumf %78, %79 : vector<64x256xf32>
    %c1_24 = arith.constant 1 : index
    %c0_25 = arith.constant 0 : index
    %c0_26 = arith.constant 0 : index
    %81 = vector.load %arg7[%c1_24, %c0_25, %c0_26] : memref<4x64x192xf32, #tpu.memory_space<vmem>>, vector<1x64x192xf32>
    %82 = vector.shape_cast %81 : vector<1x64x192xf32> to vector<64x192xf32>
    %c1_i32_27 = arith.constant 1 : i32
    %83 = tpu.dynamic_rotate %80 by %c1_i32_27 dim 1 : vector<64x256xf32>, i32 -> vector<64x256xf32>
    %84 = vector.broadcast %40 : vector<1x256xf32> to vector<64x256xf32>
    %85 = arith.mulf %84, %83 : vector<64x256xf32>
    %c255_i32_28 = arith.constant 255 : i32
    %86 = tpu.dynamic_rotate %80 by %c255_i32_28 dim 1 : vector<64x256xf32>, i32 -> vector<64x256xf32>
    %87 = vector.broadcast %41 : vector<1x256xf32> to vector<64x256xf32>
    %88 = arith.mulf %87, %86 : vector<64x256xf32>
    %89 = tpu.concatenate %85, %80, %88 in 0 : vector<64x256xf32>, vector<64x256xf32>, vector<64x256xf32> -> vector<192x256xf32>
    %cst_29 = arith.constant dense<0.000000e+00> : vector<64x256xf32>
    %90 = tpu.matmul %82, %89, %cst_29 {dimension_numbers = #tpu.dot_dimension_numbers<[1], [0], [0], [1], [0, 0, 1, 1], [], []>} : vector<64x192xf32>, vector<192x256xf32>, vector<64x256xf32> -> vector<64x256xf32>
    %c1_30 = arith.constant 1 : index
    %c0_31 = arith.constant 0 : index
    %c0_32 = arith.constant 0 : index
    %91 = vector.load %arg8[%c1_30, %c0_31, %c0_32] : memref<4x64x1xf32, #tpu.memory_space<vmem>>, vector<1x64x1xf32>
    %92 = vector.shape_cast %91 : vector<1x64x1xf32> to vector<64x1xf32>
    %93 = vector.broadcast %92 : vector<64x1xf32> to vector<64x256xf32>
    %94 = arith.addf %90, %93 : vector<64x256xf32>
    %cst_33 = arith.constant 0.000000e+00 : f32
    %95 = vector.broadcast %cst_33 : f32 to vector<64x1xf32>
    %96 = arith.subf %95, %47 : vector<64x1xf32>
    %97 = vector.broadcast %96 : vector<64x1xf32> to vector<64x256xf32>
    %98 = arith.maximumf %94, %97 : vector<64x256xf32>
    %99 = vector.broadcast %47 : vector<64x1xf32> to vector<64x256xf32>
    %100 = arith.minimumf %98, %99 : vector<64x256xf32>
    %101 = arith.subf %94, %100 : vector<64x256xf32>
    %102 = tpu.concatenate %101, %94 in 1 : vector<64x256xf32>, vector<64x256xf32> -> vector<64x512xf32>
    %c2_34 = arith.constant 2 : index
    %c0_35 = arith.constant 0 : index
    %c0_36 = arith.constant 0 : index
    %103 = vector.load %arg7[%c2_34, %c0_35, %c0_36] : memref<4x64x192xf32, #tpu.memory_space<vmem>>, vector<1x64x192xf32>
    %104 = vector.shape_cast %103 : vector<1x64x192xf32> to vector<64x192xf32>
    %c1_i32_37 = arith.constant 1 : i32
    %105 = tpu.dynamic_rotate %102 by %c1_i32_37 dim 1 : vector<64x512xf32>, i32 -> vector<64x512xf32>
    %106 = vector.broadcast %38 : vector<1x512xf32> to vector<64x512xf32>
    %107 = arith.mulf %106, %105 : vector<64x512xf32>
    %c511_i32 = arith.constant 511 : i32
    %108 = tpu.dynamic_rotate %102 by %c511_i32 dim 1 : vector<64x512xf32>, i32 -> vector<64x512xf32>
    %109 = vector.broadcast %39 : vector<1x512xf32> to vector<64x512xf32>
    %110 = arith.mulf %109, %108 : vector<64x512xf32>
    %111 = tpu.concatenate %107, %102, %110 in 0 : vector<64x512xf32>, vector<64x512xf32>, vector<64x512xf32> -> vector<192x512xf32>
    %cst_38 = arith.constant dense<0.000000e+00> : vector<64x512xf32>
    %112 = tpu.matmul %104, %111, %cst_38 {dimension_numbers = #tpu.dot_dimension_numbers<[1], [0], [0], [1], [0, 0, 1, 1], [], []>} : vector<64x192xf32>, vector<192x512xf32>, vector<64x512xf32> -> vector<64x512xf32>
    %c2_39 = arith.constant 2 : index
    %c0_40 = arith.constant 0 : index
    %c0_41 = arith.constant 0 : index
    %113 = vector.load %arg8[%c2_39, %c0_40, %c0_41] : memref<4x64x1xf32, #tpu.memory_space<vmem>>, vector<1x64x1xf32>
    %114 = vector.shape_cast %113 : vector<1x64x1xf32> to vector<64x1xf32>
    %115 = vector.broadcast %114 : vector<64x1xf32> to vector<64x512xf32>
    %116 = arith.addf %112, %115 : vector<64x512xf32>
    %cst_42 = arith.constant 0.000000e+00 : f32
    %117 = vector.broadcast %cst_42 : f32 to vector<64x512xf32>
    %118 = arith.maximumf %116, %117 : vector<64x512xf32>
    %c3_43 = arith.constant 3 : index
    %c0_44 = arith.constant 0 : index
    %c0_45 = arith.constant 0 : index
    %119 = vector.load %arg7[%c3_43, %c0_44, %c0_45] : memref<4x64x192xf32, #tpu.memory_space<vmem>>, vector<1x64x192xf32>
    %120 = vector.shape_cast %119 : vector<1x64x192xf32> to vector<64x192xf32>
    %c1_i32_46 = arith.constant 1 : i32
    %121 = tpu.dynamic_rotate %118 by %c1_i32_46 dim 1 : vector<64x512xf32>, i32 -> vector<64x512xf32>
    %122 = vector.broadcast %38 : vector<1x512xf32> to vector<64x512xf32>
    %123 = arith.mulf %122, %121 : vector<64x512xf32>
    %c511_i32_47 = arith.constant 511 : i32
    %124 = tpu.dynamic_rotate %118 by %c511_i32_47 dim 1 : vector<64x512xf32>, i32 -> vector<64x512xf32>
    %125 = vector.broadcast %39 : vector<1x512xf32> to vector<64x512xf32>
    %126 = arith.mulf %125, %124 : vector<64x512xf32>
    %127 = tpu.concatenate %123, %118, %126 in 0 : vector<64x512xf32>, vector<64x512xf32>, vector<64x512xf32> -> vector<192x512xf32>
    %cst_48 = arith.constant dense<0.000000e+00> : vector<64x512xf32>
    %128 = tpu.matmul %120, %127, %cst_48 {dimension_numbers = #tpu.dot_dimension_numbers<[1], [0], [0], [1], [0, 0, 1, 1], [], []>} : vector<64x192xf32>, vector<192x512xf32>, vector<64x512xf32> -> vector<64x512xf32>
    %c3_49 = arith.constant 3 : index
    %c0_50 = arith.constant 0 : index
    %c0_51 = arith.constant 0 : index
    %129 = vector.load %arg8[%c3_49, %c0_50, %c0_51] : memref<4x64x1xf32, #tpu.memory_space<vmem>>, vector<1x64x1xf32>
    %130 = vector.shape_cast %129 : vector<1x64x1xf32> to vector<64x1xf32>
    %131 = vector.broadcast %130 : vector<64x1xf32> to vector<64x512xf32>
    %132 = arith.addf %128, %131 : vector<64x512xf32>
    %133 = vector.extract_strided_slice %132 {offsets = [0, 0], sizes = [64, 256], strides = [1, 1]} : vector<64x512xf32> to vector<64x256xf32>
    %134 = vector.extract_strided_slice %132 {offsets = [0, 256], sizes = [64, 256], strides = [1, 1]} : vector<64x512xf32> to vector<64x256xf32>
    %c0_52 = arith.constant 0 : index
    %c0_53 = arith.constant 0 : index
    %135 = vector.load %arg9[%c0_52, %c0_53] : memref<2x64xf32, #tpu.memory_space<vmem>>, vector<2x64xf32>
    %cst_54 = arith.constant dense<0.000000e+00> : vector<2x256xf32>
    %136 = tpu.matmul %135, %133, %cst_54 {dimension_numbers = #tpu.dot_dimension_numbers<[1], [0], [0], [1], [0, 0, 1, 1], [], []>} : vector<2x64xf32>, vector<64x256xf32>, vector<2x256xf32> -> vector<2x256xf32>
    %137 = vector.extract_strided_slice %136 {offsets = [0, 0], sizes = [1, 256], strides = [1, 1]} : vector<2x256xf32> to vector<1x256xf32>
    %138 = arith.addf %33, %137 : vector<1x256xf32>
    %139 = vector.broadcast %4 : f32 to vector<1x256xf32>
    %140 = arith.addf %138, %139 : vector<1x256xf32>
    %141 = vector.extract_strided_slice %136 {offsets = [1, 0], sizes = [1, 256], strides = [1, 1]} : vector<2x256xf32> to vector<1x256xf32>
    %142 = arith.addf %36, %141 : vector<1x256xf32>
    %143 = vector.broadcast %5 : f32 to vector<1x256xf32>
    %144 = arith.addf %142, %143 : vector<1x256xf32>
    %145 = tpu.concatenate %140, %144 in 0 : vector<1x256xf32>, vector<1x256xf32> -> vector<2x256xf32>
    %c0_55 = arith.constant 0 : index
    %c0_56 = arith.constant 0 : index
    %c0_57 = arith.constant 0 : index
    %146 = vector.load %arg10[%c0_55, %c0_56, %c0_57] : memref<1x2x256xf32, #tpu.memory_space<vmem>>, vector<1x2x256xf32>
    %147 = vector.shape_cast %146 : vector<1x2x256xf32> to vector<2x256xf32>
    %148 = vector.shape_cast %145 : vector<2x256xf32> to vector<1x2x256xf32>
    tpu.vector_store %arg10[%c0_55, %c0_56, %c0_57], %148 {strides = array<i32>} : memref<1x2x256xf32, #tpu.memory_space<vmem>>, vector<1x2x256xf32>,
    %149 = arith.subf %134, %64 : vector<64x256xf32>
    %c0_58 = arith.constant 0 : index
    %c0_59 = arith.constant 0 : index
    %c0_60 = arith.constant 0 : index
    %150 = vector.load %arg11[%c0_58, %c0_59, %c0_60] : memref<1x64x256xf32, #tpu.memory_space<vmem>>, vector<1x64x256xf32>
    %151 = vector.shape_cast %150 : vector<1x64x256xf32> to vector<64x256xf32>
    %152 = vector.shape_cast %149 : vector<64x256xf32> to vector<1x64x256xf32>
    tpu.vector_store %arg11[%c0_58, %c0_59, %c0_60], %152 {strides = array<i32>} : memref<1x64x256xf32, #tpu.memory_space<vmem>>, vector<1x64x256xf32>,
    return
  }
  func.func @transform_0(%arg0: i32) -> i32 {
    %c0_i32 = arith.constant 0 : i32
    %c0_i32_0 = arith.constant 0 : i32
    return %c0_i32 : i32
  }
  func.func @transform_1(%arg0: i32) -> (i32, i32, i32) {
    %c0_i32 = arith.constant 0 : i32
    %c0_i32_0 = arith.constant 0 : i32
    %c0_i32_1 = arith.constant 0 : i32
    return %arg0, %c0_i32, %c0_i32_0 : i32, i32, i32
  }
  func.func @transform_2(%arg0: i32) -> (i32, i32) {
    %c0_i32 = arith.constant 0 : i32
    %c0_i32_0 = arith.constant 0 : i32
    %c0_i32_1 = arith.constant 0 : i32
    return %c0_i32, %c0_i32_0 : i32, i32
  }
  func.func @transform_3(%arg0: i32) -> (i32, i32) {
    %c0_i32 = arith.constant 0 : i32
    %c0_i32_0 = arith.constant 0 : i32
    %c0_i32_1 = arith.constant 0 : i32
    return %c0_i32, %c0_i32_0 : i32, i32
  }
  func.func @transform_4(%arg0: i32) -> (i32, i32) {
    %c0_i32 = arith.constant 0 : i32
    %c0_i32_0 = arith.constant 0 : i32
    %c0_i32_1 = arith.constant 0 : i32
    return %c0_i32, %c0_i32_0 : i32, i32
  }
  func.func @transform_5(%arg0: i32) -> (i32, i32) {
    %c0_i32 = arith.constant 0 : i32
    %c0_i32_0 = arith.constant 0 : i32
    %c0_i32_1 = arith.constant 0 : i32
    return %c0_i32, %c0_i32_0 : i32, i32
  }
  func.func @transform_6(%arg0: i32) -> (i32, i32, i32) {
    %c0_i32 = arith.constant 0 : i32
    %c0_i32_0 = arith.constant 0 : i32
    %c0_i32_1 = arith.constant 0 : i32
    %c0_i32_2 = arith.constant 0 : i32
    return %c0_i32, %c0_i32_0, %c0_i32_1 : i32, i32, i32
  }
  func.func @transform_7(%arg0: i32) -> (i32, i32, i32) {
    %c0_i32 = arith.constant 0 : i32
    %c0_i32_0 = arith.constant 0 : i32
    %c0_i32_1 = arith.constant 0 : i32
    %c0_i32_2 = arith.constant 0 : i32
    return %c0_i32, %c0_i32_0, %c0_i32_1 : i32, i32, i32
  }
  func.func @transform_8(%arg0: i32) -> (i32, i32) {
    %c0_i32 = arith.constant 0 : i32
    %c0_i32_0 = arith.constant 0 : i32
    %c0_i32_1 = arith.constant 0 : i32
    return %c0_i32, %c0_i32_0 : i32, i32
  }
  func.func @transform_9(%arg0: i32) -> (i32, i32, i32) {
    %c0_i32 = arith.constant 0 : i32
    %c0_i32_0 = arith.constant 0 : i32
    %c0_i32_1 = arith.constant 0 : i32
    return %arg0, %c0_i32, %c0_i32_0 : i32, i32, i32
  }
  func.func @transform_10(%arg0: i32) -> (i32, i32, i32) {
    %c0_i32 = arith.constant 0 : i32
    %c0_i32_0 = arith.constant 0 : i32
    %c0_i32_1 = arith.constant 0 : i32
    return %arg0, %c0_i32, %c0_i32_0 : i32, i32, i32
  }
}

</mosaic_0001>

<llo_original>
// kernel: tpu_custom_call.1
$region0: #{tpu_custom_call.1}
  #allocation0 [shape = 'u32[]', space=smem, size = 0x4, offset = 0x4, fixed_abs, tag = 'smem constant byte address 0x4 - core index']
  #allocation1 [shape = 'u32[72,128]{1,0:T(1,128)}', space=vmem, size = 0x9000, scoped, tag = 'internal scratch']
  %s0 = inlined_call_operand.vmem [shape: f32[6], index: 0, kind: input, shape index: {}]
  %s1 = inlined_call_operand.vmem [shape: f32[4,1,512], index: 1, kind: input, shape index: {}]
  %s2 = inlined_call_operand.vmem [shape: f32[2,512], index: 2, kind: input, shape index: {}]
  %s3 = inlined_call_operand.hbm [shape: f32[256,256], index: 3, kind: input, shape index: {}]
  %s4 = inlined_call_operand.vmem [shape: f32[64,8], index: 4, kind: input, shape index: {}]
  %s5 = inlined_call_operand.vmem [shape: f32[64,1], index: 5, kind: input, shape index: {}]
  %s6 = inlined_call_operand.hbm [shape: f32[4,64,192], index: 6, kind: input, shape index: {}]
  %s7 = inlined_call_operand.vmem [shape: f32[4,64,1], index: 7, kind: input, shape index: {}]
  %s8 = inlined_call_operand.vmem [shape: f32[2,64], index: 8, kind: input, shape index: {}]
  %s9 = inlined_call_operand.hbm [shape: f32[2,2,256], index: 9, kind: output, shape index: {0}]
  %s10 = inlined_call_operand.hbm [shape: f32[2,64,256], index: 10, kind: output, shape index: {1}]
  %11 = xla_tuple %s9, %s10
  %s12 = sld [smem:[#allocation0]]
  $region89: #{tpu_custom_call.1} parent=0
    _
  %s14 = ssub.s32 1, %s12
  %s15 = scalar_select 0, %s14, %s12
  $region1: #{tpu_custom_call.1} parent=0
    #allocation2 [shape = 'u8[512]{0}', space=smem, size = 0x200, scoped, tag = 'input window, operand 0, single buffered']
    #allocation3 [shape = 's32[2]{0}', space=sflag, size = 0x8, scoped, tag = 'scoped memory for tpu_custom_call.1']
    #allocation4 [shape = 's32[2]{0}', space=sflag, size = 0x8, scoped, tag = 'scoped memory for tpu_custom_call.1']
    #allocation5 [shape = 's32[2]{0}', space=sflag, size = 0x8, scoped, tag = 'scoped memory for tpu_custom_call.1']
    #allocation6 [shape = 'u8[262144]{0}', space=vmem, size = 0x40000, scoped, tag = 'input window, operand 3, single buffered']
    #allocation7 [shape = 'u8[262144]{0}', space=vmem, size = 0x40000, scoped, tag = 'input window, operand 6, single buffered']
    #allocation8 [shape = 's32[1]{0}', space=sflag, size = 0x4, scoped, tag = 'scoped memory for tpu_custom_call.1']
    #allocation9 [shape = 'u8[4096]{0}', space=vmem, size = 0x1000, scoped, tag = 'output window, operand 0']
    #allocation10 [shape = 'u8[131072]{0}', space=vmem, size = 0x20000, scoped, tag = 'output window, operand 1']
    #allocation11 [shape = 's32[2]{0}', space=sflag, size = 0x8, scoped, tag = 'scoped memory for tpu_custom_call.1']
    %16 = vsyncpa [#allocation5], 0
    %17 = vsyncpa [#allocation3], 0
    %18 = vsyncpa [#allocation8], 0
    %19 = vsyncpa [#allocation4], 0
    %s20 = scalar_lea.sflag [#allocation4], 1
    %21 = vsyncpa %s20, 0
    %22 = vsyncpa [#allocation11], 0
    %s23 = scalar_lea.sflag [#allocation11], 1
    %24 = vsyncpa %s23, 0
    loop: start=0, step=1, limit=4
    $region2: #{tpu_custom_call.1} parent=1 // loop_pre_header
      _
    $region3: #{tpu_custom_call.1} parent=1 // loop_header
      %s26 = sphi 0, %s30
      %p27 = scmp.ge.s32.totalorder %s26, 4
      %s34 = sphi 0, %s34
      %s36 = sphi 0, %s34
      %s37 = sphi 0, %s36
      %s51 = sphi 0, %s37
      %s57 = sphi 0, %s59
      %s60 = sphi 0, %s57
      %s61 = sphi 0, %s60
      %s77 = sphi 0, %s61
      %s81 = sphi 0, %s81
      %s83 = sphi 0, %s81
      %s84 = sphi 0, %s83
      %s98 = sphi 0, %s84
      %s102 = sphi 0, %s102
      %s104 = sphi 0, %s102
      %s105 = sphi 0, %s104
      %s119 = sphi 0, %s105
      %s123 = sphi 0, %s123
      %s125 = sphi 0, %s123
      %s126 = sphi 0, %s125
      %s140 = sphi 0, %s126
      %s144 = sphi 0, %s144
      %s146 = sphi 0, %s144
      %s147 = sphi 0, %s146
      %s161 = sphi 0, %s147
      %s165 = sphi 0, %s165
      %s167 = sphi 0, %s165
      %s168 = sphi 0, %s167
      %s182 = sphi 0, %s168
      %s186 = sphi 0, %s186
      %s188 = sphi 0, %s186
      %s189 = sphi 0, %s188
      %s203 = sphi 0, %s189
      %s207 = sphi 0, %s207
      %s209 = sphi 0, %s207
      %s210 = sphi 0, %s209
      %s224 = sphi 0, %s210
      %s230 = sphi 0, %s232
      %s233 = sphi 0, %s230
      %s234 = sphi 0, %s233
      %s250 = sphi 0, %s234
      %s256 = sphi 0, %s258
      %s259 = sphi 0, %s256
      %s260 = sphi 0, %s259
      %s276 = sphi 0, %s260
    $region4: #{tpu_custom_call.1} parent=1 // loop_header_branch
      %29 = sbr.rel (%p27) target = $region8
    $region5: #{tpu_custom_call.1} parent=1 // loop_body
      %s31 = ssub.s32 %s26, 1
      %s32 = ssub.s32 %s26, 2
      %s33 = sadd.s32 %s26, 1
      %s35 = sadd.s32 %s34, 1
      %p38 = scmp.eq.s32.totalorder %s26, 1
      %p39 = scmp.ne.s32.totalorder %s34, %s36
      %p40 = scmp.eq.s32.totalorder %s26, 0
      %p41 = por %p39, %p40
      %p42 = scmp.ne.s32.totalorder %s34, %s36
      %p43 = scmp.eq.s32.totalorder %s31, 1
      %p44 = por %p42, %p43
      %p45 = scmp.ne.s32.totalorder %s36, %s37
      %p46 = scmp.eq.s32.totalorder %s31, 0
      %p47 = por %p45, %p46
      %p48 = scmp.ne.s32.totalorder %s36, %s37
      %p49 = scmp.eq.s32.totalorder %s32, 1
      %p50 = por %p48, %p49
      %p52 = scmp.ne.s32.totalorder %s37, %s51
      %p53 = scmp.eq.s32.totalorder %s32, 0
      %p54 = por %p52, %p53
      %s55 = ssub.s32 %s26, %s33
      %p56 = scmp.eq.s32.totalorder %s55, 0
      %s58 = sadd.s32 %s57, 1
      %s59 = scalar_select %p56, %s57, %s58
      %p62 = pneg %p56
      %p63 = scmp.eq.s32.totalorder %s26, 1
      %p64 = por %p62, %p63
      %p65 = scmp.ne.s32.totalorder %s57, %s60
      %p66 = scmp.eq.s32.totalorder %s26, 0
      %p67 = por %p65, %p66
      %p68 = scmp.ne.s32.totalorder %s57, %s60
      %p69 = scmp.eq.s32.totalorder %s31, 1
      %p70 = por %p68, %p69
      %p71 = scmp.ne.s32.totalorder %s60, %s61
      %p72 = scmp.eq.s32.totalorder %s31, 0
      %p73 = por %p71, %p72
      %p74 = scmp.ne.s32.totalorder %s60, %s61
      %p75 = scmp.eq.s32.totalorder %s32, 1
      %p76 = por %p74, %p75
      %p78 = scmp.ne.s32.totalorder %s61, %s77
      %p79 = scmp.eq.s32.totalorder %s32, 0
      %p80 = por %p78, %p79
      %s82 = sadd.s32 %s81, 1
      %p85 = scmp.eq.s32.totalorder %s26, 1
      %p86 = scmp.ne.s32.totalorder %s81, %s83
      %p87 = scmp.eq.s32.totalorder %s26, 0
      %p88 = por %p86, %p87
      %p89 = scmp.ne.s32.totalorder %s81, %s83
      %p90 = scmp.eq.s32.totalorder %s31, 1
      %p91 = por %p89, %p90
      %p92 = scmp.ne.s32.totalorder %s83, %s84
      %p93 = scmp.eq.s32.totalorder %s31, 0
      %p94 = por %p92, %p93
      %p95 = scmp.ne.s32.totalorder %s83, %s84
      %p96 = scmp.eq.s32.totalorder %s32, 1
      %p97 = por %p95, %p96
      %p99 = scmp.ne.s32.totalorder %s84, %s98
      %p100 = scmp.eq.s32.totalorder %s32, 0
      %p101 = por %p99, %p100
      %s103 = sadd.s32 %s102, 1
      %p106 = scmp.eq.s32.totalorder %s26, 1
      %p107 = scmp.ne.s32.totalorder %s102, %s104
      %p108 = scmp.eq.s32.totalorder %s26, 0
      %p109 = por %p107, %p108
      %p110 = scmp.ne.s32.totalorder %s102, %s104
      %p111 = scmp.eq.s32.totalorder %s31, 1
      %p112 = por %p110, %p111
      %p113 = scmp.ne.s32.totalorder %s104, %s105
      %p114 = scmp.eq.s32.totalorder %s31, 0
      %p115 = por %p113, %p114
      %p116 = scmp.ne.s32.totalorder %s104, %s105
      %p117 = scmp.eq.s32.totalorder %s32, 1
      %p118 = por %p116, %p117
      %p120 = scmp.ne.s32.totalorder %s105, %s119
      %p121 = scmp.eq.s32.totalorder %s32, 0
      %p122 = por %p120, %p121
      %s124 = sadd.s32 %s123, 1
      %p127 = scmp.eq.s32.totalorder %s26, 1
      %p128 = scmp.ne.s32.totalorder %s123, %s125
      %p129 = scmp.eq.s32.totalorder %s26, 0
      %p130 = por %p128, %p129
      %p131 = scmp.ne.s32.totalorder %s123, %s125
      %p132 = scmp.eq.s32.totalorder %s31, 1
      %p133 = por %p131, %p132
      %p134 = scmp.ne.s32.totalorder %s125, %s126
      %p135 = scmp.eq.s32.totalorder %s31, 0
      %p136 = por %p134, %p135
      %p137 = scmp.ne.s32.totalorder %s125, %s126
      %p138 = scmp.eq.s32.totalorder %s32, 1
      %p139 = por %p137, %p138
      %p141 = scmp.ne.s32.totalorder %s126, %s140
      %p142 = scmp.eq.s32.totalorder %s32, 0
      %p143 = por %p141, %p142
      %s145 = sadd.s32 %s144, 1
      %p148 = scmp.eq.s32.totalorder %s26, 1
      %p149 = scmp.ne.s32.totalorder %s144, %s146
      %p150 = scmp.eq.s32.totalorder %s26, 0
      %p151 = por %p149, %p150
      %p152 = scmp.ne.s32.totalorder %s144, %s146
      %p153 = scmp.eq.s32.totalorder %s31, 1
      %p154 = por %p152, %p153
      %p155 = scmp.ne.s32.totalorder %s146, %s147
      %p156 = scmp.eq.s32.totalorder %s31, 0
      %p157 = por %p155, %p156
      %p158 = scmp.ne.s32.totalorder %s146, %s147
      %p159 = scmp.eq.s32.totalorder %s32, 1
      %p160 = por %p158, %p159
      %p162 = scmp.ne.s32.totalorder %s147, %s161
      %p163 = scmp.eq.s32.totalorder %s32, 0
      %p164 = por %p162, %p163
      %s166 = sadd.s32 %s165, 1
      %p169 = scmp.eq.s32.totalorder %s26, 1
      %p170 = scmp.ne.s32.totalorder %s165, %s167
      %p171 = scmp.eq.s32.totalorder %s26, 0
      %p172 = por %p170, %p171
      %p173 = scmp.ne.s32.totalorder %s165, %s167
      %p174 = scmp.eq.s32.totalorder %s31, 1
      %p175 = por %p173, %p174
      %p176 = scmp.ne.s32.totalorder %s167, %s168
      %p177 = scmp.eq.s32.totalorder %s31, 0
      %p178 = por %p176, %p177
      %p179 = scmp.ne.s32.totalorder %s167, %s168
      %p180 = scmp.eq.s32.totalorder %s32, 1
      %p181 = por %p179, %p180
      %p183 = scmp.ne.s32.totalorder %s168, %s182
      %p184 = scmp.eq.s32.totalorder %s32, 0
      %p185 = por %p183, %p184
      %s187 = sadd.s32 %s186, 1
      %p190 = scmp.eq.s32.totalorder %s26, 1
      %p191 = scmp.ne.s32.totalorder %s186, %s188
      %p192 = scmp.eq.s32.totalorder %s26, 0
      %p193 = por %p191, %p192
      %p194 = scmp.ne.s32.totalorder %s186, %s188
      %p195 = scmp.eq.s32.totalorder %s31, 1
      %p196 = por %p194, %p195
      %p197 = scmp.ne.s32.totalorder %s188, %s189
      %p198 = scmp.eq.s32.totalorder %s31, 0
      %p199 = por %p197, %p198
      %p200 = scmp.ne.s32.totalorder %s188, %s189
      %p201 = scmp.eq.s32.totalorder %s32, 1
      %p202 = por %p200, %p201
      %p204 = scmp.ne.s32.totalorder %s189, %s203
      %p205 = scmp.eq.s32.totalorder %s32, 0
      %p206 = por %p204, %p205
      %s208 = sadd.s32 %s207, 1
      %p211 = scmp.eq.s32.totalorder %s26, 1
      %p212 = scmp.ne.s32.totalorder %s207, %s209
      %p213 = scmp.eq.s32.totalorder %s26, 0
      %p214 = por %p212, %p213
      %p215 = scmp.ne.s32.totalorder %s207, %s209
      %p216 = scmp.eq.s32.totalorder %s31, 1
      %p217 = por %p215, %p216
      %p218 = scmp.ne.s32.totalorder %s209, %s210
      %p219 = scmp.eq.s32.totalorder %s31, 0
      %p220 = por %p218, %p219
      %p221 = scmp.ne.s32.totalorder %s209, %s210
      %p222 = scmp.eq.s32.totalorder %s32, 1
      %p223 = por %p221, %p222
      %p225 = scmp.ne.s32.totalorder %s210, %s224
      %p226 = scmp.eq.s32.totalorder %s32, 0
      %p227 = por %p225, %p226
      %s228 = ssub.s32 %s26, %s33
      %p229 = scmp.eq.s32.totalorder %s228, 0
      %s231 = sadd.s32 %s230, 1
      %s232 = scalar_select %p229, %s230, %s231
      %p235 = pneg %p229
      %p236 = scmp.eq.s32.totalorder %s26, 1
      %p237 = por %p235, %p236
      %p238 = scmp.ne.s32.totalorder %s230, %s233
      %p239 = scmp.eq.s32.totalorder %s26, 0
      %p240 = por %p238, %p239
      %p241 = scmp.ne.s32.totalorder %s230, %s233
      %p242 = scmp.eq.s32.totalorder %s31, 1
      %p243 = por %p241, %p242
      %p244 = scmp.ne.s32.totalorder %s233, %s234
      %p245 = scmp.eq.s32.totalorder %s31, 0
      %p246 = por %p244, %p245
      %p247 = scmp.ne.s32.totalorder %s233, %s234
      %p248 = scmp.eq.s32.totalorder %s32, 1
      %p249 = por %p247, %p248
      %p251 = scmp.ne.s32.totalorder %s234, %s250
      %p252 = scmp.eq.s32.totalorder %s32, 0
      %p253 = por %p251, %p252
      %s254 = ssub.s32 %s26, %s33
      %p255 = scmp.eq.s32.totalorder %s254, 0
      %s257 = sadd.s32 %s256, 1
      %s258 = scalar_select %p255, %s256, %s257
      %p261 = pneg %p255
      %p262 = scmp.eq.s32.totalorder %s26, 1
      %p263 = por %p261, %p262
      %p264 = scmp.ne.s32.totalorder %s256, %s259
      %p265 = scmp.eq.s32.totalorder %s26, 0
      %p266 = por %p264, %p265
      %p267 = scmp.ne.s32.totalorder %s256, %s259
      %p268 = scmp.eq.s32.totalorder %s31, 1
      %p269 = por %p267, %p268
      %p270 = scmp.ne.s32.totalorder %s259, %s260
      %p271 = scmp.eq.s32.totalorder %s31, 0
      %p272 = por %p270, %p271
      %p273 = scmp.ne.s32.totalorder %s259, %s260
      %p274 = scmp.eq.s32.totalorder %s32, 1
      %p275 = por %p273, %p274
      %p277 = scmp.ne.s32.totalorder %s260, %s276
      %p278 = scmp.eq.s32.totalorder %s32, 0
      %p279 = por %p277, %p278
      %p280 = scmp.le.s32.totalorder 1, %s26
      %p281 = scmp.lt.s32.totalorder %s26, 3
      %p282 = pnand %p280, %p281
      %p283 = pneg %p282
      // Predicated region
      $region9: #{tpu_custom_call.1} parent=5 // pred_check
        _
      $region10: #{tpu_custom_call.1} parent=5 // pred_check_branch
        %285 = sbr.rel (%p282) target = $region12
      $region11: #{tpu_custom_call.1} parent=5 // pred_region
        %s286 = ssub.s32 %s26, 1
        // Predicated region
        $region13: #{tpu_custom_call.1} parent=11 // pred_check
          %p287 = pneg %p47
        $region14: #{tpu_custom_call.1} parent=11 // pred_check_branch
          %289 = sbr.rel (%p287) target = $region16
        $region15: #{tpu_custom_call.1} parent=11 // pred_region
          %291 = vsyncadd [#allocation5], 0
          %s293 = sshll.u32 %s0, 4
          %s294 = int_to_ptr.vmem [resolvable:$true] %s293
          %296 = dma.vmem_to_smem %s294, 16, [#allocation2], [#allocation5]
        $region16: #{tpu_custom_call.1} parent=11 // pred_fallthru
          _
        // Predicated region
        $region17: #{tpu_custom_call.1} parent=11 // pred_check
          %p297 = pneg %p94
        $region18: #{tpu_custom_call.1} parent=11 // pred_check_branch
          %299 = sbr.rel (%p297) target = $region20
        $region19: #{tpu_custom_call.1} parent=11 // pred_region
          _
        $region20: #{tpu_custom_call.1} parent=11 // pred_fallthru
          _
        // Predicated region
        $region21: #{tpu_custom_call.1} parent=11 // pred_check
          %p300 = pneg %p115
        $region22: #{tpu_custom_call.1} parent=11 // pred_check_branch
          %302 = sbr.rel (%p300) target = $region24
        $region23: #{tpu_custom_call.1} parent=11 // pred_region
          %304 = vsyncadd [#allocation3], 0
          %s305 = sshll.u32 %s3, 4
          %s306 = int_to_ptr.hbm [resolvable:$true] %s305
          %s307 = sshll.u32 [#allocation6], 4
          %s308 = int_to_ptr.vmem [resolvable:$true] %s307
          %313 = dma.hbm_to_vmem [thread:$0]  %s306, 8192, %s308, [#allocation3], 256, 256, 16
        $region24: #{tpu_custom_call.1} parent=11 // pred_fallthru
          _
        // Predicated region
        $region25: #{tpu_custom_call.1} parent=11 // pred_check
          %p314 = pneg %p136
        $region26: #{tpu_custom_call.1} parent=11 // pred_check_branch
          %316 = sbr.rel (%p314) target = $region28
        $region27: #{tpu_custom_call.1} parent=11 // pred_region
          _
        $region28: #{tpu_custom_call.1} parent=11 // pred_fallthru
          _
        // Predicated region
        $region29: #{tpu_custom_call.1} parent=11 // pred_check
          %p317 = pneg %p157
        $region30: #{tpu_custom_call.1} parent=11 // pred_check_branch
          %319 = sbr.rel (%p317) target = $region32
        $region31: #{tpu_custom_call.1} parent=11 // pred_region
          _
        $region32: #{tpu_custom_call.1} parent=11 // pred_fallthru
          _
        // Predicated region
        $region33: #{tpu_custom_call.1} parent=11 // pred_check
          %p320 = pneg %p178
        $region34: #{tpu_custom_call.1} parent=11 // pred_check_branch
          %322 = sbr.rel (%p320) target = $region36
        $region35: #{tpu_custom_call.1} parent=11 // pred_region
          %324 = vsyncadd [#allocation8], 0
          %s325 = sshll.u32 %s6, 4
          %s326 = int_to_ptr.hbm [resolvable:$true] %s325
          %s327 = sshll.u32 [#allocation7], 4
          %s328 = int_to_ptr.vmem [resolvable:$true] %s327
          %333 = dma.hbm_to_vmem [thread:$0]  %s326, 8192, %s328, [#allocation8], 256, 256, 16
        $region36: #{tpu_custom_call.1} parent=11 // pred_fallthru
          _
        // Predicated region
        $region37: #{tpu_custom_call.1} parent=11 // pred_check
          %p334 = pneg %p199
        $region38: #{tpu_custom_call.1} parent=11 // pred_check_branch
          %336 = sbr.rel (%p334) target = $region40
        $region39: #{tpu_custom_call.1} parent=11 // pred_region
          _
        $region40: #{tpu_custom_call.1} parent=11 // pred_fallthru
          _
        // Predicated region
        $region41: #{tpu_custom_call.1} parent=11 // pred_check
          %p337 = pneg %p220
        $region42: #{tpu_custom_call.1} parent=11 // pred_check_branch
          %339 = sbr.rel (%p337) target = $region44
        $region43: #{tpu_custom_call.1} parent=11 // pred_region
          _
        $region44: #{tpu_custom_call.1} parent=11 // pred_fallthru
          _
      $region12: #{tpu_custom_call.1} parent=5 // pred_fallthru
        _
      %p340 = scmp.lt.s32.totalorder %s26, 2
      // Predicated region
      $region45: #{tpu_custom_call.1} parent=5 // pred_check
        %p341 = pneg %p340
      $region46: #{tpu_custom_call.1} parent=5 // pred_check_branch
        %343 = sbr.rel (%p341) target = $region48
      $region47: #{tpu_custom_call.1} parent=5 // pred_region
        // Predicated region
        $region49: #{tpu_custom_call.1} parent=47 // pred_check
          %p344 = pneg %p67
        $region50: #{tpu_custom_call.1} parent=47 // pred_check_branch
          %346 = sbr.rel (%p344) target = $region52
        $region51: #{tpu_custom_call.1} parent=47 // pred_region
          %s347 = smul.u32 2, %s26
          %p348 = scmp.lt.s32.totalorder %s347, 3
          %s349 = scalar_select %p348, %s347, 3
          %s350 = smul.addr %s349, 4
          %s351 = scalar_lea.vmem %s1, %s350
          %s352 = smul.u32 2, %s26
        $region52: #{tpu_custom_call.1} parent=47 // pred_fallthru
          _
      $region48: #{tpu_custom_call.1} parent=5 // pred_fallthru
        _
      %p353 = scmp.le.s32.totalorder 1, %s26
      %p354 = scmp.lt.s32.totalorder %s26, 3
      %p355 = pnand %p353, %p354
      %p356 = pneg %p355
      // Predicated region
      $region53: #{tpu_custom_call.1} parent=5 // pred_check
        _
      $region54: #{tpu_custom_call.1} parent=5 // pred_check_branch
        %358 = sbr.rel (%p355) target = $region56
      $region55: #{tpu_custom_call.1} parent=5 // pred_region
        %s359 = ssub.s32 %s26, 1
        // Predicated region
        $region57: #{tpu_custom_call.1} parent=55 // pred_check
          %p360 = pneg %p47
        $region58: #{tpu_custom_call.1} parent=55 // pred_check_branch
          %362 = sbr.rel (%p360) target = $region60
        $region59: #{tpu_custom_call.1} parent=55 // pred_region
          %364 = dma.done [#allocation5], 16
        $region60: #{tpu_custom_call.1} parent=55 // pred_fallthru
          _
        // Predicated region
        $region61: #{tpu_custom_call.1} parent=55 // pred_check
          %p365 = pneg %p115
        $region62: #{tpu_custom_call.1} parent=55 // pred_check_branch
          %367 = sbr.rel (%p365) target = $region64
        $region63: #{tpu_custom_call.1} parent=55 // pred_region
          %369 = dma.done [#allocation3], 8192
        $region64: #{tpu_custom_call.1} parent=55 // pred_fallthru
          _
        // Predicated region
        $region65: #{tpu_custom_call.1} parent=55 // pred_check
          %p370 = pneg %p178
        $region66: #{tpu_custom_call.1} parent=55 // pred_check_branch
          %372 = sbr.rel (%p370) target = $region68
        $region67: #{tpu_custom_call.1} parent=55 // pred_region
          %374 = dma.done [#allocation8], 8192
        $region68: #{tpu_custom_call.1} parent=55 // pred_fallthru
          _
        %375 = sfence
        %p376 = pneg %p47
        %p377 = pneg %p44
        %s378 = smul.u32 2, %s31
        %p379 = scmp.lt.s32.totalorder %s378, 3
        %s380 = scalar_select %p379, %s378, 3
        %s381 = smul.addr %s380, 4
        %s382 = scalar_lea.vmem %s1, %s381
        %p383 = pneg %p73
        %p384 = pneg %p70
        %p385 = pneg %p94
        %p386 = pneg %p91
        %p387 = pneg %p115
        %p388 = pneg %p112
        %p389 = pneg %p136
        %p390 = pneg %p133
        %p391 = pneg %p157
        %p392 = pneg %p154
        %p393 = pneg %p178
        %p394 = pneg %p175
        %p395 = pneg %p199
        %p396 = pneg %p196
        %p397 = pneg %p220
        %p398 = pneg %p217
        %p399 = pneg %p246
        %p400 = pneg %p243
        %s401 = sand.u32 %s233, 1
        %s402 = scalar_lea.sflag [#allocation4], %s401
        %s403 = sand.u32 %s233, 1
        %s404 = smul.addr %s403, 4
        %s405 = scalar_lea.vmem [#allocation9], %s404
        %p406 = pneg %p272
        %p407 = pneg %p269
        %s408 = sand.u32 %s259, 1
        %s409 = scalar_lea.sflag [#allocation11], %s408
        %s410 = sand.u32 %s259, 1
        %s411 = smul.addr %s410, 128
        %s412 = scalar_lea.vmem [#allocation10], %s411
        %s413 = smul.u32 2, %s31
        %p414 = scmp.lt.s32.totalorder %s413, 3
        %s415 = scalar_select %p414, %s413, 3
        %s416 = smul.addr %s415, 4
        %s417 = scalar_lea.vmem %s1, %s416
        %s418 = smul.u32 2, %s31
        %s419 = sld [smem:[#allocation2]]
        %s420 = sld [smem:[#allocation2 + $0x1]]
        %s421 = sld [smem:[#allocation2 + $0x2]]
        %s422 = sld [smem:[#allocation2 + $0x3]]
        %s423 = sld [smem:[#allocation2 + $0x4]]
        %s424 = sld [smem:[#allocation2 + $0x5]]
        %v425 = vld [vmem:[%s417] sm:$0xf]
        %v426 = vld [vmem:[%s417 + $0x4] sm:$0xf]
        %v427 = vld [vmem:[#allocation6] sm:$0xff]
        %v428 = vld [vmem:[#allocation6 + $0x8] sm:$0xff]
        %v429 = vld [vmem:[#allocation6 + $0x10] sm:$0xff]
        %v430 = vld [vmem:[#allocation6 + $0x18] sm:$0xff]
        %v431 = vld [vmem:[#allocation6 + $0x20] sm:$0xff]
        %v432 = vld [vmem:[#allocation6 + $0x28] sm:$0xff]
        %v433 = vld [vmem:[#allocation6 + $0x30] sm:$0xff]
        %v434 = vld [vmem:[#allocation6 + $0x38] sm:$0xff]
        %v435 = vld [vmem:[#allocation6 + $0x40] sm:$0xff]
        %v436 = vld [vmem:[#allocation6 + $0x48] sm:$0xff]
        %v437 = vld [vmem:[#allocation6 + $0x50] sm:$0xff]
        %v438 = vld [vmem:[#allocation6 + $0x58] sm:$0xff]
        %v439 = vld [vmem:[#allocation6 + $0x60] sm:$0xff]
        %v440 = vld [vmem:[#allocation6 + $0x68] sm:$0xff]
        %v441 = vld [vmem:[#allocation6 + $0x70] sm:$0xff]
        %v442 = vld [vmem:[#allocation6 + $0x78] sm:$0xff]
        %v443 = vld [vmem:[#allocation6 + $0x80] sm:$0xff]
        %v444 = vld [vmem:[#allocation6 + $0x88] sm:$0xff]
        %v445 = vld [vmem:[#allocation6 + $0x90] sm:$0xff]
        %v446 = vld [vmem:[#allocation6 + $0x98] sm:$0xff]
        %v447 = vld [vmem:[#allocation6 + $0xa0] sm:$0xff]
        %v448 = vld [vmem:[#allocation6 + $0xa8] sm:$0xff]
        %v449 = vld [vmem:[#allocation6 + $0xb0] sm:$0xff]
        %v450 = vld [vmem:[#allocation6 + $0xb8] sm:$0xff]
        %v451 = vld [vmem:[#allocation6 + $0xc0] sm:$0xff]
        %v452 = vld [vmem:[#allocation6 + $0xc8] sm:$0xff]
        %v453 = vld [vmem:[#allocation6 + $0xd0] sm:$0xff]
        %v454 = vld [vmem:[#allocation6 + $0xd8] sm:$0xff]
        %v455 = vld [vmem:[#allocation6 + $0xe0] sm:$0xff]
        %v456 = vld [vmem:[#allocation6 + $0xe8] sm:$0xff]
        %v457 = vld [vmem:[#allocation6 + $0xf0] sm:$0xff]
        %v458 = vld [vmem:[#allocation6 + $0xf8] sm:$0xff]
        %v459 = vld [vmem:[#allocation6 + $0x100] sm:$0xff]
        %v460 = vld [vmem:[#allocation6 + $0x108] sm:$0xff]
        %v461 = vld [vmem:[#allocation6 + $0x110] sm:$0xff]
        %v462 = vld [vmem:[#allocation6 + $0x118] sm:$0xff]
        %v463 = vld [vmem:[#allocation6 + $0x120] sm:$0xff]
        %v464 = vld [vmem:[#allocation6 + $0x128] sm:$0xff]
        %v465 = vld [vmem:[#allocation6 + $0x130] sm:$0xff]
        %v466 = vld [vmem:[#allocation6 + $0x138] sm:$0xff]
        %v467 = vld [vmem:[#allocation6 + $0x140] sm:$0xff]
        %v468 = vld [vmem:[#allocation6 + $0x148] sm:$0xff]
        %v469 = vld [vmem:[#allocation6 + $0x150] sm:$0xff]
        %v470 = vld [vmem:[#allocation6 + $0x158] sm:$0xff]
        %v471 = vld [vmem:[#allocation6 + $0x160] sm:$0xff]
        %v472 = vld [vmem:[#allocation6 + $0x168] sm:$0xff]
        %v473 = vld [vmem:[#allocation6 + $0x170] sm:$0xff]
        %v474 = vld [vmem:[#allocation6 + $0x178] sm:$0xff]
        %v475 = vld [vmem:[#allocation6 + $0x180] sm:$0xff]
        %v476 = vld [vmem:[#allocation6 + $0x188] sm:$0xff]
        %v477 = vld [vmem:[#allocation6 + $0x190] sm:$0xff]
        %v478 = vld [vmem:[#allocation6 + $0x198] sm:$0xff]
        %v479 = vld [vmem:[#allocation6 + $0x1a0] sm:$0xff]
        %v480 = vld [vmem:[#allocation6 + $0x1a8] sm:$0xff]
        %v481 = vld [vmem:[#allocation6 + $0x1b0] sm:$0xff]
        %v482 = vld [vmem:[#allocation6 + $0x1b8] sm:$0xff]
        %v483 = vld [vmem:[#allocation6 + $0x1c0] sm:$0xff]
        %v484 = vld [vmem:[#allocation6 + $0x1c8] sm:$0xff]
        %v485 = vld [vmem:[#allocation6 + $0x1d0] sm:$0xff]
        %v486 = vld [vmem:[#allocation6 + $0x1d8] sm:$0xff]
        %v487 = vld [vmem:[#allocation6 + $0x1e0] sm:$0xff]
        %v488 = vld [vmem:[#allocation6 + $0x1e8] sm:$0xff]
        %v489 = vld [vmem:[#allocation6 + $0x1f0] sm:$0xff]
        %v490 = vld [vmem:[#allocation6 + $0x1f8] sm:$0xff]
        %493 = vst [vmem:[#allocation1] ss:$9 sm:$0xff] %v425
        %s494 = scalar_lea.vmem [#allocation1], 1
        %495 = vst [vmem:[%s494] ss:$9 sm:$0xff] %v426
        %v496 = vld [vmem:[#allocation1] sm:$0xff]
        %v497 = vld [vmem:[#allocation1 + $0x9] sm:$0xff]
        %500 = vmatpush.msra.mxu0 %v457
        %501 = vmatpush.msra.mxu0 %v455
        %502 = vmatpush.msra.mxu0 %v453
        %503 = vmatpush.msra.mxu0 %v451
        %504 = vmatpush.msra.mxu0 %v449
        %505 = vmatpush.msra.mxu0 %v447
        %506 = vmatpush.msra.mxu0 %v445
        %507 = vmatpush.msra.mxu0 %v443
        %508 = vmatpush.msra.mxu0 %v441
        %509 = vmatpush.msra.mxu0 %v439
        %510 = vmatpush.msra.mxu0 %v437
        %511 = vmatpush.msra.mxu0 %v435
        %512 = vmatpush.msra.mxu0 %v433
        %513 = vmatpush.msra.mxu0 %v431
        %514 = vmatpush.msra.mxu0 %v429
        %515 = vmatpush.msra.mxu0 %v427
        %516 = vmatmul.f32.gmra.mxu0 %v496
        %v517 = vpop.f32.mrf.mxu0
        %v518 = vadd.f32 0.0, %v517
        %519 = vdwg.mxu0
        %520 = vmatpush.msra.mxu0 %v489
        %521 = vmatpush.msra.mxu0 %v487
        %522 = vmatpush.msra.mxu0 %v485
        %523 = vmatpush.msra.mxu0 %v483
        %524 = vmatpush.msra.mxu0 %v481
        %525 = vmatpush.msra.mxu0 %v479
        %526 = vmatpush.msra.mxu0 %v477
        %527 = vmatpush.msra.mxu0 %v475
        %528 = vmatpush.msra.mxu0 %v473
        %529 = vmatpush.msra.mxu0 %v471
        %530 = vmatpush.msra.mxu0 %v469
        %531 = vmatpush.msra.mxu0 %v467
        %532 = vmatpush.msra.mxu0 %v465
        %533 = vmatpush.msra.mxu0 %v463
        %534 = vmatpush.msra.mxu0 %v461
        %535 = vmatpush.msra.mxu0 %v459
        %536 = vmatmul.f32.gmra.mxu0 %v497
        %v537 = vpop.f32.mrf.mxu0
        %v538 = vadd.f32 %v518, %v537
        %539 = vdwg.mxu0
        %540 = vmatpush.msra.mxu0 %v458
        %541 = vmatpush.msra.mxu0 %v456
        %542 = vmatpush.msra.mxu0 %v454
        %543 = vmatpush.msra.mxu0 %v452
        %544 = vmatpush.msra.mxu0 %v450
        %545 = vmatpush.msra.mxu0 %v448
        %546 = vmatpush.msra.mxu0 %v446
        %547 = vmatpush.msra.mxu0 %v444
        %548 = vmatpush.msra.mxu0 %v442
        %549 = vmatpush.msra.mxu0 %v440
        %550 = vmatpush.msra.mxu0 %v438
        %551 = vmatpush.msra.mxu0 %v436
        %552 = vmatpush.msra.mxu0 %v434
        %553 = vmatpush.msra.mxu0 %v432
        %554 = vmatpush.msra.mxu0 %v430
        %555 = vmatpush.msra.mxu0 %v428
        %556 = vmatmul.f32.gmra.mxu0 %v496
        %v557 = vpop.f32.mrf.mxu0
        %v558 = vadd.f32 0.0, %v557
        %559 = vdwg.mxu0
        %560 = vmatpush.msra.mxu0 %v490
        %561 = vmatpush.msra.mxu0 %v488
        %562 = vmatpush.msra.mxu0 %v486
        %563 = vmatpush.msra.mxu0 %v484
        %564 = vmatpush.msra.mxu0 %v482
        %565 = vmatpush.msra.mxu0 %v480
        %566 = vmatpush.msra.mxu0 %v478
        %567 = vmatpush.msra.mxu0 %v476
        %568 = vmatpush.msra.mxu0 %v474
        %569 = vmatpush.msra.mxu0 %v472
        %570 = vmatpush.msra.mxu0 %v470
        %571 = vmatpush.msra.mxu0 %v468
        %572 = vmatpush.msra.mxu0 %v466
        %573 = vmatpush.msra.mxu0 %v464
        %574 = vmatpush.msra.mxu0 %v462
        %575 = vmatpush.msra.mxu0 %v460
        %576 = vmatmul.f32.gmra.mxu0 %v497
        %v577 = vpop.f32.mrf.mxu0
        %v578 = vadd.f32 %v558, %v577
        %579 = vdwg.mxu0
        %580 = vst [vmem:[#allocation1] ss:$9 sm:$0xff] %v425
        %s581 = scalar_lea.vmem [#allocation1], 1
        %582 = vst [vmem:[%s581] ss:$9 sm:$0xff] %v426
        %v583 = vld [vmem:[#allocation1 + $0x12] sm:$0xff]
        %v585 = vsub.f32 %v538, %v583
        %586 = vst [vmem:[#allocation1] ss:$9 sm:$0xff] %v425
        %s587 = scalar_lea.vmem [#allocation1], 1
        %588 = vst [vmem:[%s587] ss:$9 sm:$0xff] %v426
        %v589 = vld [vmem:[#allocation1 + $0x1b] sm:$0xff]
        %v591 = vsub.f32 %v578, %v589
        %v592 = vstv %s419
        %v593 = vmul.f32 %v592, %v585
        %v594 = vstv %s420
        %v595 = vmul.f32 %v594, %v591
        %v596 = vsub.f32 %v593, %v595
        %v598 = vrot.slane %v596, 1
        %v600 = vsub.f32 %v425, %v596
        %v601 = vsub.f32 %v426, %v598
        %v602 = vmul.f32 %v592, %v591
        %v603 = vmul.f32 %v594, %v585
        %v604 = vadd.f32 %v602, %v603
        %v605 = vrot.slane %v425, 1
        %v606 = vrot.slane %v426, 1
        %v610 = vrot.slane %v604, 1
        %v612 = vsub.f32 %v605, %v604
        %v613 = vsub.f32 %v606, %v610
        %v614 = vld [vmem:[%s2] sm:$0xff]
        %v615 = vlaneseq
        %v616 = vshrl.u32 %v615, 7
        %v617 = vadd.s32 %v616, 8
        %v618 = vadd.s32 %v616, 16
        %v619 = vadd.s32 %v616, 24
        %v620 = vadd.s32 %v616, 32
        %v621 = vadd.s32 %v616, 40
        %v622 = vadd.s32 %v616, 48
        %v623 = vadd.s32 %v616, 56
        %vm624 = vcmp.lt.s32.totalorder %v616, 32
        %vm625 = vcmp.lt.s32.totalorder %v617, 32
        %vm626 = vcmp.lt.s32.totalorder %v618, 32
        %vm627 = vcmp.lt.s32.totalorder %v619, 32
        %vm628 = vcmp.lt.s32.totalorder %v620, 32
        %vm629 = vcmp.lt.s32.totalorder %v621, 32
        %vm630 = vcmp.lt.s32.totalorder %v622, 32
        %vm631 = vcmp.lt.s32.totalorder %v623, 32
        %v632 = vstv %s421
        %v633 = vstv %s422
        %v634 = vsel %vm624, %v632, %v633
        %v635 = vsel %vm625, %v632, %v633
        %v636 = vsel %vm626, %v632, %v633
        %v637 = vsel %vm627, %v632, %v633
        %v638 = vsel %vm628, %v632, %v633
        %v639 = vsel %vm629, %v632, %v633
        %v640 = vsel %vm630, %v632, %v633
        %v641 = vsel %vm631, %v632, %v633
        %v644 = vrot.slane %v612, 7
        %v645 = vrot.slane %v613, 7
        %vm648 = vcmask 1040384
        %v649 = vsel %vm648, %v600, %v644
        %v650 = vsel %vm648, %v601, %v645
        %651 = vrot.lane.b32.xlu0 %v649, 1
        %v652 = vpop.permute.xlu0 %651
        %653 = vrot.lane.b32.xlu0 %v650, 1
        %v654 = vpop.permute.xlu0 %653
        %v655 = vlaneseq
        %v656 = vand.u32 %v655, 127
        %vm657 = vcmp.lt.s32.totalorder %v656, 1
        %v658 = vsel %vm657, %v652, %v654
        %v659 = vsel %vm657, %v654, %v652
        %v661 = vperm.slane %v614, 0
        %v662 = vperm.slane %v614, 2
        %v665 = vperm.slane %v661, 0
        %v666 = vperm.slane %v662, 0
        %v667 = vmul.f32 %v665, %v659
        %v668 = vmul.f32 %v666, %v658
        %669 = vrot.lane.b32.xlu0 %v649, 127
        %v670 = vpop.permute.xlu0 %669
        %671 = vrot.lane.b32.xlu0 %v650, 127
        %v672 = vpop.permute.xlu0 %671
        %vm673 = vcmp.lt.s32.totalorder %v656, 127
        %v674 = vsel %vm673, %v670, %v672
        %v675 = vsel %vm673, %v672, %v670
        %v676 = vperm.slane %v614, 1
        %v677 = vperm.slane %v614, 3
        %v680 = vperm.slane %v676, 1
        %v681 = vperm.slane %v677, 1
        %v682 = vmul.f32 %v680, %v674
        %v683 = vmul.f32 %v681, %v675
        %v686 = vrot.slane %v649, 6
        %v687 = vrot.slane %v650, 6
        %v692 = vrot.slane %v682, 4
        %v693 = vrot.slane %v683, 4
        %vm696 = vcmask 1041408
        %v697 = vsel %vm696, %v667, %v686
        %v698 = vsel %vm696, %v668, %v687
        %vm699 = vcmask 1043456
        %v700 = vsel %vm699, %v697, %v692
        %v701 = vsel %vm699, %v698, %v693
        %vm702 = vcmask 1045504
        %v703 = vsel %vm702, %v700, 0.0
        %v704 = vsel %vm702, %v701, 0.0
        %v705 = vld [vmem:[%s4] sm:$0xff]
        %v706 = vld [vmem:[%s4 + $0x8] sm:$0xff]
        %v707 = vld [vmem:[%s4 + $0x10] sm:$0xff]
        %v708 = vld [vmem:[%s4 + $0x18] sm:$0xff]
        %v709 = vld [vmem:[%s4 + $0x20] sm:$0xff]
        %v710 = vld [vmem:[%s4 + $0x28] sm:$0xff]
        %v711 = vld [vmem:[%s4 + $0x30] sm:$0xff]
        %v712 = vld [vmem:[%s4 + $0x38] sm:$0xff]
        %v713 = vld [vmem:[%s5] sm:$0xff]
        %v714 = vld [vmem:[%s5 + $0x8] sm:$0xff]
        %v715 = vld [vmem:[%s5 + $0x10] sm:$0xff]
        %v716 = vld [vmem:[%s5 + $0x18] sm:$0xff]
        %v717 = vld [vmem:[%s5 + $0x20] sm:$0xff]
        %v718 = vld [vmem:[%s5 + $0x28] sm:$0xff]
        %v719 = vld [vmem:[%s5 + $0x30] sm:$0xff]
        %v720 = vld [vmem:[%s5 + $0x38] sm:$0xff]
        %722 = vset.pattern.permute.xlu0 0
        %723 = vperm.xlu0 %722, %v713
        %v724 = vpop.permute.xlu0 %723
        %727 = vset.pattern.permute.xlu0 0
        %728 = vperm.xlu0 %727, %v714
        %v729 = vpop.permute.xlu0 %728
        %732 = vset.pattern.permute.xlu0 0
        %733 = vperm.xlu0 %732, %v715
        %v734 = vpop.permute.xlu0 %733
        %737 = vset.pattern.permute.xlu0 0
        %738 = vperm.xlu0 %737, %v716
        %v739 = vpop.permute.xlu0 %738
        %742 = vset.pattern.permute.xlu0 0
        %743 = vperm.xlu0 %742, %v717
        %v744 = vpop.permute.xlu0 %743
        %747 = vset.pattern.permute.xlu0 0
        %748 = vperm.xlu0 %747, %v718
        %v749 = vpop.permute.xlu0 %748
        %752 = vset.pattern.permute.xlu0 0
        %753 = vperm.xlu0 %752, %v719
        %v754 = vpop.permute.xlu0 %753
        %757 = vset.pattern.permute.xlu0 0
        %758 = vperm.xlu0 %757, %v720
        %v759 = vpop.permute.xlu0 %758
        %vm761 = vcmask 64512
        %v763 = vsel %vm761, %v705, 0
        %v766 = vsel %vm761, %v706, 0
        %v769 = vsel %vm761, %v707, 0
        %v772 = vsel %vm761, %v708, 0
        %v775 = vsel %vm761, %v709, 0
        %v778 = vsel %vm761, %v710, 0
        %v781 = vsel %vm761, %v711, 0
        %v784 = vsel %vm761, %v712, 0
        %786 = vmatpush.msra.mxu0 0.0
        %787 = vmatpush.msra.mxu0 0.0
        %788 = vmatpush.msra.mxu0 0.0
        %789 = vmatpush.msra.mxu0 0.0
        %790 = vmatpush.msra.mxu0 0.0
        %791 = vmatpush.msra.mxu0 0.0
        %792 = vmatpush.msra.mxu0 0.0
        %793 = vmatpush.msra.mxu0 0.0
        %794 = vmatpush.msra.mxu0 0.0
        %795 = vmatpush.msra.mxu0 0.0
        %796 = vmatpush.msra.mxu0 0.0
        %797 = vmatpush.msra.mxu0 0.0
        %798 = vmatpush.msra.mxu0 0.0
        %799 = vmatpush.msra.mxu0 0.0
        %800 = vmatpush.msra.mxu0 0.0
        %801 = vmatpush.msra.mxu0 %v703
        %802 = vmatmul.f32.gmra.mxu0 %v763
        %v803 = vpop.f32.mrf.mxu0
        %v804 = vadd.f32 %v724, %v803
        %805 = vmatmul.f32.gmra.mxu0 %v766
        %v806 = vpop.f32.mrf.mxu0
        %v807 = vadd.f32 %v729, %v806
        %808 = vmatmul.f32.gmra.mxu0 %v769
        %v809 = vpop.f32.mrf.mxu0
        %v810 = vadd.f32 %v734, %v809
        %811 = vmatmul.f32.gmra.mxu0 %v772
        %v812 = vpop.f32.mrf.mxu0
        %v813 = vadd.f32 %v739, %v812
        %814 = vmatmul.f32.gmra.mxu0 %v775
        %v815 = vpop.f32.mrf.mxu0
        %v816 = vadd.f32 %v744, %v815
        %817 = vmatmul.f32.gmra.mxu0 %v778
        %v818 = vpop.f32.mrf.mxu0
        %v819 = vadd.f32 %v749, %v818
        %820 = vmatmul.f32.gmra.mxu0 %v781
        %v821 = vpop.f32.mrf.mxu0
        %v822 = vadd.f32 %v754, %v821
        %823 = vmatmul.f32.gmra.mxu0 %v784
        %v824 = vpop.f32.mrf.mxu0
        %v825 = vadd.f32 %v759, %v824
        %826 = vdwg.mxu0
        %827 = vmatpush.msra.mxu0 0.0
        %828 = vmatpush.msra.mxu0 0.0
        %829 = vmatpush.msra.mxu0 0.0
        %830 = vmatpush.msra.mxu0 0.0
        %831 = vmatpush.msra.mxu0 0.0
        %832 = vmatpush.msra.mxu0 0.0
        %833 = vmatpush.msra.mxu0 0.0
        %834 = vmatpush.msra.mxu0 0.0
        %835 = vmatpush.msra.mxu0 0.0
        %836 = vmatpush.msra.mxu0 0.0
        %837 = vmatpush.msra.mxu0 0.0
        %838 = vmatpush.msra.mxu0 0.0
        %839 = vmatpush.msra.mxu0 0.0
        %840 = vmatpush.msra.mxu0 0.0
        %841 = vmatpush.msra.mxu0 0.0
        %842 = vmatpush.msra.mxu0 %v704
        %843 = vmatmul.f32.gmra.mxu0 %v763
        %v844 = vpop.f32.mrf.mxu0
        %v845 = vadd.f32 %v724, %v844
        %846 = vmatmul.f32.gmra.mxu0 %v766
        %v847 = vpop.f32.mrf.mxu0
        %v848 = vadd.f32 %v729, %v847
        %849 = vmatmul.f32.gmra.mxu0 %v769
        %v850 = vpop.f32.mrf.mxu0
        %v851 = vadd.f32 %v734, %v850
        %852 = vmatmul.f32.gmra.mxu0 %v772
        %v853 = vpop.f32.mrf.mxu0
        %v854 = vadd.f32 %v739, %v853
        %855 = vmatmul.f32.gmra.mxu0 %v775
        %v856 = vpop.f32.mrf.mxu0
        %v857 = vadd.f32 %v744, %v856
        %858 = vmatmul.f32.gmra.mxu0 %v778
        %v859 = vpop.f32.mrf.mxu0
        %v860 = vadd.f32 %v749, %v859
        %861 = vmatmul.f32.gmra.mxu0 %v781
        %v862 = vpop.f32.mrf.mxu0
        %v863 = vadd.f32 %v754, %v862
        %864 = vmatmul.f32.gmra.mxu0 %v784
        %v865 = vpop.f32.mrf.mxu0
        %v866 = vadd.f32 %v759, %v865
        %867 = vdwg.mxu0
        %v868 = vmax.f32 %v804, 0.0
        %v869 = vmax.f32 %v845, 0.0
        %v870 = vmax.f32 %v807, 0.0
        %v871 = vmax.f32 %v848, 0.0
        %v872 = vmax.f32 %v810, 0.0
        %v873 = vmax.f32 %v851, 0.0
        %v874 = vmax.f32 %v813, 0.0
        %v875 = vmax.f32 %v854, 0.0
        %v876 = vmax.f32 %v816, 0.0
        %v877 = vmax.f32 %v857, 0.0
        %v878 = vmax.f32 %v819, 0.0
        %v879 = vmax.f32 %v860, 0.0
        %v880 = vmax.f32 %v822, 0.0
        %v881 = vmax.f32 %v863, 0.0
        %v882 = vmax.f32 %v825, 0.0
        %v883 = vmax.f32 %v866, 0.0
        %v884 = vld [vmem:[#allocation7] sm:$0xff]
        %v885 = vld [vmem:[#allocation7 + $0x8] sm:$0xff]
        %v886 = vld [vmem:[#allocation7 + $0x10] sm:$0xff]
        %v887 = vld [vmem:[#allocation7 + $0x18] sm:$0xff]
        %v888 = vld [vmem:[#allocation7 + $0x20] sm:$0xff]
        %v889 = vld [vmem:[#allocation7 + $0x28] sm:$0xff]
        %v890 = vld [vmem:[#allocation7 + $0x30] sm:$0xff]
        %v891 = vld [vmem:[#allocation7 + $0x38] sm:$0xff]
        %v892 = vld [vmem:[#allocation7 + $0x40] sm:$0xff]
        %v893 = vld [vmem:[#allocation7 + $0x48] sm:$0xff]
        %v894 = vld [vmem:[#allocation7 + $0x50] sm:$0xff]
        %v895 = vld [vmem:[#allocation7 + $0x58] sm:$0xff]
        %v896 = vld [vmem:[#allocation7 + $0x60] sm:$0xff]
        %v897 = vld [vmem:[#allocation7 + $0x68] sm:$0xff]
        %v898 = vld [vmem:[#allocation7 + $0x70] sm:$0xff]
        %v899 = vld [vmem:[#allocation7 + $0x78] sm:$0xff]
        %900 = vrot.lane.b32.xlu0 %v868, 1
        %v901 = vpop.permute.xlu0 %900
        %902 = vrot.lane.b32.xlu0 %v870, 1
        %v903 = vpop.permute.xlu0 %902
        %904 = vrot.lane.b32.xlu0 %v872, 1
        %v905 = vpop.permute.xlu0 %904
        %906 = vrot.lane.b32.xlu0 %v874, 1
        %v907 = vpop.permute.xlu0 %906
        %908 = vrot.lane.b32.xlu0 %v876, 1
        %v909 = vpop.permute.xlu0 %908
        %910 = vrot.lane.b32.xlu0 %v878, 1
        %v911 = vpop.permute.xlu0 %910
        %912 = vrot.lane.b32.xlu0 %v880, 1
        %v913 = vpop.permute.xlu0 %912
        %914 = vrot.lane.b32.xlu0 %v882, 1
        %v915 = vpop.permute.xlu0 %914
        %916 = vrot.lane.b32.xlu0 %v869, 1
        %v917 = vpop.permute.xlu0 %916
        %918 = vrot.lane.b32.xlu0 %v871, 1
        %v919 = vpop.permute.xlu0 %918
        %920 = vrot.lane.b32.xlu0 %v873, 1
        %v921 = vpop.permute.xlu0 %920
        %922 = vrot.lane.b32.xlu0 %v875, 1
        %v923 = vpop.permute.xlu0 %922
        %924 = vrot.lane.b32.xlu0 %v877, 1
        %v925 = vpop.permute.xlu0 %924
        %926 = vrot.lane.b32.xlu0 %v879, 1
        %v927 = vpop.permute.xlu0 %926
        %928 = vrot.lane.b32.xlu0 %v881, 1
        %v929 = vpop.permute.xlu0 %928
        %930 = vrot.lane.b32.xlu0 %v883, 1
        %v931 = vpop.permute.xlu0 %930
        %v932 = vsel %vm657, %v901, %v917
        %v933 = vsel %vm657, %v903, %v919
        %v934 = vsel %vm657, %v905, %v921
        %v935 = vsel %vm657, %v907, %v923
        %v936 = vsel %vm657, %v909, %v925
        %v937 = vsel %vm657, %v911, %v927
        %v938 = vsel %vm657, %v913, %v929
        %v939 = vsel %vm657, %v915, %v931
        %v940 = vsel %vm657, %v917, %v901
        %v941 = vsel %vm657, %v919, %v903
        %v942 = vsel %vm657, %v921, %v905
        %v943 = vsel %vm657, %v923, %v907
        %v944 = vsel %vm657, %v925, %v909
        %v945 = vsel %vm657, %v927, %v911
        %v946 = vsel %vm657, %v929, %v913
        %v947 = vsel %vm657, %v931, %v915
        %v948 = vmul.f32 %v665, %v940
        %v949 = vmul.f32 %v666, %v932
        %v950 = vmul.f32 %v665, %v941
        %v951 = vmul.f32 %v666, %v933
        %v952 = vmul.f32 %v665, %v942
        %v953 = vmul.f32 %v666, %v934
        %v954 = vmul.f32 %v665, %v943
        %v955 = vmul.f32 %v666, %v935
        %v956 = vmul.f32 %v665, %v944
        %v957 = vmul.f32 %v666, %v936
        %v958 = vmul.f32 %v665, %v945
        %v959 = vmul.f32 %v666, %v937
        %v960 = vmul.f32 %v665, %v946
        %v961 = vmul.f32 %v666, %v938
        %v962 = vmul.f32 %v665, %v947
        %v963 = vmul.f32 %v666, %v939
        %964 = vrot.lane.b32.xlu0 %v868, 127
        %v965 = vpop.permute.xlu0 %964
        %966 = vrot.lane.b32.xlu0 %v870, 127
        %v967 = vpop.permute.xlu0 %966
        %968 = vrot.lane.b32.xlu0 %v872, 127
        %v969 = vpop.permute.xlu0 %968
        %970 = vrot.lane.b32.xlu0 %v874, 127
        %v971 = vpop.permute.xlu0 %970
        %972 = vrot.lane.b32.xlu0 %v876, 127
        %v973 = vpop.permute.xlu0 %972
        %974 = vrot.lane.b32.xlu0 %v878, 127
        %v975 = vpop.permute.xlu0 %974
        %976 = vrot.lane.b32.xlu0 %v880, 127
        %v977 = vpop.permute.xlu0 %976
        %978 = vrot.lane.b32.xlu0 %v882, 127
        %v979 = vpop.permute.xlu0 %978
        %980 = vrot.lane.b32.xlu0 %v869, 127
        %v981 = vpop.permute.xlu0 %980
        %982 = vrot.lane.b32.xlu0 %v871, 127
        %v983 = vpop.permute.xlu0 %982
        %984 = vrot.lane.b32.xlu0 %v873, 127
        %v985 = vpop.permute.xlu0 %984
        %986 = vrot.lane.b32.xlu0 %v875, 127
        %v987 = vpop.permute.xlu0 %986
        %988 = vrot.lane.b32.xlu0 %v877, 127
        %v989 = vpop.permute.xlu0 %988
        %990 = vrot.lane.b32.xlu0 %v879, 127
        %v991 = vpop.permute.xlu0 %990
        %992 = vrot.lane.b32.xlu0 %v881, 127
        %v993 = vpop.permute.xlu0 %992
        %994 = vrot.lane.b32.xlu0 %v883, 127
        %v995 = vpop.permute.xlu0 %994
        %v996 = vsel %vm673, %v965, %v981
        %v997 = vsel %vm673, %v967, %v983
        %v998 = vsel %vm673, %v969, %v985
        %v999 = vsel %vm673, %v971, %v987
        %v1000 = vsel %vm673, %v973, %v989
        %v1001 = vsel %vm673, %v975, %v991
        %v1002 = vsel %vm673, %v977, %v993
        %v1003 = vsel %vm673, %v979, %v995
        %v1004 = vsel %vm673, %v981, %v965
        %v1005 = vsel %vm673, %v983, %v967
        %v1006 = vsel %vm673, %v985, %v969
        %v1007 = vsel %vm673, %v987, %v971
        %v1008 = vsel %vm673, %v989, %v973
        %v1009 = vsel %vm673, %v991, %v975
        %v1010 = vsel %vm673, %v993, %v977
        %v1011 = vsel %vm673, %v995, %v979
        %v1012 = vmul.f32 %v680, %v996
        %v1013 = vmul.f32 %v681, %v1004
        %v1014 = vmul.f32 %v680, %v997
        %v1015 = vmul.f32 %v681, %v1005
        %v1016 = vmul.f32 %v680, %v998
        %v1017 = vmul.f32 %v681, %v1006
        %v1018 = vmul.f32 %v680, %v999
        %v1019 = vmul.f32 %v681, %v1007
        %v1020 = vmul.f32 %v680, %v1000
        %v1021 = vmul.f32 %v681, %v1008
        %v1022 = vmul.f32 %v680, %v1001
        %v1023 = vmul.f32 %v681, %v1009
        %v1024 = vmul.f32 %v680, %v1002
        %v1025 = vmul.f32 %v681, %v1010
        %v1026 = vmul.f32 %v680, %v1003
        %v1027 = vmul.f32 %v681, %v1011
        %v1028 = vld [vmem:[%s7] sm:$0xff]
        %v1029 = vld [vmem:[%s7 + $0x8] sm:$0xff]
        %v1030 = vld [vmem:[%s7 + $0x10] sm:$0xff]
        %v1031 = vld [vmem:[%s7 + $0x18] sm:$0xff]
        %v1032 = vld [vmem:[%s7 + $0x20] sm:$0xff]
        %v1033 = vld [vmem:[%s7 + $0x28] sm:$0xff]
        %v1034 = vld [vmem:[%s7 + $0x30] sm:$0xff]
        %v1035 = vld [vmem:[%s7 + $0x38] sm:$0xff]
        %1037 = vset.pattern.permute.xlu0 0
        %1038 = vperm.xlu0 %1037, %v1028
        %v1039 = vpop.permute.xlu0 %1038
        %1042 = vset.pattern.permute.xlu0 0
        %1043 = vperm.xlu0 %1042, %v1029
        %v1044 = vpop.permute.xlu0 %1043
        %1047 = vset.pattern.permute.xlu0 0
        %1048 = vperm.xlu0 %1047, %v1030
        %v1049 = vpop.permute.xlu0 %1048
        %1052 = vset.pattern.permute.xlu0 0
        %1053 = vperm.xlu0 %1052, %v1031
        %v1054 = vpop.permute.xlu0 %1053
        %1057 = vset.pattern.permute.xlu0 0
        %1058 = vperm.xlu0 %1057, %v1032
        %v1059 = vpop.permute.xlu0 %1058
        %1062 = vset.pattern.permute.xlu0 0
        %1063 = vperm.xlu0 %1062, %v1033
        %v1064 = vpop.permute.xlu0 %1063
        %1067 = vset.pattern.permute.xlu0 0
        %1068 = vperm.xlu0 %1067, %v1034
        %v1069 = vpop.permute.xlu0 %1068
        %1072 = vset.pattern.permute.xlu0 0
        %1073 = vperm.xlu0 %1072, %v1035
        %v1074 = vpop.permute.xlu0 %1073
        %vm1076 = vcmask 523264
        %v1078 = vsel %vm1076, %v885, 0
        %v1081 = vsel %vm1076, %v887, 0
        %v1084 = vsel %vm1076, %v889, 0
        %v1087 = vsel %vm1076, %v891, 0
        %v1090 = vsel %vm1076, %v893, 0
        %v1093 = vsel %vm1076, %v895, 0
        %v1096 = vsel %vm1076, %v897, 0
        %v1099 = vsel %vm1076, %v899, 0
        %1101 = vmatpush.msra.mxu0 %v882
        %1102 = vmatpush.msra.mxu0 %v880
        %1103 = vmatpush.msra.mxu0 %v878
        %1104 = vmatpush.msra.mxu0 %v876
        %1105 = vmatpush.msra.mxu0 %v874
        %1106 = vmatpush.msra.mxu0 %v872
        %1107 = vmatpush.msra.mxu0 %v870
        %1108 = vmatpush.msra.mxu0 %v868
        %1109 = vmatpush.msra.mxu0 %v962
        %1110 = vmatpush.msra.mxu0 %v960
        %1111 = vmatpush.msra.mxu0 %v958
        %1112 = vmatpush.msra.mxu0 %v956
        %1113 = vmatpush.msra.mxu0 %v954
        %1114 = vmatpush.msra.mxu0 %v952
        %1115 = vmatpush.msra.mxu0 %v950
        %1116 = vmatpush.msra.mxu0 %v948
        %1117 = vmatmul.f32.gmra.mxu0 %v884
        %v1118 = vpop.f32.mrf.mxu0
        %v1119 = vadd.f32 %v1039, %v1118
        %1120 = vmatmul.f32.gmra.mxu0 %v886
        %v1121 = vpop.f32.mrf.mxu0
        %v1122 = vadd.f32 %v1044, %v1121
        %1123 = vmatmul.f32.gmra.mxu0 %v888
        %v1124 = vpop.f32.mrf.mxu0
        %v1125 = vadd.f32 %v1049, %v1124
        %1126 = vmatmul.f32.gmra.mxu0 %v890
        %v1127 = vpop.f32.mrf.mxu0
        %v1128 = vadd.f32 %v1054, %v1127
        %1129 = vmatmul.f32.gmra.mxu0 %v892
        %v1130 = vpop.f32.mrf.mxu0
        %v1131 = vadd.f32 %v1059, %v1130
        %1132 = vmatmul.f32.gmra.mxu0 %v894
        %v1133 = vpop.f32.mrf.mxu0
        %v1134 = vadd.f32 %v1064, %v1133
        %1135 = vmatmul.f32.gmra.mxu0 %v896
        %v1136 = vpop.f32.mrf.mxu0
        %v1137 = vadd.f32 %v1069, %v1136
        %1138 = vmatmul.f32.gmra.mxu0 %v898
        %v1139 = vpop.f32.mrf.mxu0
        %v1140 = vadd.f32 %v1074, %v1139
        %1141 = vdwg.mxu0
        %1142 = vmatpush.msra.mxu0 0.0
        %1143 = vmatpush.msra.mxu0 0.0
        %1144 = vmatpush.msra.mxu0 0.0
        %1145 = vmatpush.msra.mxu0 0.0
        %1146 = vmatpush.msra.mxu0 0.0
        %1147 = vmatpush.msra.mxu0 0.0
        %1148 = vmatpush.msra.mxu0 0.0
        %1149 = vmatpush.msra.mxu0 0.0
        %1150 = vmatpush.msra.mxu0 %v1026
        %1151 = vmatpush.msra.mxu0 %v1024
        %1152 = vmatpush.msra.mxu0 %v1022
        %1153 = vmatpush.msra.mxu0 %v1020
        %1154 = vmatpush.msra.mxu0 %v1018
        %1155 = vmatpush.msra.mxu0 %v1016
        %1156 = vmatpush.msra.mxu0 %v1014
        %1157 = vmatpush.msra.mxu0 %v1012
        %1158 = vmatmul.f32.gmra.mxu0 %v1078
        %v1159 = vpop.f32.mrf.mxu0
        %v1160 = vadd.f32 %v1119, %v1159
        %1161 = vmatmul.f32.gmra.mxu0 %v1081
        %v1162 = vpop.f32.mrf.mxu0
        %v1163 = vadd.f32 %v1122, %v1162
        %1164 = vmatmul.f32.gmra.mxu0 %v1084
        %v1165 = vpop.f32.mrf.mxu0
        %v1166 = vadd.f32 %v1125, %v1165
        %1167 = vmatmul.f32.gmra.mxu0 %v1087
        %v1168 = vpop.f32.mrf.mxu0
        %v1169 = vadd.f32 %v1128, %v1168
        %1170 = vmatmul.f32.gmra.mxu0 %v1090
        %v1171 = vpop.f32.mrf.mxu0
        %v1172 = vadd.f32 %v1131, %v1171
        %1173 = vmatmul.f32.gmra.mxu0 %v1093
        %v1174 = vpop.f32.mrf.mxu0
        %v1175 = vadd.f32 %v1134, %v1174
        %1176 = vmatmul.f32.gmra.mxu0 %v1096
        %v1177 = vpop.f32.mrf.mxu0
        %v1178 = vadd.f32 %v1137, %v1177
        %1179 = vmatmul.f32.gmra.mxu0 %v1099
        %v1180 = vpop.f32.mrf.mxu0
        %v1181 = vadd.f32 %v1140, %v1180
        %1182 = vdwg.mxu0
        %1183 = vmatpush.msra.mxu0 %v883
        %1184 = vmatpush.msra.mxu0 %v881
        %1185 = vmatpush.msra.mxu0 %v879
        %1186 = vmatpush.msra.mxu0 %v877
        %1187 = vmatpush.msra.mxu0 %v875
        %1188 = vmatpush.msra.mxu0 %v873
        %1189 = vmatpush.msra.mxu0 %v871
        %1190 = vmatpush.msra.mxu0 %v869
        %1191 = vmatpush.msra.mxu0 %v963
        %1192 = vmatpush.msra.mxu0 %v961
        %1193 = vmatpush.msra.mxu0 %v959
        %1194 = vmatpush.msra.mxu0 %v957
        %1195 = vmatpush.msra.mxu0 %v955
        %1196 = vmatpush.msra.mxu0 %v953
        %1197 = vmatpush.msra.mxu0 %v951
        %1198 = vmatpush.msra.mxu0 %v949
        %1199 = vmatmul.f32.gmra.mxu0 %v884
        %v1200 = vpop.f32.mrf.mxu0
        %v1201 = vadd.f32 %v1039, %v1200
        %1202 = vmatmul.f32.gmra.mxu0 %v886
        %v1203 = vpop.f32.mrf.mxu0
        %v1204 = vadd.f32 %v1044, %v1203
        %1205 = vmatmul.f32.gmra.mxu0 %v888
        %v1206 = vpop.f32.mrf.mxu0
        %v1207 = vadd.f32 %v1049, %v1206
        %1208 = vmatmul.f32.gmra.mxu0 %v890
        %v1209 = vpop.f32.mrf.mxu0
        %v1210 = vadd.f32 %v1054, %v1209
        %1211 = vmatmul.f32.gmra.mxu0 %v892
        %v1212 = vpop.f32.mrf.mxu0
        %v1213 = vadd.f32 %v1059, %v1212
        %1214 = vmatmul.f32.gmra.mxu0 %v894
        %v1215 = vpop.f32.mrf.mxu0
        %v1216 = vadd.f32 %v1064, %v1215
        %1217 = vmatmul.f32.gmra.mxu0 %v896
        %v1218 = vpop.f32.mrf.mxu0
        %v1219 = vadd.f32 %v1069, %v1218
        %1220 = vmatmul.f32.gmra.mxu0 %v898
        %v1221 = vpop.f32.mrf.mxu0
        %v1222 = vadd.f32 %v1074, %v1221
        %1223 = vdwg.mxu0
        %1224 = vmatpush.msra.mxu0 0.0
        %1225 = vmatpush.msra.mxu0 0.0
        %1226 = vmatpush.msra.mxu0 0.0
        %1227 = vmatpush.msra.mxu0 0.0
        %1228 = vmatpush.msra.mxu0 0.0
        %1229 = vmatpush.msra.mxu0 0.0
        %1230 = vmatpush.msra.mxu0 0.0
        %1231 = vmatpush.msra.mxu0 0.0
        %1232 = vmatpush.msra.mxu0 %v1027
        %1233 = vmatpush.msra.mxu0 %v1025
        %1234 = vmatpush.msra.mxu0 %v1023
        %1235 = vmatpush.msra.mxu0 %v1021
        %1236 = vmatpush.msra.mxu0 %v1019
        %1237 = vmatpush.msra.mxu0 %v1017
        %1238 = vmatpush.msra.mxu0 %v1015
        %1239 = vmatpush.msra.mxu0 %v1013
        %1240 = vmatmul.f32.gmra.mxu0 %v1078
        %v1241 = vpop.f32.mrf.mxu0
        %v1242 = vadd.f32 %v1201, %v1241
        %1243 = vmatmul.f32.gmra.mxu0 %v1081
        %v1244 = vpop.f32.mrf.mxu0
        %v1245 = vadd.f32 %v1204, %v1244
        %1246 = vmatmul.f32.gmra.mxu0 %v1084
        %v1247 = vpop.f32.mrf.mxu0
        %v1248 = vadd.f32 %v1207, %v1247
        %1249 = vmatmul.f32.gmra.mxu0 %v1087
        %v1250 = vpop.f32.mrf.mxu0
        %v1251 = vadd.f32 %v1210, %v1250
        %1252 = vmatmul.f32.gmra.mxu0 %v1090
        %v1253 = vpop.f32.mrf.mxu0
        %v1254 = vadd.f32 %v1213, %v1253
        %1255 = vmatmul.f32.gmra.mxu0 %v1093
        %v1256 = vpop.f32.mrf.mxu0
        %v1257 = vadd.f32 %v1216, %v1256
        %1258 = vmatmul.f32.gmra.mxu0 %v1096
        %v1259 = vpop.f32.mrf.mxu0
        %v1260 = vadd.f32 %v1219, %v1259
        %1261 = vmatmul.f32.gmra.mxu0 %v1099
        %v1262 = vpop.f32.mrf.mxu0
        %v1263 = vadd.f32 %v1222, %v1262
        %1264 = vdwg.mxu0
        %v1265 = vmax.f32 %v1160, 0.0
        %v1266 = vmax.f32 %v1242, 0.0
        %v1267 = vmax.f32 %v1163, 0.0
        %v1268 = vmax.f32 %v1245, 0.0
        %v1269 = vmax.f32 %v1166, 0.0
        %v1270 = vmax.f32 %v1248, 0.0
        %v1271 = vmax.f32 %v1169, 0.0
        %v1272 = vmax.f32 %v1251, 0.0
        %v1273 = vmax.f32 %v1172, 0.0
        %v1274 = vmax.f32 %v1254, 0.0
        %v1275 = vmax.f32 %v1175, 0.0
        %v1276 = vmax.f32 %v1257, 0.0
        %v1277 = vmax.f32 %v1178, 0.0
        %v1278 = vmax.f32 %v1260, 0.0
        %v1279 = vmax.f32 %v1181, 0.0
        %v1280 = vmax.f32 %v1263, 0.0
        %s1281 = scalar_lea.vmem [#allocation7], 128
        %v1282 = vld [vmem:[%s1281] sm:$0xff]
        %v1283 = vld [vmem:[%s1281 + $0x8] sm:$0xff]
        %v1284 = vld [vmem:[%s1281 + $0x10] sm:$0xff]
        %v1285 = vld [vmem:[%s1281 + $0x18] sm:$0xff]
        %v1286 = vld [vmem:[%s1281 + $0x20] sm:$0xff]
        %v1287 = vld [vmem:[%s1281 + $0x28] sm:$0xff]
        %v1288 = vld [vmem:[%s1281 + $0x30] sm:$0xff]
        %v1289 = vld [vmem:[%s1281 + $0x38] sm:$0xff]
        %v1290 = vld [vmem:[%s1281 + $0x40] sm:$0xff]
        %v1291 = vld [vmem:[%s1281 + $0x48] sm:$0xff]
        %v1292 = vld [vmem:[%s1281 + $0x50] sm:$0xff]
        %v1293 = vld [vmem:[%s1281 + $0x58] sm:$0xff]
        %v1294 = vld [vmem:[%s1281 + $0x60] sm:$0xff]
        %v1295 = vld [vmem:[%s1281 + $0x68] sm:$0xff]
        %v1296 = vld [vmem:[%s1281 + $0x70] sm:$0xff]
        %v1297 = vld [vmem:[%s1281 + $0x78] sm:$0xff]
        %1298 = vrot.lane.b32.xlu0 %v1265, 1
        %v1299 = vpop.permute.xlu0 %1298
        %1300 = vrot.lane.b32.xlu0 %v1267, 1
        %v1301 = vpop.permute.xlu0 %1300
        %1302 = vrot.lane.b32.xlu0 %v1269, 1
        %v1303 = vpop.permute.xlu0 %1302
        %1304 = vrot.lane.b32.xlu0 %v1271, 1
        %v1305 = vpop.permute.xlu0 %1304
        %1306 = vrot.lane.b32.xlu0 %v1273, 1
        %v1307 = vpop.permute.xlu0 %1306
        %1308 = vrot.lane.b32.xlu0 %v1275, 1
        %v1309 = vpop.permute.xlu0 %1308
        %1310 = vrot.lane.b32.xlu0 %v1277, 1
        %v1311 = vpop.permute.xlu0 %1310
        %1312 = vrot.lane.b32.xlu0 %v1279, 1
        %v1313 = vpop.permute.xlu0 %1312
        %1314 = vrot.lane.b32.xlu0 %v1266, 1
        %v1315 = vpop.permute.xlu0 %1314
        %1316 = vrot.lane.b32.xlu0 %v1268, 1
        %v1317 = vpop.permute.xlu0 %1316
        %1318 = vrot.lane.b32.xlu0 %v1270, 1
        %v1319 = vpop.permute.xlu0 %1318
        %1320 = vrot.lane.b32.xlu0 %v1272, 1
        %v1321 = vpop.permute.xlu0 %1320
        %1322 = vrot.lane.b32.xlu0 %v1274, 1
        %v1323 = vpop.permute.xlu0 %1322
        %1324 = vrot.lane.b32.xlu0 %v1276, 1
        %v1325 = vpop.permute.xlu0 %1324
        %1326 = vrot.lane.b32.xlu0 %v1278, 1
        %v1327 = vpop.permute.xlu0 %1326
        %1328 = vrot.lane.b32.xlu0 %v1280, 1
        %v1329 = vpop.permute.xlu0 %1328
        %v1330 = vsel %vm657, %v1299, %v1315
        %v1331 = vsel %vm657, %v1301, %v1317
        %v1332 = vsel %vm657, %v1303, %v1319
        %v1333 = vsel %vm657, %v1305, %v1321
        %v1334 = vsel %vm657, %v1307, %v1323
        %v1335 = vsel %vm657, %v1309, %v1325
        %v1336 = vsel %vm657, %v1311, %v1327
        %v1337 = vsel %vm657, %v1313, %v1329
        %v1338 = vsel %vm657, %v1315, %v1299
        %v1339 = vsel %vm657, %v1317, %v1301
        %v1340 = vsel %vm657, %v1319, %v1303
        %v1341 = vsel %vm657, %v1321, %v1305
        %v1342 = vsel %vm657, %v1323, %v1307
        %v1343 = vsel %vm657, %v1325, %v1309
        %v1344 = vsel %vm657, %v1327, %v1311
        %v1345 = vsel %vm657, %v1329, %v1313
        %v1346 = vmul.f32 %v665, %v1338
        %v1347 = vmul.f32 %v666, %v1330
        %v1348 = vmul.f32 %v665, %v1339
        %v1349 = vmul.f32 %v666, %v1331
        %v1350 = vmul.f32 %v665, %v1340
        %v1351 = vmul.f32 %v666, %v1332
        %v1352 = vmul.f32 %v665, %v1341
        %v1353 = vmul.f32 %v666, %v1333
        %v1354 = vmul.f32 %v665, %v1342
        %v1355 = vmul.f32 %v666, %v1334
        %v1356 = vmul.f32 %v665, %v1343
        %v1357 = vmul.f32 %v666, %v1335
        %v1358 = vmul.f32 %v665, %v1344
        %v1359 = vmul.f32 %v666, %v1336
        %v1360 = vmul.f32 %v665, %v1345
        %v1361 = vmul.f32 %v666, %v1337
        %1362 = vrot.lane.b32.xlu0 %v1265, 127
        %v1363 = vpop.permute.xlu0 %1362
        %1364 = vrot.lane.b32.xlu0 %v1267, 127
        %v1365 = vpop.permute.xlu0 %1364
        %1366 = vrot.lane.b32.xlu0 %v1269, 127
        %v1367 = vpop.permute.xlu0 %1366
        %1368 = vrot.lane.b32.xlu0 %v1271, 127
        %v1369 = vpop.permute.xlu0 %1368
        %1370 = vrot.lane.b32.xlu0 %v1273, 127
        %v1371 = vpop.permute.xlu0 %1370
        %1372 = vrot.lane.b32.xlu0 %v1275, 127
        %v1373 = vpop.permute.xlu0 %1372
        %1374 = vrot.lane.b32.xlu0 %v1277, 127
        %v1375 = vpop.permute.xlu0 %1374
        %1376 = vrot.lane.b32.xlu0 %v1279, 127
        %v1377 = vpop.permute.xlu0 %1376
        %1378 = vrot.lane.b32.xlu0 %v1266, 127
        %v1379 = vpop.permute.xlu0 %1378
        %1380 = vrot.lane.b32.xlu0 %v1268, 127
        %v1381 = vpop.permute.xlu0 %1380
        %1382 = vrot.lane.b32.xlu0 %v1270, 127
        %v1383 = vpop.permute.xlu0 %1382
        %1384 = vrot.lane.b32.xlu0 %v1272, 127
        %v1385 = vpop.permute.xlu0 %1384
        %1386 = vrot.lane.b32.xlu0 %v1274, 127
        %v1387 = vpop.permute.xlu0 %1386
        %1388 = vrot.lane.b32.xlu0 %v1276, 127
        %v1389 = vpop.permute.xlu0 %1388
        %1390 = vrot.lane.b32.xlu0 %v1278, 127
        %v1391 = vpop.permute.xlu0 %1390
        %1392 = vrot.lane.b32.xlu0 %v1280, 127
        %v1393 = vpop.permute.xlu0 %1392
        %v1394 = vsel %vm673, %v1363, %v1379
        %v1395 = vsel %vm673, %v1365, %v1381
        %v1396 = vsel %vm673, %v1367, %v1383
        %v1397 = vsel %vm673, %v1369, %v1385
        %v1398 = vsel %vm673, %v1371, %v1387
        %v1399 = vsel %vm673, %v1373, %v1389
        %v1400 = vsel %vm673, %v1375, %v1391
        %v1401 = vsel %vm673, %v1377, %v1393
        %v1402 = vsel %vm673, %v1379, %v1363
        %v1403 = vsel %vm673, %v1381, %v1365
        %v1404 = vsel %vm673, %v1383, %v1367
        %v1405 = vsel %vm673, %v1385, %v1369
        %v1406 = vsel %vm673, %v1387, %v1371
        %v1407 = vsel %vm673, %v1389, %v1373
        %v1408 = vsel %vm673, %v1391, %v1375
        %v1409 = vsel %vm673, %v1393, %v1377
        %v1410 = vmul.f32 %v680, %v1394
        %v1411 = vmul.f32 %v681, %v1402
        %v1412 = vmul.f32 %v680, %v1395
        %v1413 = vmul.f32 %v681, %v1403
        %v1414 = vmul.f32 %v680, %v1396
        %v1415 = vmul.f32 %v681, %v1404
        %v1416 = vmul.f32 %v680, %v1397
        %v1417 = vmul.f32 %v681, %v1405
        %v1418 = vmul.f32 %v680, %v1398
        %v1419 = vmul.f32 %v681, %v1406
        %v1420 = vmul.f32 %v680, %v1399
        %v1421 = vmul.f32 %v681, %v1407
        %v1422 = vmul.f32 %v680, %v1400
        %v1423 = vmul.f32 %v681, %v1408
        %v1424 = vmul.f32 %v680, %v1401
        %v1425 = vmul.f32 %v681, %v1409
        %s1426 = scalar_lea.vmem %s7, 64
        %v1427 = vld [vmem:[%s1426] sm:$0xff]
        %v1428 = vld [vmem:[%s1426 + $0x8] sm:$0xff]
        %v1429 = vld [vmem:[%s1426 + $0x10] sm:$0xff]
        %v1430 = vld [vmem:[%s1426 + $0x18] sm:$0xff]
        %v1431 = vld [vmem:[%s1426 + $0x20] sm:$0xff]
        %v1432 = vld [vmem:[%s1426 + $0x28] sm:$0xff]
        %v1433 = vld [vmem:[%s1426 + $0x30] sm:$0xff]
        %v1434 = vld [vmem:[%s1426 + $0x38] sm:$0xff]
        %1436 = vset.pattern.permute.xlu0 0
        %1437 = vperm.xlu0 %1436, %v1427
        %v1438 = vpop.permute.xlu0 %1437
        %1441 = vset.pattern.permute.xlu0 0
        %1442 = vperm.xlu0 %1441, %v1428
        %v1443 = vpop.permute.xlu0 %1442
        %1446 = vset.pattern.permute.xlu0 0
        %1447 = vperm.xlu0 %1446, %v1429
        %v1448 = vpop.permute.xlu0 %1447
        %1451 = vset.pattern.permute.xlu0 0
        %1452 = vperm.xlu0 %1451, %v1430
        %v1453 = vpop.permute.xlu0 %1452
        %1456 = vset.pattern.permute.xlu0 0
        %1457 = vperm.xlu0 %1456, %v1431
        %v1458 = vpop.permute.xlu0 %1457
        %1461 = vset.pattern.permute.xlu0 0
        %1462 = vperm.xlu0 %1461, %v1432
        %v1463 = vpop.permute.xlu0 %1462
        %1466 = vset.pattern.permute.xlu0 0
        %1467 = vperm.xlu0 %1466, %v1433
        %v1468 = vpop.permute.xlu0 %1467
        %1471 = vset.pattern.permute.xlu0 0
        %1472 = vperm.xlu0 %1471, %v1434
        %v1473 = vpop.permute.xlu0 %1472
        %v1476 = vsel %vm1076, %v1283, 0
        %v1479 = vsel %vm1076, %v1285, 0
        %v1482 = vsel %vm1076, %v1287, 0
        %v1485 = vsel %vm1076, %v1289, 0
        %v1488 = vsel %vm1076, %v1291, 0
        %v1491 = vsel %vm1076, %v1293, 0
        %v1494 = vsel %vm1076, %v1295, 0
        %v1497 = vsel %vm1076, %v1297, 0
        %1499 = vmatpush.msra.mxu0 %v1279
        %1500 = vmatpush.msra.mxu0 %v1277
        %1501 = vmatpush.msra.mxu0 %v1275
        %1502 = vmatpush.msra.mxu0 %v1273
        %1503 = vmatpush.msra.mxu0 %v1271
        %1504 = vmatpush.msra.mxu0 %v1269
        %1505 = vmatpush.msra.mxu0 %v1267
        %1506 = vmatpush.msra.mxu0 %v1265
        %1507 = vmatpush.msra.mxu0 %v1360
        %1508 = vmatpush.msra.mxu0 %v1358
        %1509 = vmatpush.msra.mxu0 %v1356
        %1510 = vmatpush.msra.mxu0 %v1354
        %1511 = vmatpush.msra.mxu0 %v1352
        %1512 = vmatpush.msra.mxu0 %v1350
        %1513 = vmatpush.msra.mxu0 %v1348
        %1514 = vmatpush.msra.mxu0 %v1346
        %1515 = vmatmul.f32.gmra.mxu0 %v1282
        %v1516 = vpop.f32.mrf.mxu0
        %v1517 = vadd.f32 %v1438, %v1516
        %1518 = vmatmul.f32.gmra.mxu0 %v1284
        %v1519 = vpop.f32.mrf.mxu0
        %v1520 = vadd.f32 %v1443, %v1519
        %1521 = vmatmul.f32.gmra.mxu0 %v1286
        %v1522 = vpop.f32.mrf.mxu0
        %v1523 = vadd.f32 %v1448, %v1522
        %1524 = vmatmul.f32.gmra.mxu0 %v1288
        %v1525 = vpop.f32.mrf.mxu0
        %v1526 = vadd.f32 %v1453, %v1525
        %1527 = vmatmul.f32.gmra.mxu0 %v1290
        %v1528 = vpop.f32.mrf.mxu0
        %v1529 = vadd.f32 %v1458, %v1528
        %1530 = vmatmul.f32.gmra.mxu0 %v1292
        %v1531 = vpop.f32.mrf.mxu0
        %v1532 = vadd.f32 %v1463, %v1531
        %1533 = vmatmul.f32.gmra.mxu0 %v1294
        %v1534 = vpop.f32.mrf.mxu0
        %v1535 = vadd.f32 %v1468, %v1534
        %1536 = vmatmul.f32.gmra.mxu0 %v1296
        %v1537 = vpop.f32.mrf.mxu0
        %v1538 = vadd.f32 %v1473, %v1537
        %1539 = vdwg.mxu0
        %1540 = vmatpush.msra.mxu0 0.0
        %1541 = vmatpush.msra.mxu0 0.0
        %1542 = vmatpush.msra.mxu0 0.0
        %1543 = vmatpush.msra.mxu0 0.0
        %1544 = vmatpush.msra.mxu0 0.0
        %1545 = vmatpush.msra.mxu0 0.0
        %1546 = vmatpush.msra.mxu0 0.0
        %1547 = vmatpush.msra.mxu0 0.0
        %1548 = vmatpush.msra.mxu0 %v1424
        %1549 = vmatpush.msra.mxu0 %v1422
        %1550 = vmatpush.msra.mxu0 %v1420
        %1551 = vmatpush.msra.mxu0 %v1418
        %1552 = vmatpush.msra.mxu0 %v1416
        %1553 = vmatpush.msra.mxu0 %v1414
        %1554 = vmatpush.msra.mxu0 %v1412
        %1555 = vmatpush.msra.mxu0 %v1410
        %1556 = vmatmul.f32.gmra.mxu0 %v1476
        %v1557 = vpop.f32.mrf.mxu0
        %v1558 = vadd.f32 %v1517, %v1557
        %1559 = vmatmul.f32.gmra.mxu0 %v1479
        %v1560 = vpop.f32.mrf.mxu0
        %v1561 = vadd.f32 %v1520, %v1560
        %1562 = vmatmul.f32.gmra.mxu0 %v1482
        %v1563 = vpop.f32.mrf.mxu0
        %v1564 = vadd.f32 %v1523, %v1563
        %1565 = vmatmul.f32.gmra.mxu0 %v1485
        %v1566 = vpop.f32.mrf.mxu0
        %v1567 = vadd.f32 %v1526, %v1566
        %1568 = vmatmul.f32.gmra.mxu0 %v1488
        %v1569 = vpop.f32.mrf.mxu0
        %v1570 = vadd.f32 %v1529, %v1569
        %1571 = vmatmul.f32.gmra.mxu0 %v1491
        %v1572 = vpop.f32.mrf.mxu0
        %v1573 = vadd.f32 %v1532, %v1572
        %1574 = vmatmul.f32.gmra.mxu0 %v1494
        %v1575 = vpop.f32.mrf.mxu0
        %v1576 = vadd.f32 %v1535, %v1575
        %1577 = vmatmul.f32.gmra.mxu0 %v1497
        %v1578 = vpop.f32.mrf.mxu0
        %v1579 = vadd.f32 %v1538, %v1578
        %1580 = vdwg.mxu0
        %1581 = vmatpush.msra.mxu0 %v1280
        %1582 = vmatpush.msra.mxu0 %v1278
        %1583 = vmatpush.msra.mxu0 %v1276
        %1584 = vmatpush.msra.mxu0 %v1274
        %1585 = vmatpush.msra.mxu0 %v1272
        %1586 = vmatpush.msra.mxu0 %v1270
        %1587 = vmatpush.msra.mxu0 %v1268
        %1588 = vmatpush.msra.mxu0 %v1266
        %1589 = vmatpush.msra.mxu0 %v1361
        %1590 = vmatpush.msra.mxu0 %v1359
        %1591 = vmatpush.msra.mxu0 %v1357
        %1592 = vmatpush.msra.mxu0 %v1355
        %1593 = vmatpush.msra.mxu0 %v1353
        %1594 = vmatpush.msra.mxu0 %v1351
        %1595 = vmatpush.msra.mxu0 %v1349
        %1596 = vmatpush.msra.mxu0 %v1347
        %1597 = vmatmul.f32.gmra.mxu0 %v1282
        %v1598 = vpop.f32.mrf.mxu0
        %v1599 = vadd.f32 %v1438, %v1598
        %1600 = vmatmul.f32.gmra.mxu0 %v1284
        %v1601 = vpop.f32.mrf.mxu0
        %v1602 = vadd.f32 %v1443, %v1601
        %1603 = vmatmul.f32.gmra.mxu0 %v1286
        %v1604 = vpop.f32.mrf.mxu0
        %v1605 = vadd.f32 %v1448, %v1604
        %1606 = vmatmul.f32.gmra.mxu0 %v1288
        %v1607 = vpop.f32.mrf.mxu0
        %v1608 = vadd.f32 %v1453, %v1607
        %1609 = vmatmul.f32.gmra.mxu0 %v1290
        %v1610 = vpop.f32.mrf.mxu0
        %v1611 = vadd.f32 %v1458, %v1610
        %1612 = vmatmul.f32.gmra.mxu0 %v1292
        %v1613 = vpop.f32.mrf.mxu0
        %v1614 = vadd.f32 %v1463, %v1613
        %1615 = vmatmul.f32.gmra.mxu0 %v1294
        %v1616 = vpop.f32.mrf.mxu0
        %v1617 = vadd.f32 %v1468, %v1616
        %1618 = vmatmul.f32.gmra.mxu0 %v1296
        %v1619 = vpop.f32.mrf.mxu0
        %v1620 = vadd.f32 %v1473, %v1619
        %1621 = vdwg.mxu0
        %1622 = vmatpush.msra.mxu0 0.0
        %1623 = vmatpush.msra.mxu0 0.0
        %1624 = vmatpush.msra.mxu0 0.0
        %1625 = vmatpush.msra.mxu0 0.0
        %1626 = vmatpush.msra.mxu0 0.0
        %1627 = vmatpush.msra.mxu0 0.0
        %1628 = vmatpush.msra.mxu0 0.0
        %1629 = vmatpush.msra.mxu0 0.0
        %1630 = vmatpush.msra.mxu0 %v1425
        %1631 = vmatpush.msra.mxu0 %v1423
        %1632 = vmatpush.msra.mxu0 %v1421
        %1633 = vmatpush.msra.mxu0 %v1419
        %1634 = vmatpush.msra.mxu0 %v1417
        %1635 = vmatpush.msra.mxu0 %v1415
        %1636 = vmatpush.msra.mxu0 %v1413
        %1637 = vmatpush.msra.mxu0 %v1411
        %1638 = vmatmul.f32.gmra.mxu0 %v1476
        %v1639 = vpop.f32.mrf.mxu0
        %v1640 = vadd.f32 %v1599, %v1639
        %1641 = vmatmul.f32.gmra.mxu0 %v1479
        %v1642 = vpop.f32.mrf.mxu0
        %v1643 = vadd.f32 %v1602, %v1642
        %1644 = vmatmul.f32.gmra.mxu0 %v1482
        %v1645 = vpop.f32.mrf.mxu0
        %v1646 = vadd.f32 %v1605, %v1645
        %1647 = vmatmul.f32.gmra.mxu0 %v1485
        %v1648 = vpop.f32.mrf.mxu0
        %v1649 = vadd.f32 %v1608, %v1648
        %1650 = vmatmul.f32.gmra.mxu0 %v1488
        %v1651 = vpop.f32.mrf.mxu0
        %v1652 = vadd.f32 %v1611, %v1651
        %1653 = vmatmul.f32.gmra.mxu0 %v1491
        %v1654 = vpop.f32.mrf.mxu0
        %v1655 = vadd.f32 %v1614, %v1654
        %1656 = vmatmul.f32.gmra.mxu0 %v1494
        %v1657 = vpop.f32.mrf.mxu0
        %v1658 = vadd.f32 %v1617, %v1657
        %1659 = vmatmul.f32.gmra.mxu0 %v1497
        %v1660 = vpop.f32.mrf.mxu0
        %v1661 = vadd.f32 %v1620, %v1660
        %1662 = vdwg.mxu0
        %v1663 = vsub.f32 0.0, %v634
        %v1664 = vsub.f32 0.0, %v635
        %v1665 = vsub.f32 0.0, %v636
        %v1666 = vsub.f32 0.0, %v637
        %v1667 = vsub.f32 0.0, %v638
        %v1668 = vsub.f32 0.0, %v639
        %v1669 = vsub.f32 0.0, %v640
        %v1670 = vsub.f32 0.0, %v641
        %v1671 = vmax.f32 %v1558, %v1663
        %v1672 = vmax.f32 %v1640, %v1663
        %v1673 = vmax.f32 %v1561, %v1664
        %v1674 = vmax.f32 %v1643, %v1664
        %v1675 = vmax.f32 %v1564, %v1665
        %v1676 = vmax.f32 %v1646, %v1665
        %v1677 = vmax.f32 %v1567, %v1666
        %v1678 = vmax.f32 %v1649, %v1666
        %v1679 = vmax.f32 %v1570, %v1667
        %v1680 = vmax.f32 %v1652, %v1667
        %v1681 = vmax.f32 %v1573, %v1668
        %v1682 = vmax.f32 %v1655, %v1668
        %v1683 = vmax.f32 %v1576, %v1669
        %v1684 = vmax.f32 %v1658, %v1669
        %v1685 = vmax.f32 %v1579, %v1670
        %v1686 = vmax.f32 %v1661, %v1670
        %v1687 = vmin.f32 %v1671, %v634
        %v1688 = vmin.f32 %v1672, %v634
        %v1689 = vmin.f32 %v1673, %v635
        %v1690 = vmin.f32 %v1674, %v635
        %v1691 = vmin.f32 %v1675, %v636
        %v1692 = vmin.f32 %v1676, %v636
        %v1693 = vmin.f32 %v1677, %v637
        %v1694 = vmin.f32 %v1678, %v637
        %v1695 = vmin.f32 %v1679, %v638
        %v1696 = vmin.f32 %v1680, %v638
        %v1697 = vmin.f32 %v1681, %v639
        %v1698 = vmin.f32 %v1682, %v639
        %v1699 = vmin.f32 %v1683, %v640
        %v1700 = vmin.f32 %v1684, %v640
        %v1701 = vmin.f32 %v1685, %v641
        %v1702 = vmin.f32 %v1686, %v641
        %v1703 = vsub.f32 %v1558, %v1687
        %v1704 = vsub.f32 %v1640, %v1688
        %v1705 = vsub.f32 %v1561, %v1689
        %v1706 = vsub.f32 %v1643, %v1690
        %v1707 = vsub.f32 %v1564, %v1691
        %v1708 = vsub.f32 %v1646, %v1692
        %v1709 = vsub.f32 %v1567, %v1693
        %v1710 = vsub.f32 %v1649, %v1694
        %v1711 = vsub.f32 %v1570, %v1695
        %v1712 = vsub.f32 %v1652, %v1696
        %v1713 = vsub.f32 %v1573, %v1697
        %v1714 = vsub.f32 %v1655, %v1698
        %v1715 = vsub.f32 %v1576, %v1699
        %v1716 = vsub.f32 %v1658, %v1700
        %v1717 = vsub.f32 %v1579, %v1701
        %v1718 = vsub.f32 %v1661, %v1702
        %s1719 = scalar_lea.vmem [#allocation7], 256
        %v1720 = vld [vmem:[%s1719] sm:$0xff]
        %v1721 = vld [vmem:[%s1719 + $0x8] sm:$0xff]
        %v1722 = vld [vmem:[%s1719 + $0x10] sm:$0xff]
        %v1723 = vld [vmem:[%s1719 + $0x18] sm:$0xff]
        %v1724 = vld [vmem:[%s1719 + $0x20] sm:$0xff]
        %v1725 = vld [vmem:[%s1719 + $0x28] sm:$0xff]
        %v1726 = vld [vmem:[%s1719 + $0x30] sm:$0xff]
        %v1727 = vld [vmem:[%s1719 + $0x38] sm:$0xff]
        %v1728 = vld [vmem:[%s1719 + $0x40] sm:$0xff]
        %v1729 = vld [vmem:[%s1719 + $0x48] sm:$0xff]
        %v1730 = vld [vmem:[%s1719 + $0x50] sm:$0xff]
        %v1731 = vld [vmem:[%s1719 + $0x58] sm:$0xff]
        %v1732 = vld [vmem:[%s1719 + $0x60] sm:$0xff]
        %v1733 = vld [vmem:[%s1719 + $0x68] sm:$0xff]
        %v1734 = vld [vmem:[%s1719 + $0x70] sm:$0xff]
        %v1735 = vld [vmem:[%s1719 + $0x78] sm:$0xff]
        %1736 = vrot.lane.b32.xlu0 %v1703, 1
        %v1737 = vpop.permute.xlu0 %1736
        %1738 = vrot.lane.b32.xlu0 %v1705, 1
        %v1739 = vpop.permute.xlu0 %1738
        %1740 = vrot.lane.b32.xlu0 %v1707, 1
        %v1741 = vpop.permute.xlu0 %1740
        %1742 = vrot.lane.b32.xlu0 %v1709, 1
        %v1743 = vpop.permute.xlu0 %1742
        %1744 = vrot.lane.b32.xlu0 %v1711, 1
        %v1745 = vpop.permute.xlu0 %1744
        %1746 = vrot.lane.b32.xlu0 %v1713, 1
        %v1747 = vpop.permute.xlu0 %1746
        %1748 = vrot.lane.b32.xlu0 %v1715, 1
        %v1749 = vpop.permute.xlu0 %1748
        %1750 = vrot.lane.b32.xlu0 %v1717, 1
        %v1751 = vpop.permute.xlu0 %1750
        %1752 = vrot.lane.b32.xlu0 %v1704, 1
        %v1753 = vpop.permute.xlu0 %1752
        %1754 = vrot.lane.b32.xlu0 %v1706, 1
        %v1755 = vpop.permute.xlu0 %1754
        %1756 = vrot.lane.b32.xlu0 %v1708, 1
        %v1757 = vpop.permute.xlu0 %1756
        %1758 = vrot.lane.b32.xlu0 %v1710, 1
        %v1759 = vpop.permute.xlu0 %1758
        %1760 = vrot.lane.b32.xlu0 %v1712, 1
        %v1761 = vpop.permute.xlu0 %1760
        %1762 = vrot.lane.b32.xlu0 %v1714, 1
        %v1763 = vpop.permute.xlu0 %1762
        %1764 = vrot.lane.b32.xlu0 %v1716, 1
        %v1765 = vpop.permute.xlu0 %1764
        %1766 = vrot.lane.b32.xlu0 %v1718, 1
        %v1767 = vpop.permute.xlu0 %1766
        %1768 = vrot.lane.b32.xlu0 %v1558, 1
        %v1769 = vpop.permute.xlu0 %1768
        %1770 = vrot.lane.b32.xlu0 %v1561, 1
        %v1771 = vpop.permute.xlu0 %1770
        %1772 = vrot.lane.b32.xlu0 %v1564, 1
        %v1773 = vpop.permute.xlu0 %1772
        %1774 = vrot.lane.b32.xlu0 %v1567, 1
        %v1775 = vpop.permute.xlu0 %1774
        %1776 = vrot.lane.b32.xlu0 %v1570, 1
        %v1777 = vpop.permute.xlu0 %1776
        %1778 = vrot.lane.b32.xlu0 %v1573, 1
        %v1779 = vpop.permute.xlu0 %1778
        %1780 = vrot.lane.b32.xlu0 %v1576, 1
        %v1781 = vpop.permute.xlu0 %1780
        %1782 = vrot.lane.b32.xlu0 %v1579, 1
        %v1783 = vpop.permute.xlu0 %1782
        %1784 = vrot.lane.b32.xlu0 %v1640, 1
        %v1785 = vpop.permute.xlu0 %1784
        %1786 = vrot.lane.b32.xlu0 %v1643, 1
        %v1787 = vpop.permute.xlu0 %1786
        %1788 = vrot.lane.b32.xlu0 %v1646, 1
        %v1789 = vpop.permute.xlu0 %1788
        %1790 = vrot.lane.b32.xlu0 %v1649, 1
        %v1791 = vpop.permute.xlu0 %1790
        %1792 = vrot.lane.b32.xlu0 %v1652, 1
        %v1793 = vpop.permute.xlu0 %1792
        %1794 = vrot.lane.b32.xlu0 %v1655, 1
        %v1795 = vpop.permute.xlu0 %1794
        %1796 = vrot.lane.b32.xlu0 %v1658, 1
        %v1797 = vpop.permute.xlu0 %1796
        %1798 = vrot.lane.b32.xlu0 %v1661, 1
        %v1799 = vpop.permute.xlu0 %1798
        %v1800 = vsel %vm657, %v1769, %v1785
        %v1801 = vsel %vm657, %v1771, %v1787
        %v1802 = vsel %vm657, %v1773, %v1789
        %v1803 = vsel %vm657, %v1775, %v1791
        %v1804 = vsel %vm657, %v1777, %v1793
        %v1805 = vsel %vm657, %v1779, %v1795
        %v1806 = vsel %vm657, %v1781, %v1797
        %v1807 = vsel %vm657, %v1783, %v1799
        %v1808 = vsel %vm657, %v1753, %v1769
        %v1809 = vsel %vm657, %v1755, %v1771
        %v1810 = vsel %vm657, %v1757, %v1773
        %v1811 = vsel %vm657, %v1759, %v1775
        %v1812 = vsel %vm657, %v1761, %v1777
        %v1813 = vsel %vm657, %v1763, %v1779
        %v1814 = vsel %vm657, %v1765, %v1781
        %v1815 = vsel %vm657, %v1767, %v1783
        %v1816 = vsel %vm657, %v1737, %v1753
        %v1817 = vsel %vm657, %v1739, %v1755
        %v1818 = vsel %vm657, %v1741, %v1757
        %v1819 = vsel %vm657, %v1743, %v1759
        %v1820 = vsel %vm657, %v1745, %v1761
        %v1821 = vsel %vm657, %v1747, %v1763
        %v1822 = vsel %vm657, %v1749, %v1765
        %v1823 = vsel %vm657, %v1751, %v1767
        %v1824 = vsel %vm657, %v1785, %v1737
        %v1825 = vsel %vm657, %v1787, %v1739
        %v1826 = vsel %vm657, %v1789, %v1741
        %v1827 = vsel %vm657, %v1791, %v1743
        %v1828 = vsel %vm657, %v1793, %v1745
        %v1829 = vsel %vm657, %v1795, %v1747
        %v1830 = vsel %vm657, %v1797, %v1749
        %v1831 = vsel %vm657, %v1799, %v1751
        %v1832 = vperm.slane %v614, 4
        %v1833 = vperm.slane %v614, 6
        %v1836 = vperm.slane %v1832, 0
        %v1837 = vperm.slane %v1833, 0
        %v1838 = vmul.f32 %v665, %v1824
        %v1839 = vmul.f32 %v666, %v1816
        %v1840 = vmul.f32 %v1836, %v1808
        %v1841 = vmul.f32 %v1837, %v1800
        %v1842 = vmul.f32 %v665, %v1825
        %v1843 = vmul.f32 %v666, %v1817
        %v1844 = vmul.f32 %v1836, %v1809
        %v1845 = vmul.f32 %v1837, %v1801
        %v1846 = vmul.f32 %v665, %v1826
        %v1847 = vmul.f32 %v666, %v1818
        %v1848 = vmul.f32 %v1836, %v1810
        %v1849 = vmul.f32 %v1837, %v1802
        %v1850 = vmul.f32 %v665, %v1827
        %v1851 = vmul.f32 %v666, %v1819
        %v1852 = vmul.f32 %v1836, %v1811
        %v1853 = vmul.f32 %v1837, %v1803
        %v1854 = vmul.f32 %v665, %v1828
        %v1855 = vmul.f32 %v666, %v1820
        %v1856 = vmul.f32 %v1836, %v1812
        %v1857 = vmul.f32 %v1837, %v1804
        %v1858 = vmul.f32 %v665, %v1829
        %v1859 = vmul.f32 %v666, %v1821
        %v1860 = vmul.f32 %v1836, %v1813
        %v1861 = vmul.f32 %v1837, %v1805
        %v1862 = vmul.f32 %v665, %v1830
        %v1863 = vmul.f32 %v666, %v1822
        %v1864 = vmul.f32 %v1836, %v1814
        %v1865 = vmul.f32 %v1837, %v1806
        %v1866 = vmul.f32 %v665, %v1831
        %v1867 = vmul.f32 %v666, %v1823
        %v1868 = vmul.f32 %v1836, %v1815
        %v1869 = vmul.f32 %v1837, %v1807
        %1870 = vrot.lane.b32.xlu0 %v1703, 127
        %v1871 = vpop.permute.xlu0 %1870
        %1872 = vrot.lane.b32.xlu0 %v1705, 127
        %v1873 = vpop.permute.xlu0 %1872
        %1874 = vrot.lane.b32.xlu0 %v1707, 127
        %v1875 = vpop.permute.xlu0 %1874
        %1876 = vrot.lane.b32.xlu0 %v1709, 127
        %v1877 = vpop.permute.xlu0 %1876
        %1878 = vrot.lane.b32.xlu0 %v1711, 127
        %v1879 = vpop.permute.xlu0 %1878
        %1880 = vrot.lane.b32.xlu0 %v1713, 127
        %v1881 = vpop.permute.xlu0 %1880
        %1882 = vrot.lane.b32.xlu0 %v1715, 127
        %v1883 = vpop.permute.xlu0 %1882
        %1884 = vrot.lane.b32.xlu0 %v1717, 127
        %v1885 = vpop.permute.xlu0 %1884
        %1886 = vrot.lane.b32.xlu0 %v1704, 127
        %v1887 = vpop.permute.xlu0 %1886
        %1888 = vrot.lane.b32.xlu0 %v1706, 127
        %v1889 = vpop.permute.xlu0 %1888
        %1890 = vrot.lane.b32.xlu0 %v1708, 127
        %v1891 = vpop.permute.xlu0 %1890
        %1892 = vrot.lane.b32.xlu0 %v1710, 127
        %v1893 = vpop.permute.xlu0 %1892
        %1894 = vrot.lane.b32.xlu0 %v1712, 127
        %v1895 = vpop.permute.xlu0 %1894
        %1896 = vrot.lane.b32.xlu0 %v1714, 127
        %v1897 = vpop.permute.xlu0 %1896
        %1898 = vrot.lane.b32.xlu0 %v1716, 127
        %v1899 = vpop.permute.xlu0 %1898
        %1900 = vrot.lane.b32.xlu0 %v1718, 127
        %v1901 = vpop.permute.xlu0 %1900
        %1902 = vrot.lane.b32.xlu0 %v1558, 127
        %v1903 = vpop.permute.xlu0 %1902
        %1904 = vrot.lane.b32.xlu0 %v1561, 127
        %v1905 = vpop.permute.xlu0 %1904
        %1906 = vrot.lane.b32.xlu0 %v1564, 127
        %v1907 = vpop.permute.xlu0 %1906
        %1908 = vrot.lane.b32.xlu0 %v1567, 127
        %v1909 = vpop.permute.xlu0 %1908
        %1910 = vrot.lane.b32.xlu0 %v1570, 127
        %v1911 = vpop.permute.xlu0 %1910
        %1912 = vrot.lane.b32.xlu0 %v1573, 127
        %v1913 = vpop.permute.xlu0 %1912
        %1914 = vrot.lane.b32.xlu0 %v1576, 127
        %v1915 = vpop.permute.xlu0 %1914
        %1916 = vrot.lane.b32.xlu0 %v1579, 127
        %v1917 = vpop.permute.xlu0 %1916
        %1918 = vrot.lane.b32.xlu0 %v1640, 127
        %v1919 = vpop.permute.xlu0 %1918
        %1920 = vrot.lane.b32.xlu0 %v1643, 127
        %v1921 = vpop.permute.xlu0 %1920
        %1922 = vrot.lane.b32.xlu0 %v1646, 127
        %v1923 = vpop.permute.xlu0 %1922
        %1924 = vrot.lane.b32.xlu0 %v1649, 127
        %v1925 = vpop.permute.xlu0 %1924
        %1926 = vrot.lane.b32.xlu0 %v1652, 127
        %v1927 = vpop.permute.xlu0 %1926
        %1928 = vrot.lane.b32.xlu0 %v1655, 127
        %v1929 = vpop.permute.xlu0 %1928
        %1930 = vrot.lane.b32.xlu0 %v1658, 127
        %v1931 = vpop.permute.xlu0 %1930
        %1932 = vrot.lane.b32.xlu0 %v1661, 127
        %v1933 = vpop.permute.xlu0 %1932
        %v1934 = vsel %vm673, %v1903, %v1919
        %v1935 = vsel %vm673, %v1905, %v1921
        %v1936 = vsel %vm673, %v1907, %v1923
        %v1937 = vsel %vm673, %v1909, %v1925
        %v1938 = vsel %vm673, %v1911, %v1927
        %v1939 = vsel %vm673, %v1913, %v1929
        %v1940 = vsel %vm673, %v1915, %v1931
        %v1941 = vsel %vm673, %v1917, %v1933
        %v1942 = vsel %vm673, %v1887, %v1903
        %v1943 = vsel %vm673, %v1889, %v1905
        %v1944 = vsel %vm673, %v1891, %v1907
        %v1945 = vsel %vm673, %v1893, %v1909
        %v1946 = vsel %vm673, %v1895, %v1911
        %v1947 = vsel %vm673, %v1897, %v1913
        %v1948 = vsel %vm673, %v1899, %v1915
        %v1949 = vsel %vm673, %v1901, %v1917
        %v1950 = vsel %vm673, %v1871, %v1887
        %v1951 = vsel %vm673, %v1873, %v1889
        %v1952 = vsel %vm673, %v1875, %v1891
        %v1953 = vsel %vm673, %v1877, %v1893
        %v1954 = vsel %vm673, %v1879, %v1895
        %v1955 = vsel %vm673, %v1881, %v1897
        %v1956 = vsel %vm673, %v1883, %v1899
        %v1957 = vsel %vm673, %v1885, %v1901
        %v1958 = vsel %vm673, %v1919, %v1871
        %v1959 = vsel %vm673, %v1921, %v1873
        %v1960 = vsel %vm673, %v1923, %v1875
        %v1961 = vsel %vm673, %v1925, %v1877
        %v1962 = vsel %vm673, %v1927, %v1879
        %v1963 = vsel %vm673, %v1929, %v1881
        %v1964 = vsel %vm673, %v1931, %v1883
        %v1965 = vsel %vm673, %v1933, %v1885
        %v1966 = vperm.slane %v614, 5
        %v1967 = vperm.slane %v614, 7
        %v1970 = vperm.slane %v1966, 1
        %v1971 = vperm.slane %v1967, 1
        %v1972 = vmul.f32 %v680, %v1950
        %v1973 = vmul.f32 %v681, %v1942
        %v1974 = vmul.f32 %v1970, %v1934
        %v1975 = vmul.f32 %v1971, %v1958
        %v1976 = vmul.f32 %v680, %v1951
        %v1977 = vmul.f32 %v681, %v1943
        %v1978 = vmul.f32 %v1970, %v1935
        %v1979 = vmul.f32 %v1971, %v1959
        %v1980 = vmul.f32 %v680, %v1952
        %v1981 = vmul.f32 %v681, %v1944
        %v1982 = vmul.f32 %v1970, %v1936
        %v1983 = vmul.f32 %v1971, %v1960
        %v1984 = vmul.f32 %v680, %v1953
        %v1985 = vmul.f32 %v681, %v1945
        %v1986 = vmul.f32 %v1970, %v1937
        %v1987 = vmul.f32 %v1971, %v1961
        %v1988 = vmul.f32 %v680, %v1954
        %v1989 = vmul.f32 %v681, %v1946
        %v1990 = vmul.f32 %v1970, %v1938
        %v1991 = vmul.f32 %v1971, %v1962
        %v1992 = vmul.f32 %v680, %v1955
        %v1993 = vmul.f32 %v681, %v1947
        %v1994 = vmul.f32 %v1970, %v1939
        %v1995 = vmul.f32 %v1971, %v1963
        %v1996 = vmul.f32 %v680, %v1956
        %v1997 = vmul.f32 %v681, %v1948
        %v1998 = vmul.f32 %v1970, %v1940
        %v1999 = vmul.f32 %v1971, %v1964
        %v2000 = vmul.f32 %v680, %v1957
        %v2001 = vmul.f32 %v681, %v1949
        %v2002 = vmul.f32 %v1970, %v1941
        %v2003 = vmul.f32 %v1971, %v1965
        %s2004 = scalar_lea.vmem %s7, 128
        %v2005 = vld [vmem:[%s2004] sm:$0xff]
        %v2006 = vld [vmem:[%s2004 + $0x8] sm:$0xff]
        %v2007 = vld [vmem:[%s2004 + $0x10] sm:$0xff]
        %v2008 = vld [vmem:[%s2004 + $0x18] sm:$0xff]
        %v2009 = vld [vmem:[%s2004 + $0x20] sm:$0xff]
        %v2010 = vld [vmem:[%s2004 + $0x28] sm:$0xff]
        %v2011 = vld [vmem:[%s2004 + $0x30] sm:$0xff]
        %v2012 = vld [vmem:[%s2004 + $0x38] sm:$0xff]
        %2014 = vset.pattern.permute.xlu0 0
        %2015 = vperm.xlu0 %2014, %v2005
        %v2016 = vpop.permute.xlu0 %2015
        %2019 = vset.pattern.permute.xlu0 0
        %2020 = vperm.xlu0 %2019, %v2006
        %v2021 = vpop.permute.xlu0 %2020
        %2024 = vset.pattern.permute.xlu0 0
        %2025 = vperm.xlu0 %2024, %v2007
        %v2026 = vpop.permute.xlu0 %2025
        %2029 = vset.pattern.permute.xlu0 0
        %2030 = vperm.xlu0 %2029, %v2008
        %v2031 = vpop.permute.xlu0 %2030
        %2034 = vset.pattern.permute.xlu0 0
        %2035 = vperm.xlu0 %2034, %v2009
        %v2036 = vpop.permute.xlu0 %2035
        %2039 = vset.pattern.permute.xlu0 0
        %2040 = vperm.xlu0 %2039, %v2010
        %v2041 = vpop.permute.xlu0 %2040
        %2044 = vset.pattern.permute.xlu0 0
        %2045 = vperm.xlu0 %2044, %v2011
        %v2046 = vpop.permute.xlu0 %2045
        %2049 = vset.pattern.permute.xlu0 0
        %2050 = vperm.xlu0 %2049, %v2012
        %v2051 = vpop.permute.xlu0 %2050
        %v2054 = vsel %vm1076, %v1721, 0
        %v2057 = vsel %vm1076, %v1723, 0
        %v2060 = vsel %vm1076, %v1725, 0
        %v2063 = vsel %vm1076, %v1727, 0
        %v2066 = vsel %vm1076, %v1729, 0
        %v2069 = vsel %vm1076, %v1731, 0
        %v2072 = vsel %vm1076, %v1733, 0
        %v2075 = vsel %vm1076, %v1735, 0
        %2077 = vmatpush.msra.mxu0 %v1717
        %2078 = vmatpush.msra.mxu0 %v1715
        %2079 = vmatpush.msra.mxu0 %v1713
        %2080 = vmatpush.msra.mxu0 %v1711
        %2081 = vmatpush.msra.mxu0 %v1709
        %2082 = vmatpush.msra.mxu0 %v1707
        %2083 = vmatpush.msra.mxu0 %v1705
        %2084 = vmatpush.msra.mxu0 %v1703
        %2085 = vmatpush.msra.mxu0 %v1866
        %2086 = vmatpush.msra.mxu0 %v1862
        %2087 = vmatpush.msra.mxu0 %v1858
        %2088 = vmatpush.msra.mxu0 %v1854
        %2089 = vmatpush.msra.mxu0 %v1850
        %2090 = vmatpush.msra.mxu0 %v1846
        %2091 = vmatpush.msra.mxu0 %v1842
        %2092 = vmatpush.msra.mxu0 %v1838
        %2093 = vmatmul.f32.gmra.mxu0 %v1720
        %v2094 = vpop.f32.mrf.mxu0
        %v2095 = vadd.f32 %v2016, %v2094
        %2096 = vmatmul.f32.gmra.mxu0 %v1722
        %v2097 = vpop.f32.mrf.mxu0
        %v2098 = vadd.f32 %v2021, %v2097
        %2099 = vmatmul.f32.gmra.mxu0 %v1724
        %v2100 = vpop.f32.mrf.mxu0
        %v2101 = vadd.f32 %v2026, %v2100
        %2102 = vmatmul.f32.gmra.mxu0 %v1726
        %v2103 = vpop.f32.mrf.mxu0
        %v2104 = vadd.f32 %v2031, %v2103
        %2105 = vmatmul.f32.gmra.mxu0 %v1728
        %v2106 = vpop.f32.mrf.mxu0
        %v2107 = vadd.f32 %v2036, %v2106
        %2108 = vmatmul.f32.gmra.mxu0 %v1730
        %v2109 = vpop.f32.mrf.mxu0
        %v2110 = vadd.f32 %v2041, %v2109
        %2111 = vmatmul.f32.gmra.mxu0 %v1732
        %v2112 = vpop.f32.mrf.mxu0
        %v2113 = vadd.f32 %v2046, %v2112
        %2114 = vmatmul.f32.gmra.mxu0 %v1734
        %v2115 = vpop.f32.mrf.mxu0
        %v2116 = vadd.f32 %v2051, %v2115
        %2117 = vdwg.mxu0
        %2118 = vmatpush.msra.mxu0 0.0
        %2119 = vmatpush.msra.mxu0 0.0
        %2120 = vmatpush.msra.mxu0 0.0
        %2121 = vmatpush.msra.mxu0 0.0
        %2122 = vmatpush.msra.mxu0 0.0
        %2123 = vmatpush.msra.mxu0 0.0
        %2124 = vmatpush.msra.mxu0 0.0
        %2125 = vmatpush.msra.mxu0 0.0
        %2126 = vmatpush.msra.mxu0 %v2000
        %2127 = vmatpush.msra.mxu0 %v1996
        %2128 = vmatpush.msra.mxu0 %v1992
        %2129 = vmatpush.msra.mxu0 %v1988
        %2130 = vmatpush.msra.mxu0 %v1984
        %2131 = vmatpush.msra.mxu0 %v1980
        %2132 = vmatpush.msra.mxu0 %v1976
        %2133 = vmatpush.msra.mxu0 %v1972
        %2134 = vmatmul.f32.gmra.mxu0 %v2054
        %v2135 = vpop.f32.mrf.mxu0
        %v2136 = vadd.f32 %v2095, %v2135
        %2137 = vmatmul.f32.gmra.mxu0 %v2057
        %v2138 = vpop.f32.mrf.mxu0
        %v2139 = vadd.f32 %v2098, %v2138
        %2140 = vmatmul.f32.gmra.mxu0 %v2060
        %v2141 = vpop.f32.mrf.mxu0
        %v2142 = vadd.f32 %v2101, %v2141
        %2143 = vmatmul.f32.gmra.mxu0 %v2063
        %v2144 = vpop.f32.mrf.mxu0
        %v2145 = vadd.f32 %v2104, %v2144
        %2146 = vmatmul.f32.gmra.mxu0 %v2066
        %v2147 = vpop.f32.mrf.mxu0
        %v2148 = vadd.f32 %v2107, %v2147
        %2149 = vmatmul.f32.gmra.mxu0 %v2069
        %v2150 = vpop.f32.mrf.mxu0
        %v2151 = vadd.f32 %v2110, %v2150
        %2152 = vmatmul.f32.gmra.mxu0 %v2072
        %v2153 = vpop.f32.mrf.mxu0
        %v2154 = vadd.f32 %v2113, %v2153
        %2155 = vmatmul.f32.gmra.mxu0 %v2075
        %v2156 = vpop.f32.mrf.mxu0
        %v2157 = vadd.f32 %v2116, %v2156
        %2158 = vdwg.mxu0
        %2159 = vmatpush.msra.mxu0 %v1718
        %2160 = vmatpush.msra.mxu0 %v1716
        %2161 = vmatpush.msra.mxu0 %v1714
        %2162 = vmatpush.msra.mxu0 %v1712
        %2163 = vmatpush.msra.mxu0 %v1710
        %2164 = vmatpush.msra.mxu0 %v1708
        %2165 = vmatpush.msra.mxu0 %v1706
        %2166 = vmatpush.msra.mxu0 %v1704
        %2167 = vmatpush.msra.mxu0 %v1867
        %2168 = vmatpush.msra.mxu0 %v1863
        %2169 = vmatpush.msra.mxu0 %v1859
        %2170 = vmatpush.msra.mxu0 %v1855
        %2171 = vmatpush.msra.mxu0 %v1851
        %2172 = vmatpush.msra.mxu0 %v1847
        %2173 = vmatpush.msra.mxu0 %v1843
        %2174 = vmatpush.msra.mxu0 %v1839
        %2175 = vmatmul.f32.gmra.mxu0 %v1720
        %v2176 = vpop.f32.mrf.mxu0
        %v2177 = vadd.f32 %v2016, %v2176
        %2178 = vmatmul.f32.gmra.mxu0 %v1722
        %v2179 = vpop.f32.mrf.mxu0
        %v2180 = vadd.f32 %v2021, %v2179
        %2181 = vmatmul.f32.gmra.mxu0 %v1724
        %v2182 = vpop.f32.mrf.mxu0
        %v2183 = vadd.f32 %v2026, %v2182
        %2184 = vmatmul.f32.gmra.mxu0 %v1726
        %v2185 = vpop.f32.mrf.mxu0
        %v2186 = vadd.f32 %v2031, %v2185
        %2187 = vmatmul.f32.gmra.mxu0 %v1728
        %v2188 = vpop.f32.mrf.mxu0
        %v2189 = vadd.f32 %v2036, %v2188
        %2190 = vmatmul.f32.gmra.mxu0 %v1730
        %v2191 = vpop.f32.mrf.mxu0
        %v2192 = vadd.f32 %v2041, %v2191
        %2193 = vmatmul.f32.gmra.mxu0 %v1732
        %v2194 = vpop.f32.mrf.mxu0
        %v2195 = vadd.f32 %v2046, %v2194
        %2196 = vmatmul.f32.gmra.mxu0 %v1734
        %v2197 = vpop.f32.mrf.mxu0
        %v2198 = vadd.f32 %v2051, %v2197
        %2199 = vdwg.mxu0
        %2200 = vmatpush.msra.mxu0 0.0
        %2201 = vmatpush.msra.mxu0 0.0
        %2202 = vmatpush.msra.mxu0 0.0
        %2203 = vmatpush.msra.mxu0 0.0
        %2204 = vmatpush.msra.mxu0 0.0
        %2205 = vmatpush.msra.mxu0 0.0
        %2206 = vmatpush.msra.mxu0 0.0
        %2207 = vmatpush.msra.mxu0 0.0
        %2208 = vmatpush.msra.mxu0 %v2001
        %2209 = vmatpush.msra.mxu0 %v1997
        %2210 = vmatpush.msra.mxu0 %v1993
        %2211 = vmatpush.msra.mxu0 %v1989
        %2212 = vmatpush.msra.mxu0 %v1985
        %2213 = vmatpush.msra.mxu0 %v1981
        %2214 = vmatpush.msra.mxu0 %v1977
        %2215 = vmatpush.msra.mxu0 %v1973
        %2216 = vmatmul.f32.gmra.mxu0 %v2054
        %v2217 = vpop.f32.mrf.mxu0
        %v2218 = vadd.f32 %v2177, %v2217
        %2219 = vmatmul.f32.gmra.mxu0 %v2057
        %v2220 = vpop.f32.mrf.mxu0
        %v2221 = vadd.f32 %v2180, %v2220
        %2222 = vmatmul.f32.gmra.mxu0 %v2060
        %v2223 = vpop.f32.mrf.mxu0
        %v2224 = vadd.f32 %v2183, %v2223
        %2225 = vmatmul.f32.gmra.mxu0 %v2063
        %v2226 = vpop.f32.mrf.mxu0
        %v2227 = vadd.f32 %v2186, %v2226
        %2228 = vmatmul.f32.gmra.mxu0 %v2066
        %v2229 = vpop.f32.mrf.mxu0
        %v2230 = vadd.f32 %v2189, %v2229
        %2231 = vmatmul.f32.gmra.mxu0 %v2069
        %v2232 = vpop.f32.mrf.mxu0
        %v2233 = vadd.f32 %v2192, %v2232
        %2234 = vmatmul.f32.gmra.mxu0 %v2072
        %v2235 = vpop.f32.mrf.mxu0
        %v2236 = vadd.f32 %v2195, %v2235
        %2237 = vmatmul.f32.gmra.mxu0 %v2075
        %v2238 = vpop.f32.mrf.mxu0
        %v2239 = vadd.f32 %v2198, %v2238
        %2240 = vdwg.mxu0
        %2241 = vmatpush.msra.mxu0 %v1579
        %2242 = vmatpush.msra.mxu0 %v1576
        %2243 = vmatpush.msra.mxu0 %v1573
        %2244 = vmatpush.msra.mxu0 %v1570
        %2245 = vmatpush.msra.mxu0 %v1567
        %2246 = vmatpush.msra.mxu0 %v1564
        %2247 = vmatpush.msra.mxu0 %v1561
        %2248 = vmatpush.msra.mxu0 %v1558
        %2249 = vmatpush.msra.mxu0 %v1868
        %2250 = vmatpush.msra.mxu0 %v1864
        %2251 = vmatpush.msra.mxu0 %v1860
        %2252 = vmatpush.msra.mxu0 %v1856
        %2253 = vmatpush.msra.mxu0 %v1852
        %2254 = vmatpush.msra.mxu0 %v1848
        %2255 = vmatpush.msra.mxu0 %v1844
        %2256 = vmatpush.msra.mxu0 %v1840
        %2257 = vmatmul.f32.gmra.mxu0 %v1720
        %v2258 = vpop.f32.mrf.mxu0
        %v2259 = vadd.f32 %v2016, %v2258
        %2260 = vmatmul.f32.gmra.mxu0 %v1722
        %v2261 = vpop.f32.mrf.mxu0
        %v2262 = vadd.f32 %v2021, %v2261
        %2263 = vmatmul.f32.gmra.mxu0 %v1724
        %v2264 = vpop.f32.mrf.mxu0
        %v2265 = vadd.f32 %v2026, %v2264
        %2266 = vmatmul.f32.gmra.mxu0 %v1726
        %v2267 = vpop.f32.mrf.mxu0
        %v2268 = vadd.f32 %v2031, %v2267
        %2269 = vmatmul.f32.gmra.mxu0 %v1728
        %v2270 = vpop.f32.mrf.mxu0
        %v2271 = vadd.f32 %v2036, %v2270
        %2272 = vmatmul.f32.gmra.mxu0 %v1730
        %v2273 = vpop.f32.mrf.mxu0
        %v2274 = vadd.f32 %v2041, %v2273
        %2275 = vmatmul.f32.gmra.mxu0 %v1732
        %v2276 = vpop.f32.mrf.mxu0
        %v2277 = vadd.f32 %v2046, %v2276
        %2278 = vmatmul.f32.gmra.mxu0 %v1734
        %v2279 = vpop.f32.mrf.mxu0
        %v2280 = vadd.f32 %v2051, %v2279
        %2281 = vdwg.mxu0
        %2282 = vmatpush.msra.mxu0 0.0
        %2283 = vmatpush.msra.mxu0 0.0
        %2284 = vmatpush.msra.mxu0 0.0
        %2285 = vmatpush.msra.mxu0 0.0
        %2286 = vmatpush.msra.mxu0 0.0
        %2287 = vmatpush.msra.mxu0 0.0
        %2288 = vmatpush.msra.mxu0 0.0
        %2289 = vmatpush.msra.mxu0 0.0
        %2290 = vmatpush.msra.mxu0 %v2002
        %2291 = vmatpush.msra.mxu0 %v1998
        %2292 = vmatpush.msra.mxu0 %v1994
        %2293 = vmatpush.msra.mxu0 %v1990
        %2294 = vmatpush.msra.mxu0 %v1986
        %2295 = vmatpush.msra.mxu0 %v1982
        %2296 = vmatpush.msra.mxu0 %v1978
        %2297 = vmatpush.msra.mxu0 %v1974
        %2298 = vmatmul.f32.gmra.mxu0 %v2054
        %v2299 = vpop.f32.mrf.mxu0
        %v2300 = vadd.f32 %v2259, %v2299
        %2301 = vmatmul.f32.gmra.mxu0 %v2057
        %v2302 = vpop.f32.mrf.mxu0
        %v2303 = vadd.f32 %v2262, %v2302
        %2304 = vmatmul.f32.gmra.mxu0 %v2060
        %v2305 = vpop.f32.mrf.mxu0
        %v2306 = vadd.f32 %v2265, %v2305
        %2307 = vmatmul.f32.gmra.mxu0 %v2063
        %v2308 = vpop.f32.mrf.mxu0
        %v2309 = vadd.f32 %v2268, %v2308
        %2310 = vmatmul.f32.gmra.mxu0 %v2066
        %v2311 = vpop.f32.mrf.mxu0
        %v2312 = vadd.f32 %v2271, %v2311
        %2313 = vmatmul.f32.gmra.mxu0 %v2069
        %v2314 = vpop.f32.mrf.mxu0
        %v2315 = vadd.f32 %v2274, %v2314
        %2316 = vmatmul.f32.gmra.mxu0 %v2072
        %v2317 = vpop.f32.mrf.mxu0
        %v2318 = vadd.f32 %v2277, %v2317
        %2319 = vmatmul.f32.gmra.mxu0 %v2075
        %v2320 = vpop.f32.mrf.mxu0
        %v2321 = vadd.f32 %v2280, %v2320
        %2322 = vdwg.mxu0
        %2323 = vmatpush.msra.mxu0 %v1661
        %2324 = vmatpush.msra.mxu0 %v1658
        %2325 = vmatpush.msra.mxu0 %v1655
        %2326 = vmatpush.msra.mxu0 %v1652
        %2327 = vmatpush.msra.mxu0 %v1649
        %2328 = vmatpush.msra.mxu0 %v1646
        %2329 = vmatpush.msra.mxu0 %v1643
        %2330 = vmatpush.msra.mxu0 %v1640
        %2331 = vmatpush.msra.mxu0 %v1869
        %2332 = vmatpush.msra.mxu0 %v1865
        %2333 = vmatpush.msra.mxu0 %v1861
        %2334 = vmatpush.msra.mxu0 %v1857
        %2335 = vmatpush.msra.mxu0 %v1853
        %2336 = vmatpush.msra.mxu0 %v1849
        %2337 = vmatpush.msra.mxu0 %v1845
        %2338 = vmatpush.msra.mxu0 %v1841
        %2339 = vmatmul.f32.gmra.mxu0 %v1720
        %v2340 = vpop.f32.mrf.mxu0
        %v2341 = vadd.f32 %v2016, %v2340
        %2342 = vmatmul.f32.gmra.mxu0 %v1722
        %v2343 = vpop.f32.mrf.mxu0
        %v2344 = vadd.f32 %v2021, %v2343
        %2345 = vmatmul.f32.gmra.mxu0 %v1724
        %v2346 = vpop.f32.mrf.mxu0
        %v2347 = vadd.f32 %v2026, %v2346
        %2348 = vmatmul.f32.gmra.mxu0 %v1726
        %v2349 = vpop.f32.mrf.mxu0
        %v2350 = vadd.f32 %v2031, %v2349
        %2351 = vmatmul.f32.gmra.mxu0 %v1728
        %v2352 = vpop.f32.mrf.mxu0
        %v2353 = vadd.f32 %v2036, %v2352
        %2354 = vmatmul.f32.gmra.mxu0 %v1730
        %v2355 = vpop.f32.mrf.mxu0
        %v2356 = vadd.f32 %v2041, %v2355
        %2357 = vmatmul.f32.gmra.mxu0 %v1732
        %v2358 = vpop.f32.mrf.mxu0
        %v2359 = vadd.f32 %v2046, %v2358
        %2360 = vmatmul.f32.gmra.mxu0 %v1734
        %v2361 = vpop.f32.mrf.mxu0
        %v2362 = vadd.f32 %v2051, %v2361
        %2363 = vdwg.mxu0
        %2364 = vmatpush.msra.mxu0 0.0
        %2365 = vmatpush.msra.mxu0 0.0
        %2366 = vmatpush.msra.mxu0 0.0
        %2367 = vmatpush.msra.mxu0 0.0
        %2368 = vmatpush.msra.mxu0 0.0
        %2369 = vmatpush.msra.mxu0 0.0
        %2370 = vmatpush.msra.mxu0 0.0
        %2371 = vmatpush.msra.mxu0 0.0
        %2372 = vmatpush.msra.mxu0 %v2003
        %2373 = vmatpush.msra.mxu0 %v1999
        %2374 = vmatpush.msra.mxu0 %v1995
        %2375 = vmatpush.msra.mxu0 %v1991
        %2376 = vmatpush.msra.mxu0 %v1987
        %2377 = vmatpush.msra.mxu0 %v1983
        %2378 = vmatpush.msra.mxu0 %v1979
        %2379 = vmatpush.msra.mxu0 %v1975
        %2380 = vmatmul.f32.gmra.mxu0 %v2054
        %v2381 = vpop.f32.mrf.mxu0
        %v2382 = vadd.f32 %v2341, %v2381
        %2383 = vmatmul.f32.gmra.mxu0 %v2057
        %v2384 = vpop.f32.mrf.mxu0
        %v2385 = vadd.f32 %v2344, %v2384
        %2386 = vmatmul.f32.gmra.mxu0 %v2060
        %v2387 = vpop.f32.mrf.mxu0
        %v2388 = vadd.f32 %v2347, %v2387
        %2389 = vmatmul.f32.gmra.mxu0 %v2063
        %v2390 = vpop.f32.mrf.mxu0
        %v2391 = vadd.f32 %v2350, %v2390
        %2392 = vmatmul.f32.gmra.mxu0 %v2066
        %v2393 = vpop.f32.mrf.mxu0
        %v2394 = vadd.f32 %v2353, %v2393
        %2395 = vmatmul.f32.gmra.mxu0 %v2069
        %v2396 = vpop.f32.mrf.mxu0
        %v2397 = vadd.f32 %v2356, %v2396
        %2398 = vmatmul.f32.gmra.mxu0 %v2072
        %v2399 = vpop.f32.mrf.mxu0
        %v2400 = vadd.f32 %v2359, %v2399
        %2401 = vmatmul.f32.gmra.mxu0 %v2075
        %v2402 = vpop.f32.mrf.mxu0
        %v2403 = vadd.f32 %v2362, %v2402
        %2404 = vdwg.mxu0
        %v2405 = vmax.f32 %v2136, 0.0
        %v2406 = vmax.f32 %v2218, 0.0
        %v2407 = vmax.f32 %v2300, 0.0
        %v2408 = vmax.f32 %v2382, 0.0
        %v2409 = vmax.f32 %v2139, 0.0
        %v2410 = vmax.f32 %v2221, 0.0
        %v2411 = vmax.f32 %v2303, 0.0
        %v2412 = vmax.f32 %v2385, 0.0
        %v2413 = vmax.f32 %v2142, 0.0
        %v2414 = vmax.f32 %v2224, 0.0
        %v2415 = vmax.f32 %v2306, 0.0
        %v2416 = vmax.f32 %v2388, 0.0
        %v2417 = vmax.f32 %v2145, 0.0
        %v2418 = vmax.f32 %v2227, 0.0
        %v2419 = vmax.f32 %v2309, 0.0
        %v2420 = vmax.f32 %v2391, 0.0
        %v2421 = vmax.f32 %v2148, 0.0
        %v2422 = vmax.f32 %v2230, 0.0
        %v2423 = vmax.f32 %v2312, 0.0
        %v2424 = vmax.f32 %v2394, 0.0
        %v2425 = vmax.f32 %v2151, 0.0
        %v2426 = vmax.f32 %v2233, 0.0
        %v2427 = vmax.f32 %v2315, 0.0
        %v2428 = vmax.f32 %v2397, 0.0
        %v2429 = vmax.f32 %v2154, 0.0
        %v2430 = vmax.f32 %v2236, 0.0
        %v2431 = vmax.f32 %v2318, 0.0
        %v2432 = vmax.f32 %v2400, 0.0
        %v2433 = vmax.f32 %v2157, 0.0
        %v2434 = vmax.f32 %v2239, 0.0
        %v2435 = vmax.f32 %v2321, 0.0
        %v2436 = vmax.f32 %v2403, 0.0
        %s2437 = scalar_lea.vmem [#allocation7], 384
        %v2438 = vld [vmem:[%s2437] sm:$0xff]
        %v2439 = vld [vmem:[%s2437 + $0x8] sm:$0xff]
        %v2440 = vld [vmem:[%s2437 + $0x10] sm:$0xff]
        %v2441 = vld [vmem:[%s2437 + $0x18] sm:$0xff]
        %v2442 = vld [vmem:[%s2437 + $0x20] sm:$0xff]
        %v2443 = vld [vmem:[%s2437 + $0x28] sm:$0xff]
        %v2444 = vld [vmem:[%s2437 + $0x30] sm:$0xff]
        %v2445 = vld [vmem:[%s2437 + $0x38] sm:$0xff]
        %v2446 = vld [vmem:[%s2437 + $0x40] sm:$0xff]
        %v2447 = vld [vmem:[%s2437 + $0x48] sm:$0xff]
        %v2448 = vld [vmem:[%s2437 + $0x50] sm:$0xff]
        %v2449 = vld [vmem:[%s2437 + $0x58] sm:$0xff]
        %v2450 = vld [vmem:[%s2437 + $0x60] sm:$0xff]
        %v2451 = vld [vmem:[%s2437 + $0x68] sm:$0xff]
        %v2452 = vld [vmem:[%s2437 + $0x70] sm:$0xff]
        %v2453 = vld [vmem:[%s2437 + $0x78] sm:$0xff]
        %2454 = vrot.lane.b32.xlu0 %v2405, 1
        %v2455 = vpop.permute.xlu0 %2454
        %2456 = vrot.lane.b32.xlu0 %v2409, 1
        %v2457 = vpop.permute.xlu0 %2456
        %2458 = vrot.lane.b32.xlu0 %v2413, 1
        %v2459 = vpop.permute.xlu0 %2458
        %2460 = vrot.lane.b32.xlu0 %v2417, 1
        %v2461 = vpop.permute.xlu0 %2460
        %2462 = vrot.lane.b32.xlu0 %v2421, 1
        %v2463 = vpop.permute.xlu0 %2462
        %2464 = vrot.lane.b32.xlu0 %v2425, 1
        %v2465 = vpop.permute.xlu0 %2464
        %2466 = vrot.lane.b32.xlu0 %v2429, 1
        %v2467 = vpop.permute.xlu0 %2466
        %2468 = vrot.lane.b32.xlu0 %v2433, 1
        %v2469 = vpop.permute.xlu0 %2468
        %2470 = vrot.lane.b32.xlu0 %v2406, 1
        %v2471 = vpop.permute.xlu0 %2470
        %2472 = vrot.lane.b32.xlu0 %v2410, 1
        %v2473 = vpop.permute.xlu0 %2472
        %2474 = vrot.lane.b32.xlu0 %v2414, 1
        %v2475 = vpop.permute.xlu0 %2474
        %2476 = vrot.lane.b32.xlu0 %v2418, 1
        %v2477 = vpop.permute.xlu0 %2476
        %2478 = vrot.lane.b32.xlu0 %v2422, 1
        %v2479 = vpop.permute.xlu0 %2478
        %2480 = vrot.lane.b32.xlu0 %v2426, 1
        %v2481 = vpop.permute.xlu0 %2480
        %2482 = vrot.lane.b32.xlu0 %v2430, 1
        %v2483 = vpop.permute.xlu0 %2482
        %2484 = vrot.lane.b32.xlu0 %v2434, 1
        %v2485 = vpop.permute.xlu0 %2484
        %2486 = vrot.lane.b32.xlu0 %v2407, 1
        %v2487 = vpop.permute.xlu0 %2486
        %2488 = vrot.lane.b32.xlu0 %v2411, 1
        %v2489 = vpop.permute.xlu0 %2488
        %2490 = vrot.lane.b32.xlu0 %v2415, 1
        %v2491 = vpop.permute.xlu0 %2490
        %2492 = vrot.lane.b32.xlu0 %v2419, 1
        %v2493 = vpop.permute.xlu0 %2492
        %2494 = vrot.lane.b32.xlu0 %v2423, 1
        %v2495 = vpop.permute.xlu0 %2494
        %2496 = vrot.lane.b32.xlu0 %v2427, 1
        %v2497 = vpop.permute.xlu0 %2496
        %2498 = vrot.lane.b32.xlu0 %v2431, 1
        %v2499 = vpop.permute.xlu0 %2498
        %2500 = vrot.lane.b32.xlu0 %v2435, 1
        %v2501 = vpop.permute.xlu0 %2500
        %2502 = vrot.lane.b32.xlu0 %v2408, 1
        %v2503 = vpop.permute.xlu0 %2502
        %2504 = vrot.lane.b32.xlu0 %v2412, 1
        %v2505 = vpop.permute.xlu0 %2504
        %2506 = vrot.lane.b32.xlu0 %v2416, 1
        %v2507 = vpop.permute.xlu0 %2506
        %2508 = vrot.lane.b32.xlu0 %v2420, 1
        %v2509 = vpop.permute.xlu0 %2508
        %2510 = vrot.lane.b32.xlu0 %v2424, 1
        %v2511 = vpop.permute.xlu0 %2510
        %2512 = vrot.lane.b32.xlu0 %v2428, 1
        %v2513 = vpop.permute.xlu0 %2512
        %2514 = vrot.lane.b32.xlu0 %v2432, 1
        %v2515 = vpop.permute.xlu0 %2514
        %2516 = vrot.lane.b32.xlu0 %v2436, 1
        %v2517 = vpop.permute.xlu0 %2516
        %v2518 = vsel %vm657, %v2487, %v2503
        %v2519 = vsel %vm657, %v2489, %v2505
        %v2520 = vsel %vm657, %v2491, %v2507
        %v2521 = vsel %vm657, %v2493, %v2509
        %v2522 = vsel %vm657, %v2495, %v2511
        %v2523 = vsel %vm657, %v2497, %v2513
        %v2524 = vsel %vm657, %v2499, %v2515
        %v2525 = vsel %vm657, %v2501, %v2517
        %v2526 = vsel %vm657, %v2471, %v2487
        %v2527 = vsel %vm657, %v2473, %v2489
        %v2528 = vsel %vm657, %v2475, %v2491
        %v2529 = vsel %vm657, %v2477, %v2493
        %v2530 = vsel %vm657, %v2479, %v2495
        %v2531 = vsel %vm657, %v2481, %v2497
        %v2532 = vsel %vm657, %v2483, %v2499
        %v2533 = vsel %vm657, %v2485, %v2501
        %v2534 = vsel %vm657, %v2455, %v2471
        %v2535 = vsel %vm657, %v2457, %v2473
        %v2536 = vsel %vm657, %v2459, %v2475
        %v2537 = vsel %vm657, %v2461, %v2477
        %v2538 = vsel %vm657, %v2463, %v2479
        %v2539 = vsel %vm657, %v2465, %v2481
        %v2540 = vsel %vm657, %v2467, %v2483
        %v2541 = vsel %vm657, %v2469, %v2485
        %v2542 = vsel %vm657, %v2503, %v2455
        %v2543 = vsel %vm657, %v2505, %v2457
        %v2544 = vsel %vm657, %v2507, %v2459
        %v2545 = vsel %vm657, %v2509, %v2461
        %v2546 = vsel %vm657, %v2511, %v2463
        %v2547 = vsel %vm657, %v2513, %v2465
        %v2548 = vsel %vm657, %v2515, %v2467
        %v2549 = vsel %vm657, %v2517, %v2469
        %v2550 = vmul.f32 %v665, %v2542
        %v2551 = vmul.f32 %v666, %v2534
        %v2552 = vmul.f32 %v1836, %v2526
        %v2553 = vmul.f32 %v1837, %v2518
        %v2554 = vmul.f32 %v665, %v2543
        %v2555 = vmul.f32 %v666, %v2535
        %v2556 = vmul.f32 %v1836, %v2527
        %v2557 = vmul.f32 %v1837, %v2519
        %v2558 = vmul.f32 %v665, %v2544
        %v2559 = vmul.f32 %v666, %v2536
        %v2560 = vmul.f32 %v1836, %v2528
        %v2561 = vmul.f32 %v1837, %v2520
        %v2562 = vmul.f32 %v665, %v2545
        %v2563 = vmul.f32 %v666, %v2537
        %v2564 = vmul.f32 %v1836, %v2529
        %v2565 = vmul.f32 %v1837, %v2521
        %v2566 = vmul.f32 %v665, %v2546
        %v2567 = vmul.f32 %v666, %v2538
        %v2568 = vmul.f32 %v1836, %v2530
        %v2569 = vmul.f32 %v1837, %v2522
        %v2570 = vmul.f32 %v665, %v2547
        %v2571 = vmul.f32 %v666, %v2539
        %v2572 = vmul.f32 %v1836, %v2531
        %v2573 = vmul.f32 %v1837, %v2523
        %v2574 = vmul.f32 %v665, %v2548
        %v2575 = vmul.f32 %v666, %v2540
        %v2576 = vmul.f32 %v1836, %v2532
        %v2577 = vmul.f32 %v1837, %v2524
        %v2578 = vmul.f32 %v665, %v2549
        %v2579 = vmul.f32 %v666, %v2541
        %v2580 = vmul.f32 %v1836, %v2533
        %v2581 = vmul.f32 %v1837, %v2525
        %2582 = vrot.lane.b32.xlu0 %v2405, 127
        %v2583 = vpop.permute.xlu0 %2582
        %2584 = vrot.lane.b32.xlu0 %v2409, 127
        %v2585 = vpop.permute.xlu0 %2584
        %2586 = vrot.lane.b32.xlu0 %v2413, 127
        %v2587 = vpop.permute.xlu0 %2586
        %2588 = vrot.lane.b32.xlu0 %v2417, 127
        %v2589 = vpop.permute.xlu0 %2588
        %2590 = vrot.lane.b32.xlu0 %v2421, 127
        %v2591 = vpop.permute.xlu0 %2590
        %2592 = vrot.lane.b32.xlu0 %v2425, 127
        %v2593 = vpop.permute.xlu0 %2592
        %2594 = vrot.lane.b32.xlu0 %v2429, 127
        %v2595 = vpop.permute.xlu0 %2594
        %2596 = vrot.lane.b32.xlu0 %v2433, 127
        %v2597 = vpop.permute.xlu0 %2596
        %2598 = vrot.lane.b32.xlu0 %v2406, 127
        %v2599 = vpop.permute.xlu0 %2598
        %2600 = vrot.lane.b32.xlu0 %v2410, 127
        %v2601 = vpop.permute.xlu0 %2600
        %2602 = vrot.lane.b32.xlu0 %v2414, 127
        %v2603 = vpop.permute.xlu0 %2602
        %2604 = vrot.lane.b32.xlu0 %v2418, 127
        %v2605 = vpop.permute.xlu0 %2604
        %2606 = vrot.lane.b32.xlu0 %v2422, 127
        %v2607 = vpop.permute.xlu0 %2606
        %2608 = vrot.lane.b32.xlu0 %v2426, 127
        %v2609 = vpop.permute.xlu0 %2608
        %2610 = vrot.lane.b32.xlu0 %v2430, 127
        %v2611 = vpop.permute.xlu0 %2610
        %2612 = vrot.lane.b32.xlu0 %v2434, 127
        %v2613 = vpop.permute.xlu0 %2612
        %2614 = vrot.lane.b32.xlu0 %v2407, 127
        %v2615 = vpop.permute.xlu0 %2614
        %2616 = vrot.lane.b32.xlu0 %v2411, 127
        %v2617 = vpop.permute.xlu0 %2616
        %2618 = vrot.lane.b32.xlu0 %v2415, 127
        %v2619 = vpop.permute.xlu0 %2618
        %2620 = vrot.lane.b32.xlu0 %v2419, 127
        %v2621 = vpop.permute.xlu0 %2620
        %2622 = vrot.lane.b32.xlu0 %v2423, 127
        %v2623 = vpop.permute.xlu0 %2622
        %2624 = vrot.lane.b32.xlu0 %v2427, 127
        %v2625 = vpop.permute.xlu0 %2624
        %2626 = vrot.lane.b32.xlu0 %v2431, 127
        %v2627 = vpop.permute.xlu0 %2626
        %2628 = vrot.lane.b32.xlu0 %v2435, 127
        %v2629 = vpop.permute.xlu0 %2628
        %2630 = vrot.lane.b32.xlu0 %v2408, 127
        %v2631 = vpop.permute.xlu0 %2630
        %2632 = vrot.lane.b32.xlu0 %v2412, 127
        %v2633 = vpop.permute.xlu0 %2632
        %2634 = vrot.lane.b32.xlu0 %v2416, 127
        %v2635 = vpop.permute.xlu0 %2634
        %2636 = vrot.lane.b32.xlu0 %v2420, 127
        %v2637 = vpop.permute.xlu0 %2636
        %2638 = vrot.lane.b32.xlu0 %v2424, 127
        %v2639 = vpop.permute.xlu0 %2638
        %2640 = vrot.lane.b32.xlu0 %v2428, 127
        %v2641 = vpop.permute.xlu0 %2640
        %2642 = vrot.lane.b32.xlu0 %v2432, 127
        %v2643 = vpop.permute.xlu0 %2642
        %2644 = vrot.lane.b32.xlu0 %v2436, 127
        %v2645 = vpop.permute.xlu0 %2644
        %v2646 = vsel %vm673, %v2615, %v2631
        %v2647 = vsel %vm673, %v2617, %v2633
        %v2648 = vsel %vm673, %v2619, %v2635
        %v2649 = vsel %vm673, %v2621, %v2637
        %v2650 = vsel %vm673, %v2623, %v2639
        %v2651 = vsel %vm673, %v2625, %v2641
        %v2652 = vsel %vm673, %v2627, %v2643
        %v2653 = vsel %vm673, %v2629, %v2645
        %v2654 = vsel %vm673, %v2599, %v2615
        %v2655 = vsel %vm673, %v2601, %v2617
        %v2656 = vsel %vm673, %v2603, %v2619
        %v2657 = vsel %vm673, %v2605, %v2621
        %v2658 = vsel %vm673, %v2607, %v2623
        %v2659 = vsel %vm673, %v2609, %v2625
        %v2660 = vsel %vm673, %v2611, %v2627
        %v2661 = vsel %vm673, %v2613, %v2629
        %v2662 = vsel %vm673, %v2583, %v2599
        %v2663 = vsel %vm673, %v2585, %v2601
        %v2664 = vsel %vm673, %v2587, %v2603
        %v2665 = vsel %vm673, %v2589, %v2605
        %v2666 = vsel %vm673, %v2591, %v2607
        %v2667 = vsel %vm673, %v2593, %v2609
        %v2668 = vsel %vm673, %v2595, %v2611
        %v2669 = vsel %vm673, %v2597, %v2613
        %v2670 = vsel %vm673, %v2631, %v2583
        %v2671 = vsel %vm673, %v2633, %v2585
        %v2672 = vsel %vm673, %v2635, %v2587
        %v2673 = vsel %vm673, %v2637, %v2589
        %v2674 = vsel %vm673, %v2639, %v2591
        %v2675 = vsel %vm673, %v2641, %v2593
        %v2676 = vsel %vm673, %v2643, %v2595
        %v2677 = vsel %vm673, %v2645, %v2597
        %v2678 = vmul.f32 %v680, %v2662
        %v2679 = vmul.f32 %v681, %v2654
        %v2680 = vmul.f32 %v1970, %v2646
        %v2681 = vmul.f32 %v1971, %v2670
        %v2682 = vmul.f32 %v680, %v2663
        %v2683 = vmul.f32 %v681, %v2655
        %v2684 = vmul.f32 %v1970, %v2647
        %v2685 = vmul.f32 %v1971, %v2671
        %v2686 = vmul.f32 %v680, %v2664
        %v2687 = vmul.f32 %v681, %v2656
        %v2688 = vmul.f32 %v1970, %v2648
        %v2689 = vmul.f32 %v1971, %v2672
        %v2690 = vmul.f32 %v680, %v2665
        %v2691 = vmul.f32 %v681, %v2657
        %v2692 = vmul.f32 %v1970, %v2649
        %v2693 = vmul.f32 %v1971, %v2673
        %v2694 = vmul.f32 %v680, %v2666
        %v2695 = vmul.f32 %v681, %v2658
        %v2696 = vmul.f32 %v1970, %v2650
        %v2697 = vmul.f32 %v1971, %v2674
        %v2698 = vmul.f32 %v680, %v2667
        %v2699 = vmul.f32 %v681, %v2659
        %v2700 = vmul.f32 %v1970, %v2651
        %v2701 = vmul.f32 %v1971, %v2675
        %v2702 = vmul.f32 %v680, %v2668
        %v2703 = vmul.f32 %v681, %v2660
        %v2704 = vmul.f32 %v1970, %v2652
        %v2705 = vmul.f32 %v1971, %v2676
        %v2706 = vmul.f32 %v680, %v2669
        %v2707 = vmul.f32 %v681, %v2661
        %v2708 = vmul.f32 %v1970, %v2653
        %v2709 = vmul.f32 %v1971, %v2677
        %s2710 = scalar_lea.vmem %s7, 192
        %v2711 = vld [vmem:[%s2710] sm:$0xff]
        %v2712 = vld [vmem:[%s2710 + $0x8] sm:$0xff]
        %v2713 = vld [vmem:[%s2710 + $0x10] sm:$0xff]
        %v2714 = vld [vmem:[%s2710 + $0x18] sm:$0xff]
        %v2715 = vld [vmem:[%s2710 + $0x20] sm:$0xff]
        %v2716 = vld [vmem:[%s2710 + $0x28] sm:$0xff]
        %v2717 = vld [vmem:[%s2710 + $0x30] sm:$0xff]
        %v2718 = vld [vmem:[%s2710 + $0x38] sm:$0xff]
        %2720 = vset.pattern.permute.xlu0 0
        %2721 = vperm.xlu0 %2720, %v2711
        %v2722 = vpop.permute.xlu0 %2721
        %2725 = vset.pattern.permute.xlu0 0
        %2726 = vperm.xlu0 %2725, %v2712
        %v2727 = vpop.permute.xlu0 %2726
        %2730 = vset.pattern.permute.xlu0 0
        %2731 = vperm.xlu0 %2730, %v2713
        %v2732 = vpop.permute.xlu0 %2731
        %2735 = vset.pattern.permute.xlu0 0
        %2736 = vperm.xlu0 %2735, %v2714
        %v2737 = vpop.permute.xlu0 %2736
        %2740 = vset.pattern.permute.xlu0 0
        %2741 = vperm.xlu0 %2740, %v2715
        %v2742 = vpop.permute.xlu0 %2741
        %2745 = vset.pattern.permute.xlu0 0
        %2746 = vperm.xlu0 %2745, %v2716
        %v2747 = vpop.permute.xlu0 %2746
        %2750 = vset.pattern.permute.xlu0 0
        %2751 = vperm.xlu0 %2750, %v2717
        %v2752 = vpop.permute.xlu0 %2751
        %2755 = vset.pattern.permute.xlu0 0
        %2756 = vperm.xlu0 %2755, %v2718
        %v2757 = vpop.permute.xlu0 %2756
        %v2760 = vsel %vm1076, %v2439, 0
        %v2763 = vsel %vm1076, %v2441, 0
        %v2766 = vsel %vm1076, %v2443, 0
        %v2769 = vsel %vm1076, %v2445, 0
        %v2772 = vsel %vm1076, %v2447, 0
        %v2775 = vsel %vm1076, %v2449, 0
        %v2778 = vsel %vm1076, %v2451, 0
        %v2781 = vsel %vm1076, %v2453, 0
        %2783 = vmatpush.msra.mxu0 %v2433
        %2784 = vmatpush.msra.mxu0 %v2429
        %2785 = vmatpush.msra.mxu0 %v2425
        %2786 = vmatpush.msra.mxu0 %v2421
        %2787 = vmatpush.msra.mxu0 %v2417
        %2788 = vmatpush.msra.mxu0 %v2413
        %2789 = vmatpush.msra.mxu0 %v2409
        %2790 = vmatpush.msra.mxu0 %v2405
        %2791 = vmatpush.msra.mxu0 %v2578
        %2792 = vmatpush.msra.mxu0 %v2574
        %2793 = vmatpush.msra.mxu0 %v2570
        %2794 = vmatpush.msra.mxu0 %v2566
        %2795 = vmatpush.msra.mxu0 %v2562
        %2796 = vmatpush.msra.mxu0 %v2558
        %2797 = vmatpush.msra.mxu0 %v2554
        %2798 = vmatpush.msra.mxu0 %v2550
        %2799 = vmatmul.f32.gmra.mxu0 %v2438
        %v2800 = vpop.f32.mrf.mxu0
        %v2801 = vadd.f32 %v2722, %v2800
        %2802 = vmatmul.f32.gmra.mxu0 %v2440
        %v2803 = vpop.f32.mrf.mxu0
        %v2804 = vadd.f32 %v2727, %v2803
        %2805 = vmatmul.f32.gmra.mxu0 %v2442
        %v2806 = vpop.f32.mrf.mxu0
        %v2807 = vadd.f32 %v2732, %v2806
        %2808 = vmatmul.f32.gmra.mxu0 %v2444
        %v2809 = vpop.f32.mrf.mxu0
        %v2810 = vadd.f32 %v2737, %v2809
        %2811 = vmatmul.f32.gmra.mxu0 %v2446
        %v2812 = vpop.f32.mrf.mxu0
        %v2813 = vadd.f32 %v2742, %v2812
        %2814 = vmatmul.f32.gmra.mxu0 %v2448
        %v2815 = vpop.f32.mrf.mxu0
        %v2816 = vadd.f32 %v2747, %v2815
        %2817 = vmatmul.f32.gmra.mxu0 %v2450
        %v2818 = vpop.f32.mrf.mxu0
        %v2819 = vadd.f32 %v2752, %v2818
        %2820 = vmatmul.f32.gmra.mxu0 %v2452
        %v2821 = vpop.f32.mrf.mxu0
        %v2822 = vadd.f32 %v2757, %v2821
        %2823 = vdwg.mxu0
        %2824 = vmatpush.msra.mxu0 0.0
        %2825 = vmatpush.msra.mxu0 0.0
        %2826 = vmatpush.msra.mxu0 0.0
        %2827 = vmatpush.msra.mxu0 0.0
        %2828 = vmatpush.msra.mxu0 0.0
        %2829 = vmatpush.msra.mxu0 0.0
        %2830 = vmatpush.msra.mxu0 0.0
        %2831 = vmatpush.msra.mxu0 0.0
        %2832 = vmatpush.msra.mxu0 %v2706
        %2833 = vmatpush.msra.mxu0 %v2702
        %2834 = vmatpush.msra.mxu0 %v2698
        %2835 = vmatpush.msra.mxu0 %v2694
        %2836 = vmatpush.msra.mxu0 %v2690
        %2837 = vmatpush.msra.mxu0 %v2686
        %2838 = vmatpush.msra.mxu0 %v2682
        %2839 = vmatpush.msra.mxu0 %v2678
        %2840 = vmatmul.f32.gmra.mxu0 %v2760
        %v2841 = vpop.f32.mrf.mxu0
        %v2842 = vadd.f32 %v2801, %v2841
        %2843 = vmatmul.f32.gmra.mxu0 %v2763
        %v2844 = vpop.f32.mrf.mxu0
        %v2845 = vadd.f32 %v2804, %v2844
        %2846 = vmatmul.f32.gmra.mxu0 %v2766
        %v2847 = vpop.f32.mrf.mxu0
        %v2848 = vadd.f32 %v2807, %v2847
        %2849 = vmatmul.f32.gmra.mxu0 %v2769
        %v2850 = vpop.f32.mrf.mxu0
        %v2851 = vadd.f32 %v2810, %v2850
        %2852 = vmatmul.f32.gmra.mxu0 %v2772
        %v2853 = vpop.f32.mrf.mxu0
        %v2854 = vadd.f32 %v2813, %v2853
        %2855 = vmatmul.f32.gmra.mxu0 %v2775
        %v2856 = vpop.f32.mrf.mxu0
        %v2857 = vadd.f32 %v2816, %v2856
        %2858 = vmatmul.f32.gmra.mxu0 %v2778
        %v2859 = vpop.f32.mrf.mxu0
        %v2860 = vadd.f32 %v2819, %v2859
        %2861 = vmatmul.f32.gmra.mxu0 %v2781
        %v2862 = vpop.f32.mrf.mxu0
        %v2863 = vadd.f32 %v2822, %v2862
        %2864 = vdwg.mxu0
        %2865 = vmatpush.msra.mxu0 %v2434
        %2866 = vmatpush.msra.mxu0 %v2430
        %2867 = vmatpush.msra.mxu0 %v2426
        %2868 = vmatpush.msra.mxu0 %v2422
        %2869 = vmatpush.msra.mxu0 %v2418
        %2870 = vmatpush.msra.mxu0 %v2414
        %2871 = vmatpush.msra.mxu0 %v2410
        %2872 = vmatpush.msra.mxu0 %v2406
        %2873 = vmatpush.msra.mxu0 %v2579
        %2874 = vmatpush.msra.mxu0 %v2575
        %2875 = vmatpush.msra.mxu0 %v2571
        %2876 = vmatpush.msra.mxu0 %v2567
        %2877 = vmatpush.msra.mxu0 %v2563
        %2878 = vmatpush.msra.mxu0 %v2559
        %2879 = vmatpush.msra.mxu0 %v2555
        %2880 = vmatpush.msra.mxu0 %v2551
        %2881 = vmatmul.f32.gmra.mxu0 %v2438
        %v2882 = vpop.f32.mrf.mxu0
        %v2883 = vadd.f32 %v2722, %v2882
        %2884 = vmatmul.f32.gmra.mxu0 %v2440
        %v2885 = vpop.f32.mrf.mxu0
        %v2886 = vadd.f32 %v2727, %v2885
        %2887 = vmatmul.f32.gmra.mxu0 %v2442
        %v2888 = vpop.f32.mrf.mxu0
        %v2889 = vadd.f32 %v2732, %v2888
        %2890 = vmatmul.f32.gmra.mxu0 %v2444
        %v2891 = vpop.f32.mrf.mxu0
        %v2892 = vadd.f32 %v2737, %v2891
        %2893 = vmatmul.f32.gmra.mxu0 %v2446
        %v2894 = vpop.f32.mrf.mxu0
        %v2895 = vadd.f32 %v2742, %v2894
        %2896 = vmatmul.f32.gmra.mxu0 %v2448
        %v2897 = vpop.f32.mrf.mxu0
        %v2898 = vadd.f32 %v2747, %v2897
        %2899 = vmatmul.f32.gmra.mxu0 %v2450
        %v2900 = vpop.f32.mrf.mxu0
        %v2901 = vadd.f32 %v2752, %v2900
        %2902 = vmatmul.f32.gmra.mxu0 %v2452
        %v2903 = vpop.f32.mrf.mxu0
        %v2904 = vadd.f32 %v2757, %v2903
        %2905 = vdwg.mxu0
        %2906 = vmatpush.msra.mxu0 0.0
        %2907 = vmatpush.msra.mxu0 0.0
        %2908 = vmatpush.msra.mxu0 0.0
        %2909 = vmatpush.msra.mxu0 0.0
        %2910 = vmatpush.msra.mxu0 0.0
        %2911 = vmatpush.msra.mxu0 0.0
        %2912 = vmatpush.msra.mxu0 0.0
        %2913 = vmatpush.msra.mxu0 0.0
        %2914 = vmatpush.msra.mxu0 %v2707
        %2915 = vmatpush.msra.mxu0 %v2703
        %2916 = vmatpush.msra.mxu0 %v2699
        %2917 = vmatpush.msra.mxu0 %v2695
        %2918 = vmatpush.msra.mxu0 %v2691
        %2919 = vmatpush.msra.mxu0 %v2687
        %2920 = vmatpush.msra.mxu0 %v2683
        %2921 = vmatpush.msra.mxu0 %v2679
        %2922 = vmatmul.f32.gmra.mxu0 %v2760
        %v2923 = vpop.f32.mrf.mxu0
        %v2924 = vadd.f32 %v2883, %v2923
        %2925 = vmatmul.f32.gmra.mxu0 %v2763
        %v2926 = vpop.f32.mrf.mxu0
        %v2927 = vadd.f32 %v2886, %v2926
        %2928 = vmatmul.f32.gmra.mxu0 %v2766
        %v2929 = vpop.f32.mrf.mxu0
        %v2930 = vadd.f32 %v2889, %v2929
        %2931 = vmatmul.f32.gmra.mxu0 %v2769
        %v2932 = vpop.f32.mrf.mxu0
        %v2933 = vadd.f32 %v2892, %v2932
        %2934 = vmatmul.f32.gmra.mxu0 %v2772
        %v2935 = vpop.f32.mrf.mxu0
        %v2936 = vadd.f32 %v2895, %v2935
        %2937 = vmatmul.f32.gmra.mxu0 %v2775
        %v2938 = vpop.f32.mrf.mxu0
        %v2939 = vadd.f32 %v2898, %v2938
        %2940 = vmatmul.f32.gmra.mxu0 %v2778
        %v2941 = vpop.f32.mrf.mxu0
        %v2942 = vadd.f32 %v2901, %v2941
        %2943 = vmatmul.f32.gmra.mxu0 %v2781
        %v2944 = vpop.f32.mrf.mxu0
        %v2945 = vadd.f32 %v2904, %v2944
        %2946 = vdwg.mxu0
        %2947 = vmatpush.msra.mxu0 %v2435
        %2948 = vmatpush.msra.mxu0 %v2431
        %2949 = vmatpush.msra.mxu0 %v2427
        %2950 = vmatpush.msra.mxu0 %v2423
        %2951 = vmatpush.msra.mxu0 %v2419
        %2952 = vmatpush.msra.mxu0 %v2415
        %2953 = vmatpush.msra.mxu0 %v2411
        %2954 = vmatpush.msra.mxu0 %v2407
        %2955 = vmatpush.msra.mxu0 %v2580
        %2956 = vmatpush.msra.mxu0 %v2576
        %2957 = vmatpush.msra.mxu0 %v2572
        %2958 = vmatpush.msra.mxu0 %v2568
        %2959 = vmatpush.msra.mxu0 %v2564
        %2960 = vmatpush.msra.mxu0 %v2560
        %2961 = vmatpush.msra.mxu0 %v2556
        %2962 = vmatpush.msra.mxu0 %v2552
        %2963 = vmatmul.f32.gmra.mxu0 %v2438
        %v2964 = vpop.f32.mrf.mxu0
        %v2965 = vadd.f32 %v2722, %v2964
        %2966 = vmatmul.f32.gmra.mxu0 %v2440
        %v2967 = vpop.f32.mrf.mxu0
        %v2968 = vadd.f32 %v2727, %v2967
        %2969 = vmatmul.f32.gmra.mxu0 %v2442
        %v2970 = vpop.f32.mrf.mxu0
        %v2971 = vadd.f32 %v2732, %v2970
        %2972 = vmatmul.f32.gmra.mxu0 %v2444
        %v2973 = vpop.f32.mrf.mxu0
        %v2974 = vadd.f32 %v2737, %v2973
        %2975 = vmatmul.f32.gmra.mxu0 %v2446
        %v2976 = vpop.f32.mrf.mxu0
        %v2977 = vadd.f32 %v2742, %v2976
        %2978 = vmatmul.f32.gmra.mxu0 %v2448
        %v2979 = vpop.f32.mrf.mxu0
        %v2980 = vadd.f32 %v2747, %v2979
        %2981 = vmatmul.f32.gmra.mxu0 %v2450
        %v2982 = vpop.f32.mrf.mxu0
        %v2983 = vadd.f32 %v2752, %v2982
        %2984 = vmatmul.f32.gmra.mxu0 %v2452
        %v2985 = vpop.f32.mrf.mxu0
        %v2986 = vadd.f32 %v2757, %v2985
        %2987 = vdwg.mxu0
        %2988 = vmatpush.msra.mxu0 0.0
        %2989 = vmatpush.msra.mxu0 0.0
        %2990 = vmatpush.msra.mxu0 0.0
        %2991 = vmatpush.msra.mxu0 0.0
        %2992 = vmatpush.msra.mxu0 0.0
        %2993 = vmatpush.msra.mxu0 0.0
        %2994 = vmatpush.msra.mxu0 0.0
        %2995 = vmatpush.msra.mxu0 0.0
        %2996 = vmatpush.msra.mxu0 %v2708
        %2997 = vmatpush.msra.mxu0 %v2704
        %2998 = vmatpush.msra.mxu0 %v2700
        %2999 = vmatpush.msra.mxu0 %v2696
        %3000 = vmatpush.msra.mxu0 %v2692
        %3001 = vmatpush.msra.mxu0 %v2688
        %3002 = vmatpush.msra.mxu0 %v2684
        %3003 = vmatpush.msra.mxu0 %v2680
        %3004 = vmatmul.f32.gmra.mxu0 %v2760
        %v3005 = vpop.f32.mrf.mxu0
        %v3006 = vadd.f32 %v2965, %v3005
        %3007 = vmatmul.f32.gmra.mxu0 %v2763
        %v3008 = vpop.f32.mrf.mxu0
        %v3009 = vadd.f32 %v2968, %v3008
        %3010 = vmatmul.f32.gmra.mxu0 %v2766
        %v3011 = vpop.f32.mrf.mxu0
        %v3012 = vadd.f32 %v2971, %v3011
        %3013 = vmatmul.f32.gmra.mxu0 %v2769
        %v3014 = vpop.f32.mrf.mxu0
        %v3015 = vadd.f32 %v2974, %v3014
        %3016 = vmatmul.f32.gmra.mxu0 %v2772
        %v3017 = vpop.f32.mrf.mxu0
        %v3018 = vadd.f32 %v2977, %v3017
        %3019 = vmatmul.f32.gmra.mxu0 %v2775
        %v3020 = vpop.f32.mrf.mxu0
        %v3021 = vadd.f32 %v2980, %v3020
        %3022 = vmatmul.f32.gmra.mxu0 %v2778
        %v3023 = vpop.f32.mrf.mxu0
        %v3024 = vadd.f32 %v2983, %v3023
        %3025 = vmatmul.f32.gmra.mxu0 %v2781
        %v3026 = vpop.f32.mrf.mxu0
        %v3027 = vadd.f32 %v2986, %v3026
        %3028 = vdwg.mxu0
        %3029 = vmatpush.msra.mxu0 %v2436
        %3030 = vmatpush.msra.mxu0 %v2432
        %3031 = vmatpush.msra.mxu0 %v2428
        %3032 = vmatpush.msra.mxu0 %v2424
        %3033 = vmatpush.msra.mxu0 %v2420
        %3034 = vmatpush.msra.mxu0 %v2416
        %3035 = vmatpush.msra.mxu0 %v2412
        %3036 = vmatpush.msra.mxu0 %v2408
        %3037 = vmatpush.msra.mxu0 %v2581
        %3038 = vmatpush.msra.mxu0 %v2577
        %3039 = vmatpush.msra.mxu0 %v2573
        %3040 = vmatpush.msra.mxu0 %v2569
        %3041 = vmatpush.msra.mxu0 %v2565
        %3042 = vmatpush.msra.mxu0 %v2561
        %3043 = vmatpush.msra.mxu0 %v2557
        %3044 = vmatpush.msra.mxu0 %v2553
        %3045 = vmatmul.f32.gmra.mxu0 %v2438
        %v3046 = vpop.f32.mrf.mxu0
        %v3047 = vadd.f32 %v2722, %v3046
        %3048 = vmatmul.f32.gmra.mxu0 %v2440
        %v3049 = vpop.f32.mrf.mxu0
        %v3050 = vadd.f32 %v2727, %v3049
        %3051 = vmatmul.f32.gmra.mxu0 %v2442
        %v3052 = vpop.f32.mrf.mxu0
        %v3053 = vadd.f32 %v2732, %v3052
        %3054 = vmatmul.f32.gmra.mxu0 %v2444
        %v3055 = vpop.f32.mrf.mxu0
        %v3056 = vadd.f32 %v2737, %v3055
        %3057 = vmatmul.f32.gmra.mxu0 %v2446
        %v3058 = vpop.f32.mrf.mxu0
        %v3059 = vadd.f32 %v2742, %v3058
        %3060 = vmatmul.f32.gmra.mxu0 %v2448
        %v3061 = vpop.f32.mrf.mxu0
        %v3062 = vadd.f32 %v2747, %v3061
        %3063 = vmatmul.f32.gmra.mxu0 %v2450
        %v3064 = vpop.f32.mrf.mxu0
        %v3065 = vadd.f32 %v2752, %v3064
        %3066 = vmatmul.f32.gmra.mxu0 %v2452
        %v3067 = vpop.f32.mrf.mxu0
        %v3068 = vadd.f32 %v2757, %v3067
        %3069 = vdwg.mxu0
        %3070 = vmatpush.msra.mxu0 0.0
        %3071 = vmatpush.msra.mxu0 0.0
        %3072 = vmatpush.msra.mxu0 0.0
        %3073 = vmatpush.msra.mxu0 0.0
        %3074 = vmatpush.msra.mxu0 0.0
        %3075 = vmatpush.msra.mxu0 0.0
        %3076 = vmatpush.msra.mxu0 0.0
        %3077 = vmatpush.msra.mxu0 0.0
        %3078 = vmatpush.msra.mxu0 %v2709
        %3079 = vmatpush.msra.mxu0 %v2705
        %3080 = vmatpush.msra.mxu0 %v2701
        %3081 = vmatpush.msra.mxu0 %v2697
        %3082 = vmatpush.msra.mxu0 %v2693
        %3083 = vmatpush.msra.mxu0 %v2689
        %3084 = vmatpush.msra.mxu0 %v2685
        %3085 = vmatpush.msra.mxu0 %v2681
        %3086 = vmatmul.f32.gmra.mxu0 %v2760
        %v3087 = vpop.f32.mrf.mxu0
        %v3088 = vadd.f32 %v3047, %v3087
        %3089 = vmatmul.f32.gmra.mxu0 %v2763
        %v3090 = vpop.f32.mrf.mxu0
        %v3091 = vadd.f32 %v3050, %v3090
        %3092 = vmatmul.f32.gmra.mxu0 %v2766
        %v3093 = vpop.f32.mrf.mxu0
        %v3094 = vadd.f32 %v3053, %v3093
        %3095 = vmatmul.f32.gmra.mxu0 %v2769
        %v3096 = vpop.f32.mrf.mxu0
        %v3097 = vadd.f32 %v3056, %v3096
        %3098 = vmatmul.f32.gmra.mxu0 %v2772
        %v3099 = vpop.f32.mrf.mxu0
        %v3100 = vadd.f32 %v3059, %v3099
        %3101 = vmatmul.f32.gmra.mxu0 %v2775
        %v3102 = vpop.f32.mrf.mxu0
        %v3103 = vadd.f32 %v3062, %v3102
        %3104 = vmatmul.f32.gmra.mxu0 %v2778
        %v3105 = vpop.f32.mrf.mxu0
        %v3106 = vadd.f32 %v3065, %v3105
        %3107 = vmatmul.f32.gmra.mxu0 %v2781
        %v3108 = vpop.f32.mrf.mxu0
        %v3109 = vadd.f32 %v3068, %v3108
        %3110 = vdwg.mxu0
        %v3111 = vld [vmem:[%s8] sm:$0x3]
        %v3113 = vsel %vm1076, %v3111, 0
        %3115 = vmatpush.msra.mxu0 0.0
        %3116 = vmatpush.msra.mxu0 0.0
        %3117 = vmatpush.msra.mxu0 0.0
        %3118 = vmatpush.msra.mxu0 0.0
        %3119 = vmatpush.msra.mxu0 0.0
        %3120 = vmatpush.msra.mxu0 0.0
        %3121 = vmatpush.msra.mxu0 0.0
        %3122 = vmatpush.msra.mxu0 0.0
        %3123 = vmatpush.msra.mxu0 %v2863
        %3124 = vmatpush.msra.mxu0 %v2860
        %3125 = vmatpush.msra.mxu0 %v2857
        %3126 = vmatpush.msra.mxu0 %v2854
        %3127 = vmatpush.msra.mxu0 %v2851
        %3128 = vmatpush.msra.mxu0 %v2848
        %3129 = vmatpush.msra.mxu0 %v2845
        %3130 = vmatpush.msra.mxu0 %v2842
        %3131 = vmatmul.f32.gmra.mxu0 %v3113
        %v3132 = vpop.f32.mrf.mxu0
        %v3133 = vadd.f32 0.0, %v3132
        %3134 = vdwg.mxu0
        %3135 = vmatpush.msra.mxu0 0.0
        %3136 = vmatpush.msra.mxu0 0.0
        %3137 = vmatpush.msra.mxu0 0.0
        %3138 = vmatpush.msra.mxu0 0.0
        %3139 = vmatpush.msra.mxu0 0.0
        %3140 = vmatpush.msra.mxu0 0.0
        %3141 = vmatpush.msra.mxu0 0.0
        %3142 = vmatpush.msra.mxu0 0.0
        %3143 = vmatpush.msra.mxu0 %v2945
        %3144 = vmatpush.msra.mxu0 %v2942
        %3145 = vmatpush.msra.mxu0 %v2939
        %3146 = vmatpush.msra.mxu0 %v2936
        %3147 = vmatpush.msra.mxu0 %v2933
        %3148 = vmatpush.msra.mxu0 %v2930
        %3149 = vmatpush.msra.mxu0 %v2927
        %3150 = vmatpush.msra.mxu0 %v2924
        %3151 = vmatmul.f32.gmra.mxu0 %v3113
        %v3152 = vpop.f32.mrf.mxu0
        %v3153 = vadd.f32 0.0, %v3152
        %3154 = vdwg.mxu0
        %v3155 = vadd.f32 %v600, %v3133
        %v3156 = vadd.f32 %v601, %v3153
        %v3157 = vstv %s423
        %v3158 = vadd.f32 %v3155, %v3157
        %v3159 = vadd.f32 %v3156, %v3157
        %v3162 = vrot.slane %v3133, 1
        %v3163 = vrot.slane %v3153, 1
        %v3166 = vadd.f32 %v612, %v3162
        %v3167 = vadd.f32 %v613, %v3163
        %v3168 = vstv %s424
        %v3169 = vadd.f32 %v3166, %v3168
        %v3170 = vadd.f32 %v3167, %v3168
        %v3173 = vrot.slane %v3169, 7
        %v3174 = vrot.slane %v3170, 7
        %v3177 = vsel %vm648, %v3158, %v3173
        %v3178 = vsel %vm648, %v3159, %v3174
        %v3181 = vrot.slane %v3178, 6
        %v3182 = vsel %vm696, %v3177, %v3181
        %3184 = vst [vmem:[%s405] sm:$0xf] %v3182
        %v3185 = vsub.f32 %v3006, %v868
        %v3186 = vsub.f32 %v3088, %v869
        %v3187 = vsub.f32 %v3009, %v870
        %v3188 = vsub.f32 %v3091, %v871
        %v3189 = vsub.f32 %v3012, %v872
        %v3190 = vsub.f32 %v3094, %v873
        %v3191 = vsub.f32 %v3015, %v874
        %v3192 = vsub.f32 %v3097, %v875
        %v3193 = vsub.f32 %v3018, %v876
        %v3194 = vsub.f32 %v3100, %v877
        %v3195 = vsub.f32 %v3021, %v878
        %v3196 = vsub.f32 %v3103, %v879
        %v3197 = vsub.f32 %v3024, %v880
        %v3198 = vsub.f32 %v3106, %v881
        %v3199 = vsub.f32 %v3027, %v882
        %v3200 = vsub.f32 %v3109, %v883
        %3201 = vst [vmem:[%s412] sm:$0xff] %v3185
        %3202 = vst [vmem:[%s412 + $0x8] sm:$0xff] %v3186
        %3203 = vst [vmem:[%s412 + $0x10] sm:$0xff] %v3187
        %3204 = vst [vmem:[%s412 + $0x18] sm:$0xff] %v3188
        %3205 = vst [vmem:[%s412 + $0x20] sm:$0xff] %v3189
        %3206 = vst [vmem:[%s412 + $0x28] sm:$0xff] %v3190
        %3207 = vst [vmem:[%s412 + $0x30] sm:$0xff] %v3191
        %3208 = vst [vmem:[%s412 + $0x38] sm:$0xff] %v3192
        %3209 = vst [vmem:[%s412 + $0x40] sm:$0xff] %v3193
        %3210 = vst [vmem:[%s412 + $0x48] sm:$0xff] %v3194
        %3211 = vst [vmem:[%s412 + $0x50] sm:$0xff] %v3195
        %3212 = vst [vmem:[%s412 + $0x58] sm:$0xff] %v3196
        %3213 = vst [vmem:[%s412 + $0x60] sm:$0xff] %v3197
        %3214 = vst [vmem:[%s412 + $0x68] sm:$0xff] %v3198
        %3215 = vst [vmem:[%s412 + $0x70] sm:$0xff] %v3199
        %3216 = vst [vmem:[%s412 + $0x78] sm:$0xff] %v3200
        %s3217 = sand.u32 %s233, 1
        %s3218 = scalar_lea.sflag [#allocation4], %s3217
        %s3219 = sand.u32 %s233, 1
        %s3220 = smul.addr %s3219, 4
        %s3221 = scalar_lea.vmem [#allocation9], %s3220
        %s3222 = sand.u32 %s259, 1
        %s3223 = scalar_lea.sflag [#allocation11], %s3222
        %s3224 = sand.u32 %s259, 1
        %s3225 = smul.addr %s3224, 128
        %s3226 = scalar_lea.vmem [#allocation10], %s3225
        // Predicated region
        $region69: #{tpu_custom_call.1} parent=55 // pred_check
          %p3227 = pneg %p243
        $region70: #{tpu_custom_call.1} parent=55 // pred_check_branch
          %3229 = sbr.rel (%p3227) target = $region72
        $region71: #{tpu_custom_call.1} parent=55 // pred_region
          %3231 = vsyncadd %s3218, 0
          %s3232 = smul.addr %s31, 2
          %s3233 = smul.addr %s3232, 2
          %s3234 = scalar_lea.hbm %s9, %s3233
          %s3236 = sshll.u32 %s3221, 4
          %s3237 = int_to_ptr.vmem [resolvable:$true] %s3236
          %s3238 = sshll.u32 %s3234, 4
          %s3239 = int_to_ptr.hbm [resolvable:$true] %s3238
          %3241 = dma.vmem_to_hbm [thread:$0]  %s3237, 64, %s3239, %s3218
        $region72: #{tpu_custom_call.1} parent=55 // pred_fallthru
          _
        // Predicated region
        $region73: #{tpu_custom_call.1} parent=55 // pred_check
          %p3242 = pneg %p269
        $region74: #{tpu_custom_call.1} parent=55 // pred_check_branch
          %3244 = sbr.rel (%p3242) target = $region76
        $region75: #{tpu_custom_call.1} parent=55 // pred_region
          %3246 = vsyncadd %s3223, 0
          %s3247 = smul.addr %s31, 16
          %s3248 = smul.addr %s3247, 8
          %s3249 = scalar_lea.hbm %s10, %s3248
          %s3250 = sshll.u32 %s3226, 4
          %s3251 = int_to_ptr.vmem [resolvable:$true] %s3250
          %s3252 = sshll.u32 %s3249, 4
          %s3253 = int_to_ptr.hbm [resolvable:$true] %s3252
          %3258 = dma.vmem_to_hbm [thread:$0]  %s3251, 2048, %s3253, %s3223, 256, 256, 16
        $region76: #{tpu_custom_call.1} parent=55 // pred_fallthru
          _
      $region56: #{tpu_custom_call.1} parent=5 // pred_fallthru
        _
      %p3259 = scmp.le.s32.totalorder 2, %s26
      // Predicated region
      $region77: #{tpu_custom_call.1} parent=5 // pred_check
        %p3260 = pneg %p3259
      $region78: #{tpu_custom_call.1} parent=5 // pred_check_branch
        %3262 = sbr.rel (%p3260) target = $region80
      $region79: #{tpu_custom_call.1} parent=5 // pred_region
        %s3263 = ssub.s32 %s26, 2
        // Predicated region
        $region81: #{tpu_custom_call.1} parent=79 // pred_check
          %p3264 = pneg %p249
        $region82: #{tpu_custom_call.1} parent=79 // pred_check_branch
          %3266 = sbr.rel (%p3264) target = $region84
        $region83: #{tpu_custom_call.1} parent=79 // pred_region
          %s3267 = sand.u32 %s234, 1
          %s3268 = scalar_lea.sflag [#allocation4], %s3267
          %s3269 = sand.u32 %s234, 1
          %s3270 = smul.addr %s3269, 4
          %s3271 = scalar_lea.vmem [#allocation9], %s3270
          %3273 = dma.done %s3268, 64
        $region84: #{tpu_custom_call.1} parent=79 // pred_fallthru
          _
        // Predicated region
        $region85: #{tpu_custom_call.1} parent=79 // pred_check
          %p3274 = pneg %p275
        $region86: #{tpu_custom_call.1} parent=79 // pred_check_branch
          %3276 = sbr.rel (%p3274) target = $region88
        $region87: #{tpu_custom_call.1} parent=79 // pred_region
          %s3277 = sand.u32 %s260, 1
          %s3278 = scalar_lea.sflag [#allocation11], %s3277
          %s3279 = sand.u32 %s260, 1
          %s3280 = smul.addr %s3279, 128
          %s3281 = scalar_lea.vmem [#allocation10], %s3280
          %3283 = dma.done %s3278, 2048
        $region88: #{tpu_custom_call.1} parent=79 // pred_fallthru
          _
      $region80: #{tpu_custom_call.1} parent=5 // pred_fallthru
        _
    $region6: #{tpu_custom_call.1} parent=1 // loop_footer
      %s30 = sadd.s32 1, %s26
    $region7: #{tpu_custom_call.1} parent=1 // loop_footer_branch
      %25 = sbr.rel target = $region3
    $region8: #{tpu_custom_call.1} parent=1 // loop_exit
      _
    %3284 = vsyncpa [#allocation3], 1
    %s3285 = scalar_lea.sflag [#allocation3], 1
    %3286 = vsyncpa %s3285, 1
    %3287 = vsyncpa [#allocation8], 1
    %3288 = vsyncpa [#allocation4], 1
    %s3289 = scalar_lea.sflag [#allocation4], 1
    %3290 = vsyncpa %s3289, 1
    %3291 = vsyncpa [#allocation11], 1
    %s3292 = scalar_lea.sflag [#allocation11], 1
    %3293 = vsyncpa %s3292, 1
    %3294 = vsyncpa [#allocation5], 1
    %s3295 = scalar_lea.sflag [#allocation5], 1
    %3296 = vsyncpa %s3295, 1

</llo_original>
